<compile_context>
chip_gen: v7x
topology: tpu7x:2x2x1
jax: 0.10.0
libtpu: 0.0.40
codegen_flags: <defaults>
</compile_context>

<pallas_src>
import functools

import jax
import jax.numpy as jnp
from jax.experimental import pallas as pl
from jax.experimental.pallas import tpu as pltpu


CLASS_WEIGHTS = (0.25, 2.5, 2.5, 2.0, 1.5, 1.5, 1.0)   # from the reference train.py

_N_STATS = 5  # [inter, sum_probs, sum_onehot, sum(onehot*nll), sum(onehot*focal)]


# --------------------------------------------------------------------------- #
# Host-side helpers
# --------------------------------------------------------------------------- #
def _interp_matrix(out_size: int, in_size: int) -> jnp.ndarray:
    """PyTorch F.interpolate(mode='bilinear', align_corners=False) 1-D weights.

    Returns (out_size, in_size) so that out = W @ x along that axis.
    """
    scale = in_size / out_size
    dst = jnp.arange(out_size, dtype=jnp.float32)
    src = (dst + 0.5) * scale - 0.5
    src = jnp.maximum(src, 0.0)                       # PyTorch clamps negative src to 0
    i0 = jnp.floor(src).astype(jnp.int32)
    i0 = jnp.minimum(i0, in_size - 1)
    i1 = jnp.minimum(i0 + 1, in_size - 1)
    frac = src - i0.astype(jnp.float32)
    w = (jax.nn.one_hot(i0, in_size, dtype=jnp.float32) * (1.0 - frac)[:, None]
         + jax.nn.one_hot(i1, in_size, dtype=jnp.float32) * frac[:, None])
    return w


def _vmem_bytes_estimate(tile_h, h, C, w, W):
    """Rough per-grid-step VMEM footprint: double-buffered blocks + f32 temps."""
    bf16, f32, i32 = 2, 4, 4
    dbuf = 2 * (h * C * w * bf16              # logits block (bf16)
                + tile_h * h * f32            # row-interp block (f32)
                + (C * w) * (C * W) * bf16    # block-diagonal col-interp (bf16)
                + tile_h * W * i32            # label block (int32)
                + 8 * 128 * f32)              # stats output block
    temps = (10 * C * tile_h * W * f32        # (C, tile_h, W) f32 slabs
             + 8 * tile_h * W * f32           # (1, tile_h, W) f32 fields
             + tile_h * C * w * (f32 + bf16)  # u1 + its bf16 cast
             + tile_h * C * W * f32)          # up2d
    return dbuf + temps


def _vmem_capacity_bytes():
    try:
        return int(pltpu.get_tpu_info().vmem_capacity_bytes)
    except Exception:
        return 64 << 20       # conservative fallback (v7x per-core VMEM)


def _pick_tile_h(H, h, C, w, W, h_parts, budget):
    """Largest H-tile (multiple of 8, evenly dividing H / h_parts) that keeps
    the estimated per-step VMEM footprint under `budget`."""
    rows = H // h_parts
    cands = [t for t in range(8, rows + 1, 8) if rows % t == 0]
    if not cands and h_parts == 1:
        cands = [H]           # full-image tile is always layout-legal
    if not cands:
        raise ValueError("H / h_parts must admit a tile that is a multiple of 8")
    fitting = [t for t in cands if _vmem_bytes_estimate(t, h, C, w, W) <= budget]
    return max(fitting) if fitting else min(cands)


# --------------------------------------------------------------------------- #
# Kernel
# --------------------------------------------------------------------------- #
def _combined_stats_kernel(xt_ref, wy_ref, wxt_ref, lab_ref, out_ref, *, n_classes):
    # xt_ref:  (1, h, C*w)      bf16 logits, channels concatenated along lanes
    # wy_ref:  (tile_h, h)      f32  row-interp matrix block for this H-tile
    # wxt_ref: (C*w, C*W)       bf16 block-diagonal col-interp matrix (transposed)
    # lab_ref: (1, tile_h, W)   int32 labels for this H-tile
    # out_ref: (1, 1, Cp, 128)  f32 lane-padded per-(image, partition) sums
    t = pl.program_id(2)
    C = n_classes
    tile_h, w_out = lab_ref.shape[1], lab_ref.shape[2]

    @pl.when(t == 0)
    def _init():
        out_ref[...] = jnp.zeros_like(out_ref)

    # ---- bilinear upsample: two channel-batched bf16 MXU matmuls ------------
    wy = wy_ref[...].astype(jnp.bfloat16)                               # (th, h)
    u1 = jnp.dot(wy, xt_ref[0], preferred_element_type=jnp.float32)     # (th, C*w)
    up2d = jnp.dot(u1.astype(jnp.bfloat16), wxt_ref[...],
                   preferred_element_type=jnp.float32)                  # (th, C*W)
    # channel slabs live at lane offsets c*W (pure vreg selects when W % 128 == 0)
    up = jnp.stack([up2d[:, c * w_out:(c + 1) * w_out] for c in range(C)],
                   axis=0)                                              # (C, th, W)

    # ---- softmax over channels (major axis; elementwise across slabs) -------
    m = jnp.max(up, axis=0, keepdims=True)                              # (1, th, W)
    e = jnp.exp(up - m)
    se = jnp.sum(e, axis=0, keepdims=True)
    probs = e / se                                                      # exact (Dice)

    # ---- one-hot(labels) without gather --------------------------------------
    labels = lab_ref[...]                                               # (1, th, W)
    cls = jax.lax.broadcasted_iota(jnp.int32, (C, tile_h, w_out), 0)
    onehot = (labels == cls).astype(jnp.float32)                        # (C, th, W)
    # TODO(synk): ship labels as int8 (tile_h multiple of 32) to shrink the
    # label DMA / VMEM 4x for production-size label maps.

    # ---- per-pixel CE / focal pieces -----------------------------------------
    up_y = jnp.sum(up * onehot, axis=0, keepdims=True)                  # true-class logit
    nll = jnp.log(se) + m - up_y                                        # -log softmax[y]
    pt = jnp.exp(-nll)                                                  # exact p_y (EUP)
    one_m_pt2 = (1.0 - pt) * (1.0 - pt)                                 # gamma = 2
    oh_nll = onehot * nll

    # ---- per-class partial sums (classes on sublanes, stats on lanes) --------
    # TODO(synk): fold these masked sums onto the MXU as
    #   onehot (C, th*W) @ [pt, 1, nll, foc] (th*W, 4)
    # once a relayout-free (th, W) -> (th*W,) flattening is confirmed in the
    # MLIR; kept as VPU multiplies + XLU reductions for lowering safety.
    def _cls_sum(v):                                                    # (C,th,W)->(C,1)
        return jnp.sum(jnp.sum(v, axis=2, keepdims=True), axis=1)

    stats = jnp.concatenate(
        [_cls_sum(onehot * pt),          # intersection: sum of p_y where label==c
         _cls_sum(probs),                # sum of predicted probs per class
         _cls_sum(onehot),               # pixel count per class
         _cls_sum(oh_nll),               # sum onehot * (-log p_y)
         _cls_sum(oh_nll * one_m_pt2)],  # sum onehot * (1-p_y)^2 * (-log p_y)
        axis=1)                                                         # (C, 5)

    # Output block index is constant along the t axis -> VMEM-resident accumulator.
    out_ref[0, 0, 0:C, 0:_N_STATS] += stats


# --------------------------------------------------------------------------- #
# Wrapper
# --------------------------------------------------------------------------- #
def combined_loss(inputs, targets, class_weights=None, weights=(0.5, 0.3, 0.2),
                  smooth=1e-6, alpha=0.25, gamma=2.0, tile_h=None, h_parts=1):
    """Forward pass of CombinedLoss(weights=[0.5, 0.3, 0.2]) from train.py."""
    if isinstance(inputs, tuple):
        inputs = inputs[0]
    y_pred = inputs.astype(jnp.float32)            # (N, C, h, w) logits
    y_true = targets.astype(jnp.int32)             # (N, H, W) labels
    N, C, h, w = y_pred.shape
    _, H, W = y_true.shape
    cw = jnp.asarray(CLASS_WEIGHTS if class_weights is None else class_weights,
                     dtype=jnp.float32)
    assert cw.shape == (C,), "class_weights must have one entry per channel"
    assert gamma == 2.0, "kernel hard-codes the FocalLoss default gamma=2"
    assert C <= 8, "stats tile packs classes on sublanes (<= 8 classes)"
    assert H % h_parts == 0

    # separable bilinear-interpolation matrices (align_corners=False)
    wy = _interp_matrix(H, h)                               # (H, h)  f32
    wxt = _interp_matrix(W, w).T                            # (w, W)
    # block-diagonal column interp: one matmul batches all channels with K = C*w
    wxt_bd = jnp.kron(jnp.eye(C, dtype=jnp.float32), wxt)   # (C*w, C*W)

    # Layout plumbing outside the kernel: channels concatenated along lanes so
    # the kernel's first matmul batches all channels in one MXU op.
    xt = jnp.transpose(y_pred, (0, 2, 1, 3)).reshape(N, h, C * w)

    # bf16 MXU operands (f32 accumulation in-kernel).
    xt_b = xt.astype(jnp.bfloat16)
    wxt_bd_b = wxt_bd.astype(jnp.bfloat16)

    cap = _vmem_capacity_bytes()
    th = tile_h if tile_h is not None else _pick_tile_h(H, h, C, w, W, h_parts, cap // 2)
    assert H % (th * h_parts) == 0, "tile_h * h_parts must divide H"
    assert th % 8 == 0 or th == H, "tile_h must be a multiple of 8 (or the full H)"
    n_ht = H // (th * h_parts)
    vmem_limit = int(min(0.9 * cap, max(2 * _vmem_bytes_estimate(th, h, C, w, W),
                                        32 << 20)))

    cpad = ((C + 7) // 8) * 8

    stats = pl.pallas_call(
        functools.partial(_combined_stats_kernel, n_classes=C),
        out_shape=jax.ShapeDtypeStruct((N, h_parts, cpad, 128), jnp.float32),
        grid=(N, h_parts, n_ht),
        in_specs=[
            pl.BlockSpec((1, h, C * w), lambda n, p, t: (n, 0, 0)),
            pl.BlockSpec((th, h), lambda n, p, t: (p * n_ht + t, 0)),
            pl.BlockSpec((C * w, C * W), lambda n, p, t: (0, 0)),
            pl.BlockSpec((1, th, W), lambda n, p, t: (n, p * n_ht + t, 0)),
        ],
        out_specs=pl.BlockSpec((1, 1, cpad, 128), lambda n, p, t: (n, p, 0, 0)),
        compiler_params=pltpu.CompilerParams(
            dimension_semantics=("parallel", "parallel", "arbitrary"),
            vmem_limit_bytes=vmem_limit),
    )(xt_b, wy, wxt_bd_b, y_true)

    # Sum the per-partition partials, then the cheap epilogue in plain JAX.
    stats = jnp.sum(stats, axis=1)                 # (N, cpad, 128)
    inter = stats[:, :C, 0]        # sum_pix probs_y * onehot
    sum_p = stats[:, :C, 1]        # sum_pix probs
    sum_oh = stats[:, :C, 2]       # sum_pix onehot
    t_nll = stats[:, :C, 3]        # sum_pix onehot * (-log p_y)
    t_foc = stats[:, :C, 4]        # sum_pix onehot * (1 - p_y)^2 * (-log p_y)

    n_pix = N * H * W
    ce_term = jnp.sum(t_nll * cw[None, :]) / n_pix                    # CE(weight,'none').mean()
    dice = (2.0 * inter + smooth) / (sum_oh + sum_p + smooth)
    dice_term = 1.0 - jnp.mean(dice)                                  # DiceLoss
    focal_term = alpha * jnp.sum(t_foc) / n_pix                       # FocalLoss (gamma=2)
    return weights[0] * ce_term + weights[1] * dice_term + weights[2] * focal_term


# --------------------------------------------------------------------------- #
# Pure-JAX reference (matmul_dtype=bf16 mirrors the kernel's rounding points)
# --------------------------------------------------------------------------- #
def _combined_loss_ref(y_pred, y_true, class_weights=None, weights=(0.5, 0.3, 0.2),
                       smooth=1e-6, alpha=0.25, gamma=2.0, matmul_dtype=jnp.float32):
    N, C, h, w = y_pred.shape
    _, H, W = y_true.shape
    cw = jnp.asarray(CLASS_WEIGHTS if class_weights is None else class_weights,
                     dtype=jnp.float32)
    wy = _interp_matrix(H, h).astype(matmul_dtype)
    wx = _interp_matrix(W, w).astype(matmul_dtype)
    u1 = jnp.einsum("Hh,nchw->ncHw", wy, y_pred.astype(matmul_dtype),
                    preferred_element_type=jnp.float32)
    up = jnp.einsum("ncHw,Ww->ncHW", u1.astype(matmul_dtype), wx,
                    preferred_element_type=jnp.float32)
    logp = jax.nn.log_softmax(up, axis=1)
    p = jnp.exp(logp)
    onehot = jax.nn.one_hot(y_true, C, dtype=jnp.float32).transpose(0, 3, 1, 2)
    nll = -jnp.sum(onehot * logp, axis=1)                             # (N, H, W)
    ce_term = jnp.mean(cw[y_true] * nll)
    inter = jnp.sum(p * onehot, axis=(2, 3))
    union = jnp.sum(onehot, axis=(2, 3)) + jnp.sum(p, axis=(2, 3))
    dice_term = 1.0 - jnp.mean((2.0 * inter + smooth) / (union + smooth))
    pt = jnp.exp(-nll)
    focal_term = jnp.mean(alpha * (1.0 - pt) ** gamma * nll)
    return weights[0] * ce_term + weights[1] * dice_term + weights[2] * focal_term


if __name__ == "__main__":
    key = jax.random.PRNGKey(0)
    k1, k2 = jax.random.split(key)

    # C = 7 matches class_weights in the reference train.py; 32x32 logits are
    # upsampled to the 128x128 label resolution (lane-dense minor dim).
    N, C, h, w = 2, 7, 32, 32
    H, W = 128, 128

    y_pred = jax.random.normal(k1, (N, C, h, w), dtype=jnp.float32)
    y_true = jax.random.randint(k2, (N, H, W), 0, C, dtype=jnp.int32)

    # default: auto tile_h (full image), single H partition
    loss = jax.block_until_ready(combined_loss(y_pred, y_true))
    # exercise the accumulation axis and the megacore H-partition path
    loss_split = jax.block_until_ready(
        combined_loss(y_pred, y_true, tile_h=16, h_parts=2))

    ref_bf16 = jax.block_until_ready(
        _combined_loss_ref(y_pred, y_true, matmul_dtype=jnp.bfloat16))
    ref_f32 = jax.block_until_ready(
        _combined_loss_ref(y_pred, y_true, matmul_dtype=jnp.float32))

    # Tight check vs a reference with the same bf16 matmul rounding points;
    # loose check vs the exact f32 PyTorch-equivalent reference (bf16 upsample
    # is the only divergence from it).
    assert jnp.allclose(loss, ref_bf16, atol=2e-3, rtol=2e-3), (loss, ref_bf16)
    assert jnp.allclose(loss_split, ref_bf16, atol=2e-3, rtol=2e-3), (loss_split, ref_bf16)
    assert jnp.allclose(loss, ref_f32, atol=6e-2, rtol=6e-2), (loss, ref_f32)
    print("KERNEL_OK")
</pallas_src>

<mosaic_0001>
module attributes {stable_mosaic.version = 11 : i64} {
  func.func @_combined_stats_kernel(%arg0: i32, %arg1: i32, %arg2: i32, %arg3: memref<1x32x224xbf16, #tpu.memory_space<vmem>>, %arg4: memref<128x32xf32, #tpu.memory_space<vmem>>, %arg5: memref<224x896xbf16, #tpu.memory_space<vmem>>, %arg6: memref<1x128x128xi32, #tpu.memory_space<vmem>>, %arg7: memref<1x1x8x128xf32, #tpu.memory_space<vmem>>) attributes {dimension_semantics = [#tpu.dimension_semantics<parallel>, #tpu.dimension_semantics<parallel>, #tpu.dimension_semantics<arbitrary>], iteration_bounds = array<i64: 2, 1, 1>, scalar_prefetch = 0 : i64, scratch_operands = 0 : i64, tpu.core_type = #tpu.core_type<tc>, window_params = [{transform_indices = @transform_0, window_bounds = array<i64: 1, 32, 224>}, {transform_indices = @transform_1, window_bounds = array<i64: 128, 32>}, {pipeline_mode = #tpu.pipeline_mode<synchronous>, transform_indices = @transform_2, window_bounds = array<i64: 224, 896>}, {transform_indices = @transform_3, window_bounds = array<i64: 1, 128, 128>}, {transform_indices = @transform_4, window_bounds = array<i64: 1, 1, 8, 128>}]} {
    %c0_i32 = arith.constant 0 : i32
    %0 = arith.cmpi eq, %arg2, %c0_i32 : i32
    %1 = arith.extui %0 : i1 to i32
    %c0_i32_0 = arith.constant 0 : i32
    %2 = arith.cmpi ne, %1, %c0_i32_0 : i32
    scf.if %2 {
      %cst_35 = arith.constant 0.000000e+00 : f32
      %83 = vector.broadcast %cst_35 : f32 to vector<1x1x8x128xf32>
      %c0_36 = arith.constant 0 : index
      %c0_37 = arith.constant 0 : index
      %c0_38 = arith.constant 0 : index
      %c0_39 = arith.constant 0 : index
      %84 = vector.load %arg7[%c0_36, %c0_37, %c0_38, %c0_39] : memref<1x1x8x128xf32, #tpu.memory_space<vmem>>, vector<1x1x8x128xf32>
      tpu.vector_store %arg7[%c0_36, %c0_37, %c0_38, %c0_39], %83 {strides = array<i32>} : memref<1x1x8x128xf32, #tpu.memory_space<vmem>>, vector<1x1x8x128xf32>,
    } else {
    }
    %c0 = arith.constant 0 : index
    %c0_1 = arith.constant 0 : index
    %3 = vector.load %arg4[%c0, %c0_1] : memref<128x32xf32, #tpu.memory_space<vmem>>, vector<128x32xf32>
    %4 = arith.truncf %3 : vector<128x32xf32> to vector<128x32xbf16>
    %c0_2 = arith.constant 0 : index
    %c0_3 = arith.constant 0 : index
    %c0_4 = arith.constant 0 : index
    %5 = vector.load %arg3[%c0_2, %c0_3, %c0_4] : memref<1x32x224xbf16, #tpu.memory_space<vmem>>, vector<1x32x224xbf16>
    %6 = vector.shape_cast %5 : vector<1x32x224xbf16> to vector<32x224xbf16>
    %cst = arith.constant dense<0.000000e+00> : vector<128x224xf32>
    %7 = tpu.matmul %4, %6, %cst {dimension_numbers = #tpu.dot_dimension_numbers<[1], [0], [0], [1], [0, 0, 1, 1], [], []>} : vector<128x32xbf16>, vector<32x224xbf16>, vector<128x224xf32> -> vector<128x224xf32>
    %8 = arith.truncf %7 : vector<128x224xf32> to vector<128x224xbf16>
    %c0_5 = arith.constant 0 : index
    %c0_6 = arith.constant 0 : index
    %9 = vector.load %arg5[%c0_5, %c0_6] : memref<224x896xbf16, #tpu.memory_space<vmem>>, vector<224x896xbf16>
    %cst_7 = arith.constant dense<0.000000e+00> : vector<128x896xf32>
    %10 = tpu.matmul %8, %9, %cst_7 {dimension_numbers = #tpu.dot_dimension_numbers<[1], [0], [0], [1], [0, 0, 1, 1], [], []>} : vector<128x224xbf16>, vector<224x896xbf16>, vector<128x896xf32> -> vector<128x896xf32>
    %11 = vector.extract_strided_slice %10 {offsets = [0, 0], sizes = [128, 128], strides = [1, 1]} : vector<128x896xf32> to vector<128x128xf32>
    %12 = vector.extract_strided_slice %10 {offsets = [0, 128], sizes = [128, 128], strides = [1, 1]} : vector<128x896xf32> to vector<128x128xf32>
    %13 = vector.extract_strided_slice %10 {offsets = [0, 256], sizes = [128, 128], strides = [1, 1]} : vector<128x896xf32> to vector<128x128xf32>
    %14 = vector.extract_strided_slice %10 {offsets = [0, 384], sizes = [128, 128], strides = [1, 1]} : vector<128x896xf32> to vector<128x128xf32>
    %15 = vector.extract_strided_slice %10 {offsets = [0, 512], sizes = [128, 128], strides = [1, 1]} : vector<128x896xf32> to vector<128x128xf32>
    %16 = vector.extract_strided_slice %10 {offsets = [0, 640], sizes = [128, 128], strides = [1, 1]} : vector<128x896xf32> to vector<128x128xf32>
    %17 = vector.extract_strided_slice %10 {offsets = [0, 768], sizes = [128, 128], strides = [1, 1]} : vector<128x896xf32> to vector<128x128xf32>
    %18 = vector.shape_cast %11 : vector<128x128xf32> to vector<1x128x128xf32>
    %19 = vector.shape_cast %12 : vector<128x128xf32> to vector<1x128x128xf32>
    %20 = vector.shape_cast %13 : vector<128x128xf32> to vector<1x128x128xf32>
    %21 = vector.shape_cast %14 : vector<128x128xf32> to vector<1x128x128xf32>
    %22 = vector.shape_cast %15 : vector<128x128xf32> to vector<1x128x128xf32>
    %23 = vector.shape_cast %16 : vector<128x128xf32> to vector<1x128x128xf32>
    %24 = vector.shape_cast %17 : vector<128x128xf32> to vector<1x128x128xf32>
    %25 = tpu.concatenate %18, %19, %20, %21, %22, %23, %24 in 0 : vector<1x128x128xf32>, vector<1x128x128xf32>, vector<1x128x128xf32>, vector<1x128x128xf32>, vector<1x128x128xf32>, vector<1x128x128xf32>, vector<1x128x128xf32> -> vector<7x128x128xf32>
    %cst_8 = arith.constant dense<0xFF800000> : vector<128x128xf32>
    %26 = vector.multi_reduction <maximumf>, %25, %cst_8 [0] : vector<7x128x128xf32> to vector<128x128xf32>
    %27 = vector.shape_cast %26 : vector<128x128xf32> to vector<1x128x128xf32>
    %28 = vector.broadcast %27 : vector<1x128x128xf32> to vector<7x128x128xf32>
    %29 = arith.subf %25, %28 : vector<7x128x128xf32>
    %30 = math.exp %29 : vector<7x128x128xf32>
    %cst_9 = arith.constant dense<0.000000e+00> : vector<128x128xf32>
    %31 = vector.multi_reduction <add>, %30, %cst_9 [0] : vector<7x128x128xf32> to vector<128x128xf32>
    %32 = vector.shape_cast %31 : vector<128x128xf32> to vector<1x128x128xf32>
    %33 = vector.broadcast %32 : vector<1x128x128xf32> to vector<7x128x128xf32>
    %34 = arith.divf %30, %33 : vector<7x128x128xf32>
    %c0_10 = arith.constant 0 : index
    %c0_11 = arith.constant 0 : index
    %c0_12 = arith.constant 0 : index
    %35 = vector.load %arg6[%c0_10, %c0_11, %c0_12] : memref<1x128x128xi32, #tpu.memory_space<vmem>>, vector<1x128x128xi32>
    %36 = tpu.iota {dimensions = array<i32: 0>} : vector<7x128x128xi32>
    %37 = vector.broadcast %35 : vector<1x128x128xi32> to vector<7x128x128xi32>
    %38 = arith.cmpi eq, %37, %36 : vector<7x128x128xi32>
    %39 = arith.extui %38 : vector<7x128x128xi1> to vector<7x128x128xi32>
    %40 = arith.sitofp %39 : vector<7x128x128xi32> to vector<7x128x128xf32>
    %41 = arith.mulf %25, %40 : vector<7x128x128xf32>
    %cst_13 = arith.constant dense<0.000000e+00> : vector<128x128xf32>
    %42 = vector.multi_reduction <add>, %41, %cst_13 [0] : vector<7x128x128xf32> to vector<128x128xf32>
    %43 = vector.shape_cast %42 : vector<128x128xf32> to vector<1x128x128xf32>
    %44 = math.log %32 : vector<1x128x128xf32>
    %45 = arith.addf %44, %27 : vector<1x128x128xf32>
    %46 = arith.subf %45, %43 : vector<1x128x128xf32>
    %cst_14 = arith.constant 0.000000e+00 : f32
    %47 = vector.broadcast %cst_14 : f32 to vector<1x128x128xf32>
    %48 = arith.subf %47, %46 : vector<1x128x128xf32>
    %49 = math.exp %48 : vector<1x128x128xf32>
    %cst_15 = arith.constant 1.000000e+00 : f32
    %50 = vector.broadcast %cst_15 : f32 to vector<1x128x128xf32>
    %51 = arith.subf %50, %49 : vector<1x128x128xf32>
    %cst_16 = arith.constant 1.000000e+00 : f32
    %52 = vector.broadcast %cst_16 : f32 to vector<1x128x128xf32>
    %53 = arith.subf %52, %49 : vector<1x128x128xf32>
    %54 = arith.mulf %51, %53 : vector<1x128x128xf32>
    %55 = vector.broadcast %46 : vector<1x128x128xf32> to vector<7x128x128xf32>
    %56 = arith.mulf %40, %55 : vector<7x128x128xf32>
    %57 = vector.broadcast %49 : vector<1x128x128xf32> to vector<7x128x128xf32>
    %58 = arith.mulf %40, %57 : vector<7x128x128xf32>
    %cst_17 = arith.constant dense<0.000000e+00> : vector<7x128xf32>
    %59 = vector.multi_reduction <add>, %58, %cst_17 [2] : vector<7x128x128xf32> to vector<7x128xf32>
    %60 = vector.shape_cast %59 : vector<7x128xf32> to vector<7x128x1xf32>
    %cst_18 = arith.constant dense<0.000000e+00> : vector<7x1xf32>
    %61 = vector.multi_reduction <add>, %60, %cst_18 [1] : vector<7x128x1xf32> to vector<7x1xf32>
    %cst_19 = arith.constant dense<0.000000e+00> : vector<7x128xf32>
    %62 = vector.multi_reduction <add>, %34, %cst_19 [2] : vector<7x128x128xf32> to vector<7x128xf32>
    %63 = vector.shape_cast %62 : vector<7x128xf32> to vector<7x128x1xf32>
    %cst_20 = arith.constant dense<0.000000e+00> : vector<7x1xf32>
    %64 = vector.multi_reduction <add>, %63, %cst_20 [1] : vector<7x128x1xf32> to vector<7x1xf32>
    %cst_21 = arith.constant dense<0.000000e+00> : vector<7x128xf32>
    %65 = vector.multi_reduction <add>, %40, %cst_21 [2] : vector<7x128x128xf32> to vector<7x128xf32>
    %66 = vector.shape_cast %65 : vector<7x128xf32> to vector<7x128x1xf32>
    %cst_22 = arith.constant dense<0.000000e+00> : vector<7x1xf32>
    %67 = vector.multi_reduction <add>, %66, %cst_22 [1] : vector<7x128x1xf32> to vector<7x1xf32>
    %cst_23 = arith.constant dense<0.000000e+00> : vector<7x128xf32>
    %68 = vector.multi_reduction <add>, %56, %cst_23 [2] : vector<7x128x128xf32> to vector<7x128xf32>
    %69 = vector.shape_cast %68 : vector<7x128xf32> to vector<7x128x1xf32>
    %cst_24 = arith.constant dense<0.000000e+00> : vector<7x1xf32>
    %70 = vector.multi_reduction <add>, %69, %cst_24 [1] : vector<7x128x1xf32> to vector<7x1xf32>
    %71 = vector.broadcast %54 : vector<1x128x128xf32> to vector<7x128x128xf32>
    %72 = arith.mulf %56, %71 : vector<7x128x128xf32>
    %cst_25 = arith.constant dense<0.000000e+00> : vector<7x128xf32>
    %73 = vector.multi_reduction <add>, %72, %cst_25 [2] : vector<7x128x128xf32> to vector<7x128xf32>
    %74 = vector.shape_cast %73 : vector<7x128xf32> to vector<7x128x1xf32>
    %cst_26 = arith.constant dense<0.000000e+00> : vector<7x1xf32>
    %75 = vector.multi_reduction <add>, %74, %cst_26 [1] : vector<7x128x1xf32> to vector<7x1xf32>
    %76 = tpu.concatenate %61, %64, %67, %70, %75 in 1 : vector<7x1xf32>, vector<7x1xf32>, vector<7x1xf32>, vector<7x1xf32>, vector<7x1xf32> -> vector<7x5xf32>
    %c0_27 = arith.constant 0 : index
    %c0_28 = arith.constant 0 : index
    %c0_29 = arith.constant 0 : index
    %c0_30 = arith.constant 0 : index
    %77 = vector.load %arg7[%c0_27, %c0_28, %c0_29, %c0_30] : memref<1x1x8x128xf32, #tpu.memory_space<vmem>>, vector<1x1x7x5xf32>
    %78 = vector.shape_cast %77 : vector<1x1x7x5xf32> to vector<7x5xf32>
    %79 = arith.addf %78, %76 : vector<7x5xf32>
    %c0_31 = arith.constant 0 : index
    %c0_32 = arith.constant 0 : index
    %c0_33 = arith.constant 0 : index
    %c0_34 = arith.constant 0 : index
    %80 = vector.load %arg7[%c0_31, %c0_32, %c0_33, %c0_34] : memref<1x1x8x128xf32, #tpu.memory_space<vmem>>, vector<1x1x7x5xf32>
    %81 = vector.shape_cast %80 : vector<1x1x7x5xf32> to vector<7x5xf32>
    %82 = vector.shape_cast %79 : vector<7x5xf32> to vector<1x1x7x5xf32>
    tpu.vector_store %arg7[%c0_31, %c0_32, %c0_33, %c0_34], %82 {strides = array<i32>} : memref<1x1x8x128xf32, #tpu.memory_space<vmem>>, vector<1x1x7x5xf32>,
    return
  }
  func.func @transform_0(%arg0: i32, %arg1: i32, %arg2: i32) -> (i32, i32, i32) {
    %c0_i32 = arith.constant 0 : i32
    %c0_i32_0 = arith.constant 0 : i32
    %c0_i32_1 = arith.constant 0 : i32
    return %arg0, %c0_i32, %c0_i32_0 : i32, i32, i32
  }
  func.func @transform_1(%arg0: i32, %arg1: i32, %arg2: i32) -> (i32, i32) {
    %c1_i32 = arith.constant 1 : i32
    %0 = arith.muli %arg1, %c1_i32 : i32
    %1 = arith.addi %0, %arg2 : i32
    %c0_i32 = arith.constant 0 : i32
    %c0_i32_0 = arith.constant 0 : i32
    return %1, %c0_i32 : i32, i32
  }
  func.func @transform_2(%arg0: i32, %arg1: i32, %arg2: i32) -> (i32, i32) {
    %c0_i32 = arith.constant 0 : i32
    %c0_i32_0 = arith.constant 0 : i32
    %c0_i32_1 = arith.constant 0 : i32
    return %c0_i32, %c0_i32_0 : i32, i32
  }
  func.func @transform_3(%arg0: i32, %arg1: i32, %arg2: i32) -> (i32, i32, i32) {
    %c1_i32 = arith.constant 1 : i32
    %0 = arith.muli %arg1, %c1_i32 : i32
    %1 = arith.addi %0, %arg2 : i32
    %c0_i32 = arith.constant 0 : i32
    %c0_i32_0 = arith.constant 0 : i32
    return %arg0, %1, %c0_i32 : i32, i32, i32
  }
  func.func @transform_4(%arg0: i32, %arg1: i32, %arg2: i32) -> (i32, i32, i32, i32) {
    %c0_i32 = arith.constant 0 : i32
    %c0_i32_0 = arith.constant 0 : i32
    %c0_i32_1 = arith.constant 0 : i32
    return %arg0, %arg1, %c0_i32, %c0_i32_0 : i32, i32, i32, i32
  }
}

</mosaic_0001>

<llo_original>
// kernel: tpu_custom_call.1
$region0: #{tpu_custom_call.1}
  #allocation0 [shape = 'u32[]', space=smem, size = 0x4, offset = 0x4, fixed_abs, tag = 'smem constant byte address 0x4 - core index']
  #allocation1 [shape = 'u32[144,128]{1,0:T(1,128)}', space=vmem, size = 0x12000, scoped, tag = 'internal scratch']
  %s0 = inlined_call_operand.vmem [shape: bf16[2,32,224], index: 0, kind: input, shape index: {}]
  %s1 = inlined_call_operand.vmem [shape: f32[128,32], index: 1, kind: input, shape index: {}]
  %s2 = inlined_call_operand.hbm [shape: bf16[224,896], index: 2, kind: input, shape index: {}]
  %s3 = inlined_call_operand.hbm [shape: s32[2,128,128], index: 3, kind: input, shape index: {}]
  %s4 = inlined_call_operand.hbm [shape: f32[2,1,8,128], index: 4, kind: output, shape index: {}]
  %s5 = sld [smem:[#allocation0]]
  $region61: #{tpu_custom_call.1} parent=0
    _
  %s7 = ssub.s32 1, %s5
  %s8 = scalar_select 0, %s7, %s5
  $region1: #{tpu_custom_call.1} parent=0
    #allocation2 [shape = 'u8[401408]{0}', space=vmem, size = 0x62000, scoped, tag = 'input window, operand 2, single buffered']
    #allocation3 [shape = 's32[2]{0}', space=sflag, size = 0x8, scoped, tag = 'scoped memory for tpu_custom_call.1']
    #allocation4 [shape = 's32[2]{0}', space=sflag, size = 0x8, scoped, tag = 'scoped memory for tpu_custom_call.1']
    #allocation5 [shape = 'u8[131072]{0}', space=vmem, size = 0x20000, scoped, tag = 'input window, operand 3']
    #allocation6 [shape = 's32[2]{0}', space=sflag, size = 0x8, scoped, tag = 'scoped memory for tpu_custom_call.1']
    #allocation7 [shape = 'u8[8192]{0}', space=vmem, size = 0x2000, scoped, tag = 'output window, operand 0']
    %9 = vsyncpa [#allocation3], 0
    %10 = vsyncpa [#allocation6], 0
    %s11 = scalar_lea.sflag [#allocation6], 1
    %12 = vsyncpa %s11, 0
    %13 = vsyncpa [#allocation4], 0
    %s14 = scalar_lea.sflag [#allocation4], 1
    %15 = vsyncpa %s14, 0
    loop: start=0, step=1, limit=4
    $region2: #{tpu_custom_call.1} parent=1 // loop_pre_header
      _
    $region3: #{tpu_custom_call.1} parent=1 // loop_header
      %s17 = sphi 0, %s21
      %p18 = scmp.ge.s32.totalorder %s17, 4
      %s24 = sphi 0, %s43
      %s25 = sphi 0, %s39
      %s26 = sphi 0, %s35
      %s27 = sphi 0, %s24
      %s28 = sphi 0, %s25
      %s29 = sphi 0, %s26
      %s30 = sphi 0, %s27
      %s31 = sphi 0, %s28
      %s32 = sphi 0, %s29
      %s46 = sphi 0, %s48
      %s49 = sphi 0, %s46
      %s50 = sphi 0, %s49
      %s66 = sphi 0, %s50
      %s74 = sphi 0, %s76
      %s77 = sphi 0, %s74
      %s78 = sphi 0, %s77
      %s94 = sphi 0, %s78
      %s98 = sphi 0, %s98
      %s100 = sphi 0, %s98
      %s101 = sphi 0, %s100
      %s115 = sphi 0, %s101
      %s125 = sphi 0, %s127
      %s128 = sphi 0, %s125
      %s129 = sphi 0, %s128
      %s145 = sphi 0, %s129
      %s153 = sphi 0, %s155
      %s156 = sphi 0, %s153
      %s157 = sphi 0, %s156
      %s173 = sphi 0, %s157
    $region4: #{tpu_custom_call.1} parent=1 // loop_header_branch
      %20 = sbr.rel (%p18) target = $region8
    $region5: #{tpu_custom_call.1} parent=1 // loop_body
      %s22 = ssub.s32 %s17, 1
      %s23 = ssub.s32 %s17, 2
      %s33 = sadd.s32 1, %s26
      %p34 = scmp.ge.s32.totalorder %s33, 1
      %s35 = scalar_select %p34, 0, %s33
      %s36 = sadd.s32 1, %s25
      %s37 = scalar_select %p34, %s36, %s25
      %p38 = scmp.ge.s32.totalorder %s37, 1
      %s39 = scalar_select %p38, 0, %s37
      %s40 = sadd.s32 1, %s24
      %s41 = scalar_select %p38, %s40, %s24
      %p42 = scmp.ge.s32.totalorder %s41, 2
      %s43 = scalar_select %p42, 0, %s41
      %s44 = ssub.s32 %s24, %s43
      %p45 = scmp.eq.s32.totalorder %s44, 0
      %s47 = sadd.s32 %s46, 1
      %s48 = scalar_select %p45, %s46, %s47
      %p51 = pneg %p45
      %p52 = scmp.eq.s32.totalorder %s17, 1
      %p53 = por %p51, %p52
      %p54 = scmp.ne.s32.totalorder %s46, %s49
      %p55 = scmp.eq.s32.totalorder %s17, 0
      %p56 = por %p54, %p55
      %p57 = scmp.ne.s32.totalorder %s46, %s49
      %p58 = scmp.eq.s32.totalorder %s22, 1
      %p59 = por %p57, %p58
      %p60 = scmp.ne.s32.totalorder %s49, %s50
      %p61 = scmp.eq.s32.totalorder %s22, 0
      %p62 = por %p60, %p61
      %p63 = scmp.ne.s32.totalorder %s49, %s50
      %p64 = scmp.eq.s32.totalorder %s23, 1
      %p65 = por %p63, %p64
      %p67 = scmp.ne.s32.totalorder %s50, %s66
      %p68 = scmp.eq.s32.totalorder %s23, 0
      %p69 = por %p67, %p68
      %s70 = sadd.s32 %s25, %s26
      %s71 = sadd.s32 %s39, %s35
      %s72 = ssub.s32 %s70, %s71
      %p73 = scmp.eq.s32.totalorder %s72, 0
      %s75 = sadd.s32 %s74, 1
      %s76 = scalar_select %p73, %s74, %s75
      %p79 = pneg %p73
      %p80 = scmp.eq.s32.totalorder %s17, 1
      %p81 = por %p79, %p80
      %p82 = scmp.ne.s32.totalorder %s74, %s77
      %p83 = scmp.eq.s32.totalorder %s17, 0
      %p84 = por %p82, %p83
      %p85 = scmp.ne.s32.totalorder %s74, %s77
      %p86 = scmp.eq.s32.totalorder %s22, 1
      %p87 = por %p85, %p86
      %p88 = scmp.ne.s32.totalorder %s77, %s78
      %p89 = scmp.eq.s32.totalorder %s22, 0
      %p90 = por %p88, %p89
      %p91 = scmp.ne.s32.totalorder %s77, %s78
      %p92 = scmp.eq.s32.totalorder %s23, 1
      %p93 = por %p91, %p92
      %p95 = scmp.ne.s32.totalorder %s78, %s94
      %p96 = scmp.eq.s32.totalorder %s23, 0
      %p97 = por %p95, %p96
      %s99 = sadd.s32 %s98, 1
      %p102 = scmp.eq.s32.totalorder %s17, 1
      %p103 = scmp.ne.s32.totalorder %s98, %s100
      %p104 = scmp.eq.s32.totalorder %s17, 0
      %p105 = por %p103, %p104
      %p106 = scmp.ne.s32.totalorder %s98, %s100
      %p107 = scmp.eq.s32.totalorder %s22, 1
      %p108 = por %p106, %p107
      %p109 = scmp.ne.s32.totalorder %s100, %s101
      %p110 = scmp.eq.s32.totalorder %s22, 0
      %p111 = por %p109, %p110
      %p112 = scmp.ne.s32.totalorder %s100, %s101
      %p113 = scmp.eq.s32.totalorder %s23, 1
      %p114 = por %p112, %p113
      %p116 = scmp.ne.s32.totalorder %s101, %s115
      %p117 = scmp.eq.s32.totalorder %s23, 0
      %p118 = por %p116, %p117
      %s119 = sadd.s32 %s25, %s26
      %s120 = sadd.s32 %s39, %s35
      %s121 = ssub.s32 %s24, %s43
      %s122 = ssub.s32 %s119, %s120
      %s123 = sor.u32 %s121, %s122
      %p124 = scmp.eq.s32.totalorder %s123, 0
      %s126 = sadd.s32 %s125, 1
      %s127 = scalar_select %p124, %s125, %s126
      %p130 = pneg %p124
      %p131 = scmp.eq.s32.totalorder %s17, 1
      %p132 = por %p130, %p131
      %p133 = scmp.ne.s32.totalorder %s125, %s128
      %p134 = scmp.eq.s32.totalorder %s17, 0
      %p135 = por %p133, %p134
      %p136 = scmp.ne.s32.totalorder %s125, %s128
      %p137 = scmp.eq.s32.totalorder %s22, 1
      %p138 = por %p136, %p137
      %p139 = scmp.ne.s32.totalorder %s128, %s129
      %p140 = scmp.eq.s32.totalorder %s22, 0
      %p141 = por %p139, %p140
      %p142 = scmp.ne.s32.totalorder %s128, %s129
      %p143 = scmp.eq.s32.totalorder %s23, 1
      %p144 = por %p142, %p143
      %p146 = scmp.ne.s32.totalorder %s129, %s145
      %p147 = scmp.eq.s32.totalorder %s23, 0
      %p148 = por %p146, %p147
      %s149 = ssub.s32 %s24, %s43
      %s150 = ssub.s32 %s25, %s39
      %s151 = sor.u32 %s149, %s150
      %p152 = scmp.eq.s32.totalorder %s151, 0
      %s154 = sadd.s32 %s153, 1
      %s155 = scalar_select %p152, %s153, %s154
      %p158 = pneg %p152
      %p159 = scmp.eq.s32.totalorder %s17, 1
      %p160 = por %p158, %p159
      %p161 = scmp.ne.s32.totalorder %s153, %s156
      %p162 = scmp.eq.s32.totalorder %s17, 0
      %p163 = por %p161, %p162
      %p164 = scmp.ne.s32.totalorder %s153, %s156
      %p165 = scmp.eq.s32.totalorder %s22, 1
      %p166 = por %p164, %p165
      %p167 = scmp.ne.s32.totalorder %s156, %s157
      %p168 = scmp.eq.s32.totalorder %s22, 0
      %p169 = por %p167, %p168
      %p170 = scmp.ne.s32.totalorder %s156, %s157
      %p171 = scmp.eq.s32.totalorder %s23, 1
      %p172 = por %p170, %p171
      %p174 = scmp.ne.s32.totalorder %s157, %s173
      %p175 = scmp.eq.s32.totalorder %s23, 0
      %p176 = por %p174, %p175
      %p177 = scmp.le.s32.totalorder 1, %s17
      %p178 = scmp.lt.s32.totalorder %s17, 3
      %p179 = pnand %p177, %p178
      %p180 = pneg %p179
      // Predicated region
      $region9: #{tpu_custom_call.1} parent=5 // pred_check
        _
      $region10: #{tpu_custom_call.1} parent=5 // pred_check_branch
        %182 = sbr.rel (%p179) target = $region12
      $region11: #{tpu_custom_call.1} parent=5 // pred_region
        %s183 = ssub.s32 %s17, 1
        // Predicated region
        $region13: #{tpu_custom_call.1} parent=11 // pred_check
          %p184 = pneg %p90
        $region14: #{tpu_custom_call.1} parent=11 // pred_check_branch
          %186 = sbr.rel (%p184) target = $region16
        $region15: #{tpu_custom_call.1} parent=11 // pred_region
          %s187 = sadd.s32 %s28, %s29
          %s188 = smul.u32 16, %s187
          %p189 = scmp.lt.s32.totalorder %s188, 15
          %s190 = scalar_select %p189, %s188, 15
          %s191 = smul.addr %s190, 8
          %s192 = scalar_lea.vmem %s1, %s191
          %s193 = sadd.s32 %s28, %s29
          %s194 = smul.u32 16, %s193
        $region16: #{tpu_custom_call.1} parent=11 // pred_fallthru
          _
        // Predicated region
        $region17: #{tpu_custom_call.1} parent=11 // pred_check
          %p195 = pneg %p111
        $region18: #{tpu_custom_call.1} parent=11 // pred_check_branch
          %197 = sbr.rel (%p195) target = $region20
        $region19: #{tpu_custom_call.1} parent=11 // pred_region
          %s199 = ssub.s32 12544, 12544
          %200 = vsyncadd [#allocation3], %s199
          %s201 = sshll.u32 [#allocation2], 4
          %s202 = int_to_ptr.vmem [resolvable:$true] %s201
          %207 = dma.hbm_to_vmem [thread:$0]  %s2, 12544, %s202, [#allocation3], 448, 448, 28
        $region20: #{tpu_custom_call.1} parent=11 // pred_fallthru
          _
      $region12: #{tpu_custom_call.1} parent=5 // pred_fallthru
        _
      %p208 = scmp.lt.s32.totalorder %s17, 2
      // Predicated region
      $region21: #{tpu_custom_call.1} parent=5 // pred_check
        %p209 = pneg %p208
      $region22: #{tpu_custom_call.1} parent=5 // pred_check_branch
        %211 = sbr.rel (%p209) target = $region24
      $region23: #{tpu_custom_call.1} parent=5 // pred_region
        // Predicated region
        $region25: #{tpu_custom_call.1} parent=23 // pred_check
          %p212 = pneg %p56
        $region26: #{tpu_custom_call.1} parent=23 // pred_check_branch
          %214 = sbr.rel (%p212) target = $region28
        $region27: #{tpu_custom_call.1} parent=23 // pred_region
          %p215 = scmp.lt.s32.totalorder %s24, 1
          %s216 = scalar_select %p215, %s24, 1
          %s217 = smul.addr %s216, 8
          %s218 = smul.addr %s217, 4
          %s219 = scalar_lea.vmem %s0, %s218
        $region28: #{tpu_custom_call.1} parent=23 // pred_fallthru
          _
        // Predicated region
        $region29: #{tpu_custom_call.1} parent=23 // pred_check
          %p220 = pneg %p135
        $region30: #{tpu_custom_call.1} parent=23 // pred_check_branch
          %222 = sbr.rel (%p220) target = $region32
        $region31: #{tpu_custom_call.1} parent=23 // pred_region
          %s223 = sand.u32 %s125, 1
          %s224 = scalar_lea.sflag [#allocation6], %s223
          %s225 = sand.u32 %s125, 1
          %s226 = smul.addr %s225, 128
          %s227 = scalar_lea.vmem [#allocation5], %s226
          %s228 = sadd.s32 %s25, %s26
          %s229 = smul.u32 16, %s228
          %s231 = ssub.s32 2048, 2048
          %232 = vsyncadd %s224, %s231
          %s233 = smul.addr %s24, 16
          %s234 = sadd.s32 %s229, %s233
          %s235 = smul.addr %s234, 128
          %s236 = scalar_lea.hbm %s3, %s235
          %s237 = sshll.u32 %s227, 4
          %s238 = int_to_ptr.vmem [resolvable:$true] %s237
          %243 = dma.hbm_to_vmem [thread:$0]  %s236, 2048, %s238, %s224, 128, 128, 8
        $region32: #{tpu_custom_call.1} parent=23 // pred_fallthru
          _
      $region24: #{tpu_custom_call.1} parent=5 // pred_fallthru
        _
      %p244 = scmp.le.s32.totalorder 1, %s17
      %p245 = scmp.lt.s32.totalorder %s17, 3
      %p246 = pnand %p244, %p245
      %p247 = pneg %p246
      // Predicated region
      $region33: #{tpu_custom_call.1} parent=5 // pred_check
        _
      $region34: #{tpu_custom_call.1} parent=5 // pred_check_branch
        %249 = sbr.rel (%p246) target = $region36
      $region35: #{tpu_custom_call.1} parent=5 // pred_region
        %s250 = ssub.s32 %s17, 1
        // Predicated region
        $region37: #{tpu_custom_call.1} parent=35 // pred_check
          %p251 = pneg %p111
        $region38: #{tpu_custom_call.1} parent=35 // pred_check_branch
          %253 = sbr.rel (%p251) target = $region40
        $region39: #{tpu_custom_call.1} parent=35 // pred_region
          %254 = dma.done [#allocation3], 12544
        $region40: #{tpu_custom_call.1} parent=35 // pred_fallthru
          _
        %s255 = sand.u32 %s128, 1
        %s256 = scalar_lea.sflag [#allocation6], %s255
        %s257 = sand.u32 %s128, 1
        %s258 = smul.addr %s257, 128
        %s259 = scalar_lea.vmem [#allocation5], %s258
        // Predicated region
        $region41: #{tpu_custom_call.1} parent=35 // pred_check
          %p260 = pneg %p141
        $region42: #{tpu_custom_call.1} parent=35 // pred_check_branch
          %262 = sbr.rel (%p260) target = $region44
        $region43: #{tpu_custom_call.1} parent=35 // pred_region
          %263 = dma.done %s256, 2048
        $region44: #{tpu_custom_call.1} parent=35 // pred_fallthru
          _
        %p264 = scmp.lt.s32.totalorder %s27, 1
        %s265 = scalar_select %p264, %s27, 1
        %s266 = smul.addr %s265, 8
        %s267 = smul.addr %s266, 4
        %s268 = scalar_lea.vmem %s0, %s267
        %p269 = pneg %p62
        %p270 = pneg %p59
        %s271 = sadd.s32 %s28, %s29
        %s272 = smul.u32 16, %s271
        %p273 = scmp.lt.s32.totalorder %s272, 15
        %s274 = scalar_select %p273, %s272, 15
        %s275 = smul.addr %s274, 8
        %s276 = scalar_lea.vmem %s1, %s275
        %p277 = pneg %p90
        %p278 = pneg %p87
        %p279 = pneg %p111
        %p280 = pneg %p108
        %s281 = sand.u32 %s128, 1
        %s282 = scalar_lea.sflag [#allocation6], %s281
        %s283 = sand.u32 %s128, 1
        %s284 = smul.addr %s283, 128
        %s285 = scalar_lea.vmem [#allocation5], %s284
        %p286 = pneg %p141
        %p287 = pneg %p138
        %p288 = pneg %p169
        %p289 = pneg %p166
        %s290 = sand.u32 %s156, 1
        %s291 = scalar_lea.sflag [#allocation4], %s290
        %s292 = sand.u32 %s156, 1
        %s293 = smul.addr %s292, 8
        %s294 = scalar_lea.vmem [#allocation7], %s293
        %p295 = scmp.lt.s32.totalorder %s27, 1
        %s296 = scalar_select %p295, %s27, 1
        %s297 = smul.addr %s296, 8
        %s298 = smul.addr %s297, 4
        %s299 = scalar_lea.vmem %s0, %s298
        %s300 = sadd.s32 %s28, %s29
        %s301 = smul.u32 16, %s300
        %p302 = scmp.lt.s32.totalorder %s301, 15
        %s303 = scalar_select %p302, %s301, 15
        %s304 = smul.addr %s303, 8
        %s305 = scalar_lea.vmem %s1, %s304
        %s306 = sadd.s32 %s28, %s29
        %s307 = smul.u32 16, %s306
        %s308 = sadd.s32 %s28, %s29
        %s309 = smul.u32 16, %s308
        %p311 = scmp.eq.s32.totalorder %s29, 0
        // Predicated region
        $region45: #{tpu_custom_call.1} parent=35 // pred_check
          %p312 = pneg %p311
        $region46: #{tpu_custom_call.1} parent=35 // pred_check_branch
          %314 = sbr.rel (%p312) target = $region48
        $region47: #{tpu_custom_call.1} parent=35 // pred_region
          %315 = vst [vmem:[%s294] sm:$0xff] 0.0
        $region48: #{tpu_custom_call.1} parent=35 // pred_fallthru
          _
        %v316 = vld [vmem:[%s305] sm:$0xff]
        %v317 = vld [vmem:[%s305 + $0x8] sm:$0xff]
        %v318 = vld [vmem:[%s305 + $0x10] sm:$0xff]
        %v319 = vld [vmem:[%s305 + $0x18] sm:$0xff]
        %v320 = vld [vmem:[%s305 + $0x20] sm:$0xff]
        %v321 = vld [vmem:[%s305 + $0x28] sm:$0xff]
        %v322 = vld [vmem:[%s305 + $0x30] sm:$0xff]
        %v323 = vld [vmem:[%s305 + $0x38] sm:$0xff]
        %v324 = vld [vmem:[%s305 + $0x40] sm:$0xff]
        %v325 = vld [vmem:[%s305 + $0x48] sm:$0xff]
        %v326 = vld [vmem:[%s305 + $0x50] sm:$0xff]
        %v327 = vld [vmem:[%s305 + $0x58] sm:$0xff]
        %v328 = vld [vmem:[%s305 + $0x60] sm:$0xff]
        %v329 = vld [vmem:[%s305 + $0x68] sm:$0xff]
        %v330 = vld [vmem:[%s305 + $0x70] sm:$0xff]
        %v331 = vld [vmem:[%s305 + $0x78] sm:$0xff]
        %v332 = vpack.c.bf16 %v317, %v316
        %v333 = vpack.c.bf16 %v319, %v318
        %v334 = vpack.c.bf16 %v321, %v320
        %v335 = vpack.c.bf16 %v323, %v322
        %v336 = vpack.c.bf16 %v325, %v324
        %v337 = vpack.c.bf16 %v327, %v326
        %v338 = vpack.c.bf16 %v329, %v328
        %v339 = vpack.c.bf16 %v331, %v330
        %v340 = vld [vmem:[%s299] sm:$0xff]
        %v341 = vld [vmem:[%s299 + $0x8] sm:$0xff]
        %v342 = vld [vmem:[%s299 + $0x10] sm:$0xff]
        %v343 = vld [vmem:[%s299 + $0x18] sm:$0xff]
        %v348 = vunpack.c.l.b16 %v340
        %v349 = vunpack.c.h.b16 %v340
        %v350 = vunpack.c.l.b16 %v341
        %v351 = vunpack.c.h.b16 %v341
        %v352 = vunpack.c.l.b16 %v342
        %v353 = vunpack.c.h.b16 %v342
        %v354 = vunpack.c.l.b16 %v343
        %v355 = vunpack.c.h.b16 %v343
        %v356 = vpack.c.b16 %v350, %v348
        %v357 = vpack.c.b16 %v351, %v349
        %v358 = vpack.c.b16 %v354, %v352
        %v359 = vpack.c.b16 %v355, %v353
        %vm364 = vcmask 261120
        %v366 = vsel %vm364, %v332, 0
        %v369 = vsel %vm364, %v333, 0
        %v372 = vsel %vm364, %v334, 0
        %v375 = vsel %vm364, %v335, 0
        %v378 = vsel %vm364, %v336, 0
        %v381 = vsel %vm364, %v337, 0
        %v384 = vsel %vm364, %v338, 0
        %v387 = vsel %vm364, %v339, 0
        %389 = vmatprep.subr.bf16.mxu0 %v357
        %390 = vmatpush1.bf16.msra.mxu0 %v356
        %391 = vmatprep.subr.bf16.mxu0 %v359
        %392 = vmatpush1.bf16.msra.mxu0 %v358
        %393 = vmatprep.subr.bf16.mxu0 0
        %394 = vmatpush1.bf16.msra.mxu0 0
        %395 = vmatprep.subr.bf16.mxu0 0
        %396 = vmatpush1.bf16.msra.mxu0 0
        %397 = vmatprep.subr.bf16.mxu0 0
        %398 = vmatpush1.bf16.msra.mxu0 0
        %399 = vmatprep.subr.bf16.mxu0 0
        %400 = vmatpush1.bf16.msra.mxu0 0
        %401 = vmatprep.subr.bf16.mxu0 0
        %402 = vmatpush1.bf16.msra.mxu0 0
        %403 = vmatprep.subr.bf16.mxu0 0
        %404 = vmatpush1.bf16.msra.mxu0 0
        %405 = vmatprep.subr.bf16.mxu0 0
        %406 = vmatpush1.bf16.msra.mxu0 0
        %407 = vmatprep.subr.bf16.mxu0 0
        %408 = vmatpush1.bf16.msra.mxu0 0
        %409 = vmatprep.subr.bf16.mxu0 0
        %410 = vmatpush1.bf16.msra.mxu0 0
        %411 = vmatprep.subr.bf16.mxu0 0
        %412 = vmatpush1.bf16.msra.mxu0 0
        %413 = vmatprep.subr.bf16.mxu0 0
        %414 = vmatpush1.bf16.msra.mxu0 0
        %415 = vmatprep.subr.bf16.mxu0 0
        %416 = vmatpush1.bf16.msra.mxu0 0
        %417 = vmatprep.subr.bf16.mxu0 0
        %418 = vmatpush1.bf16.msra.mxu0 0
        %419 = vmatprep.subr.bf16.mxu0 0
        %420 = vmatpush1.bf16.msra.mxu0 0
        %421 = vmatprep.mubr.bf16.mxu0 0
        %422 = vmatmul.mubr.bf16.gmra.mrb[0].mxu0 %v366
        %v423 = vpop.f32.mrb[0].mxu0
        %v424 = vadd.f32 0.0, %v423
        %v425 = vpop.f32.mrb[0].mxu0
        %v426 = vadd.f32 0.0, %v425
        %v427 = vpop.f32.mrb[0].mxu0
        %v428 = vadd.f32 0.0, %v427
        %v429 = vpop.f32.mrb[0].mxu0
        %v430 = vadd.f32 0.0, %v429
        %431 = vmatprep.mubr.bf16.mxu0 0
        %432 = vmatmul.mubr.bf16.gmra.mrb[0].mxu0 %v369
        %v433 = vpop.f32.mrb[0].mxu0
        %v434 = vadd.f32 0.0, %v433
        %v435 = vpop.f32.mrb[0].mxu0
        %v436 = vadd.f32 0.0, %v435
        %v437 = vpop.f32.mrb[0].mxu0
        %v438 = vadd.f32 0.0, %v437
        %v439 = vpop.f32.mrb[0].mxu0
        %v440 = vadd.f32 0.0, %v439
        %441 = vmatprep.mubr.bf16.mxu0 0
        %442 = vmatmul.mubr.bf16.gmra.mrb[0].mxu0 %v372
        %v443 = vpop.f32.mrb[0].mxu0
        %v444 = vadd.f32 0.0, %v443
        %v445 = vpop.f32.mrb[0].mxu0
        %v446 = vadd.f32 0.0, %v445
        %v447 = vpop.f32.mrb[0].mxu0
        %v448 = vadd.f32 0.0, %v447
        %v449 = vpop.f32.mrb[0].mxu0
        %v450 = vadd.f32 0.0, %v449
        %451 = vmatprep.mubr.bf16.mxu0 0
        %452 = vmatmul.mubr.bf16.gmra.mrb[0].mxu0 %v375
        %v453 = vpop.f32.mrb[0].mxu0
        %v454 = vadd.f32 0.0, %v453
        %v455 = vpop.f32.mrb[0].mxu0
        %v456 = vadd.f32 0.0, %v455
        %v457 = vpop.f32.mrb[0].mxu0
        %v458 = vadd.f32 0.0, %v457
        %v459 = vpop.f32.mrb[0].mxu0
        %v460 = vadd.f32 0.0, %v459
        %461 = vmatprep.mubr.bf16.mxu0 0
        %462 = vmatmul.mubr.bf16.gmra.mrb[0].mxu0 %v378
        %v463 = vpop.f32.mrb[0].mxu0
        %v464 = vadd.f32 0.0, %v463
        %v465 = vpop.f32.mrb[0].mxu0
        %v466 = vadd.f32 0.0, %v465
        %v467 = vpop.f32.mrb[0].mxu0
        %v468 = vadd.f32 0.0, %v467
        %v469 = vpop.f32.mrb[0].mxu0
        %v470 = vadd.f32 0.0, %v469
        %471 = vmatprep.mubr.bf16.mxu0 0
        %472 = vmatmul.mubr.bf16.gmra.mrb[0].mxu0 %v381
        %v473 = vpop.f32.mrb[0].mxu0
        %v474 = vadd.f32 0.0, %v473
        %v475 = vpop.f32.mrb[0].mxu0
        %v476 = vadd.f32 0.0, %v475
        %v477 = vpop.f32.mrb[0].mxu0
        %v478 = vadd.f32 0.0, %v477
        %v479 = vpop.f32.mrb[0].mxu0
        %v480 = vadd.f32 0.0, %v479
        %481 = vmatprep.mubr.bf16.mxu0 0
        %482 = vmatmul.mubr.bf16.gmra.mrb[0].mxu0 %v384
        %v483 = vpop.f32.mrb[0].mxu0
        %v484 = vadd.f32 0.0, %v483
        %v485 = vpop.f32.mrb[0].mxu0
        %v486 = vadd.f32 0.0, %v485
        %v487 = vpop.f32.mrb[0].mxu0
        %v488 = vadd.f32 0.0, %v487
        %v489 = vpop.f32.mrb[0].mxu0
        %v490 = vadd.f32 0.0, %v489
        %491 = vmatprep.mubr.bf16.mxu0 0
        %492 = vmatmul.mubr.bf16.gmra.mrb[0].mxu0 %v387
        %v493 = vpop.f32.mrb[0].mxu0
        %v494 = vadd.f32 0.0, %v493
        %v495 = vpop.f32.mrb[0].mxu0
        %v496 = vadd.f32 0.0, %v495
        %v497 = vpop.f32.mrb[0].mxu0
        %v498 = vadd.f32 0.0, %v497
        %v499 = vpop.f32.mrb[0].mxu0
        %v500 = vadd.f32 0.0, %v499
        %501 = vdwg.mxu0
        %v502 = vpack.c.bf16 %v428, %v424
        %v503 = vpack.c.bf16 %v430, %v426
        %v504 = vpack.c.bf16 %v438, %v434
        %v505 = vpack.c.bf16 %v440, %v436
        %v506 = vpack.c.bf16 %v448, %v444
        %v507 = vpack.c.bf16 %v450, %v446
        %v508 = vpack.c.bf16 %v458, %v454
        %v509 = vpack.c.bf16 %v460, %v456
        %v510 = vpack.c.bf16 %v468, %v464
        %v511 = vpack.c.bf16 %v470, %v466
        %v512 = vpack.c.bf16 %v478, %v474
        %v513 = vpack.c.bf16 %v480, %v476
        %v514 = vpack.c.bf16 %v488, %v484
        %v515 = vpack.c.bf16 %v490, %v486
        %v516 = vpack.c.bf16 %v498, %v494
        %v517 = vpack.c.bf16 %v500, %v496
        %v518 = vld [vmem:[#allocation2] sm:$0xff]
        %v519 = vld [vmem:[#allocation2 + $0x8] sm:$0xff]
        %v520 = vld [vmem:[#allocation2 + $0x10] sm:$0xff]
        %v521 = vld [vmem:[#allocation2 + $0x18] sm:$0xf]
        %v522 = vld [vmem:[#allocation2 + $0x1c] sm:$0xff]
        %v523 = vld [vmem:[#allocation2 + $0x24] sm:$0xff]
        %v524 = vld [vmem:[#allocation2 + $0x2c] sm:$0xff]
        %v525 = vld [vmem:[#allocation2 + $0x34] sm:$0xf]
        %v526 = vld [vmem:[#allocation2 + $0x38] sm:$0xff]
        %v527 = vld [vmem:[#allocation2 + $0x40] sm:$0xff]
        %v528 = vld [vmem:[#allocation2 + $0x48] sm:$0xff]
        %v529 = vld [vmem:[#allocation2 + $0x50] sm:$0xf]
        %v530 = vld [vmem:[#allocation2 + $0x54] sm:$0xff]
        %v531 = vld [vmem:[#allocation2 + $0x5c] sm:$0xff]
        %v532 = vld [vmem:[#allocation2 + $0x64] sm:$0xff]
        %v533 = vld [vmem:[#allocation2 + $0x6c] sm:$0xf]
        %v534 = vld [vmem:[#allocation2 + $0x70] sm:$0xff]
        %v535 = vld [vmem:[#allocation2 + $0x78] sm:$0xff]
        %v536 = vld [vmem:[#allocation2 + $0x80] sm:$0xff]
        %v537 = vld [vmem:[#allocation2 + $0x88] sm:$0xf]
        %v538 = vld [vmem:[#allocation2 + $0x8c] sm:$0xff]
        %v539 = vld [vmem:[#allocation2 + $0x94] sm:$0xff]
        %v540 = vld [vmem:[#allocation2 + $0x9c] sm:$0xff]
        %v541 = vld [vmem:[#allocation2 + $0xa4] sm:$0xf]
        %v542 = vld [vmem:[#allocation2 + $0xa8] sm:$0xff]
        %v543 = vld [vmem:[#allocation2 + $0xb0] sm:$0xff]
        %v544 = vld [vmem:[#allocation2 + $0xb8] sm:$0xff]
        %v545 = vld [vmem:[#allocation2 + $0xc0] sm:$0xf]
        %v546 = vld [vmem:[#allocation2 + $0xc4] sm:$0xff]
        %v547 = vld [vmem:[#allocation2 + $0xcc] sm:$0xff]
        %v548 = vld [vmem:[#allocation2 + $0xd4] sm:$0xff]
        %v549 = vld [vmem:[#allocation2 + $0xdc] sm:$0xf]
        %v550 = vld [vmem:[#allocation2 + $0xe0] sm:$0xff]
        %v551 = vld [vmem:[#allocation2 + $0xe8] sm:$0xff]
        %v552 = vld [vmem:[#allocation2 + $0xf0] sm:$0xff]
        %v553 = vld [vmem:[#allocation2 + $0xf8] sm:$0xf]
        %v554 = vld [vmem:[#allocation2 + $0xfc] sm:$0xff]
        %v555 = vld [vmem:[#allocation2 + $0x104] sm:$0xff]
        %v556 = vld [vmem:[#allocation2 + $0x10c] sm:$0xff]
        %v557 = vld [vmem:[#allocation2 + $0x114] sm:$0xf]
        %v558 = vld [vmem:[#allocation2 + $0x118] sm:$0xff]
        %v559 = vld [vmem:[#allocation2 + $0x120] sm:$0xff]
        %v560 = vld [vmem:[#allocation2 + $0x128] sm:$0xff]
        %v561 = vld [vmem:[#allocation2 + $0x130] sm:$0xf]
        %v562 = vld [vmem:[#allocation2 + $0x134] sm:$0xff]
        %v563 = vld [vmem:[#allocation2 + $0x13c] sm:$0xff]
        %v564 = vld [vmem:[#allocation2 + $0x144] sm:$0xff]
        %v565 = vld [vmem:[#allocation2 + $0x14c] sm:$0xf]
        %v566 = vld [vmem:[#allocation2 + $0x150] sm:$0xff]
        %v567 = vld [vmem:[#allocation2 + $0x158] sm:$0xff]
        %v568 = vld [vmem:[#allocation2 + $0x160] sm:$0xff]
        %v569 = vld [vmem:[#allocation2 + $0x168] sm:$0xf]
        %v570 = vld [vmem:[#allocation2 + $0x16c] sm:$0xff]
        %v571 = vld [vmem:[#allocation2 + $0x174] sm:$0xff]
        %v572 = vld [vmem:[#allocation2 + $0x17c] sm:$0xff]
        %v573 = vld [vmem:[#allocation2 + $0x184] sm:$0xf]
        %v574 = vld [vmem:[#allocation2 + $0x188] sm:$0xff]
        %v575 = vld [vmem:[#allocation2 + $0x190] sm:$0xff]
        %v576 = vld [vmem:[#allocation2 + $0x198] sm:$0xff]
        %v577 = vld [vmem:[#allocation2 + $0x1a0] sm:$0xf]
        %v578 = vld [vmem:[#allocation2 + $0x1a4] sm:$0xff]
        %v579 = vld [vmem:[#allocation2 + $0x1ac] sm:$0xff]
        %v580 = vld [vmem:[#allocation2 + $0x1b4] sm:$0xff]
        %v581 = vld [vmem:[#allocation2 + $0x1bc] sm:$0xf]
        %v582 = vld [vmem:[#allocation2 + $0x1c0] sm:$0xff]
        %v583 = vld [vmem:[#allocation2 + $0x1c8] sm:$0xff]
        %v584 = vld [vmem:[#allocation2 + $0x1d0] sm:$0xff]
        %v585 = vld [vmem:[#allocation2 + $0x1d8] sm:$0xf]
        %v586 = vld [vmem:[#allocation2 + $0x1dc] sm:$0xff]
        %v587 = vld [vmem:[#allocation2 + $0x1e4] sm:$0xff]
        %v588 = vld [vmem:[#allocation2 + $0x1ec] sm:$0xff]
        %v589 = vld [vmem:[#allocation2 + $0x1f4] sm:$0xf]
        %v590 = vld [vmem:[#allocation2 + $0x1f8] sm:$0xff]
        %v591 = vld [vmem:[#allocation2 + $0x200] sm:$0xff]
        %v592 = vld [vmem:[#allocation2 + $0x208] sm:$0xff]
        %v593 = vld [vmem:[#allocation2 + $0x210] sm:$0xf]
        %v594 = vld [vmem:[#allocation2 + $0x214] sm:$0xff]
        %v595 = vld [vmem:[#allocation2 + $0x21c] sm:$0xff]
        %v596 = vld [vmem:[#allocation2 + $0x224] sm:$0xff]
        %v597 = vld [vmem:[#allocation2 + $0x22c] sm:$0xf]
        %v598 = vld [vmem:[#allocation2 + $0x230] sm:$0xff]
        %v599 = vld [vmem:[#allocation2 + $0x238] sm:$0xff]
        %v600 = vld [vmem:[#allocation2 + $0x240] sm:$0xff]
        %v601 = vld [vmem:[#allocation2 + $0x248] sm:$0xf]
        %v602 = vld [vmem:[#allocation2 + $0x24c] sm:$0xff]
        %v603 = vld [vmem:[#allocation2 + $0x254] sm:$0xff]
        %v604 = vld [vmem:[#allocation2 + $0x25c] sm:$0xff]
        %v605 = vld [vmem:[#allocation2 + $0x264] sm:$0xf]
        %v606 = vld [vmem:[#allocation2 + $0x268] sm:$0xff]
        %v607 = vld [vmem:[#allocation2 + $0x270] sm:$0xff]
        %v608 = vld [vmem:[#allocation2 + $0x278] sm:$0xff]
        %v609 = vld [vmem:[#allocation2 + $0x280] sm:$0xf]
        %v610 = vld [vmem:[#allocation2 + $0x284] sm:$0xff]
        %v611 = vld [vmem:[#allocation2 + $0x28c] sm:$0xff]
        %v612 = vld [vmem:[#allocation2 + $0x294] sm:$0xff]
        %v613 = vld [vmem:[#allocation2 + $0x29c] sm:$0xf]
        %v614 = vld [vmem:[#allocation2 + $0x2a0] sm:$0xff]
        %v615 = vld [vmem:[#allocation2 + $0x2a8] sm:$0xff]
        %v616 = vld [vmem:[#allocation2 + $0x2b0] sm:$0xff]
        %v617 = vld [vmem:[#allocation2 + $0x2b8] sm:$0xf]
        %v618 = vld [vmem:[#allocation2 + $0x2bc] sm:$0xff]
        %v619 = vld [vmem:[#allocation2 + $0x2c4] sm:$0xff]
        %v620 = vld [vmem:[#allocation2 + $0x2cc] sm:$0xff]
        %v621 = vld [vmem:[#allocation2 + $0x2d4] sm:$0xf]
        %v622 = vld [vmem:[#allocation2 + $0x2d8] sm:$0xff]
        %v623 = vld [vmem:[#allocation2 + $0x2e0] sm:$0xff]
        %v624 = vld [vmem:[#allocation2 + $0x2e8] sm:$0xff]
        %v625 = vld [vmem:[#allocation2 + $0x2f0] sm:$0xf]
        %v626 = vld [vmem:[#allocation2 + $0x2f4] sm:$0xff]
        %v627 = vld [vmem:[#allocation2 + $0x2fc] sm:$0xff]
        %v628 = vld [vmem:[#allocation2 + $0x304] sm:$0xff]
        %v629 = vld [vmem:[#allocation2 + $0x30c] sm:$0xf]
        %v742 = vunpack.c.l.b16 %v518
        %v743 = vunpack.c.h.b16 %v518
        %v744 = vunpack.c.l.b16 %v519
        %v745 = vunpack.c.h.b16 %v519
        %v746 = vunpack.c.l.b16 %v520
        %v747 = vunpack.c.h.b16 %v520
        %v748 = vunpack.c.l.b16 %v521
        %v749 = vunpack.c.l.b16 %v522
        %v750 = vunpack.c.h.b16 %v522
        %v751 = vunpack.c.l.b16 %v523
        %v752 = vunpack.c.h.b16 %v523
        %v753 = vunpack.c.l.b16 %v524
        %v754 = vunpack.c.h.b16 %v524
        %v755 = vunpack.c.l.b16 %v525
        %v756 = vunpack.c.l.b16 %v526
        %v757 = vunpack.c.h.b16 %v526
        %v758 = vunpack.c.l.b16 %v527
        %v759 = vunpack.c.h.b16 %v527
        %v760 = vunpack.c.l.b16 %v528
        %v761 = vunpack.c.h.b16 %v528
        %v762 = vunpack.c.l.b16 %v529
        %v763 = vunpack.c.l.b16 %v530
        %v764 = vunpack.c.h.b16 %v530
        %v765 = vunpack.c.l.b16 %v531
        %v766 = vunpack.c.h.b16 %v531
        %v767 = vunpack.c.l.b16 %v532
        %v768 = vunpack.c.h.b16 %v532
        %v769 = vunpack.c.l.b16 %v533
        %v770 = vunpack.c.l.b16 %v534
        %v771 = vunpack.c.h.b16 %v534
        %v772 = vunpack.c.l.b16 %v535
        %v773 = vunpack.c.h.b16 %v535
        %v774 = vunpack.c.l.b16 %v536
        %v775 = vunpack.c.h.b16 %v536
        %v776 = vunpack.c.l.b16 %v537
        %v777 = vunpack.c.l.b16 %v538
        %v778 = vunpack.c.h.b16 %v538
        %v779 = vunpack.c.l.b16 %v539
        %v780 = vunpack.c.h.b16 %v539
        %v781 = vunpack.c.l.b16 %v540
        %v782 = vunpack.c.h.b16 %v540
        %v783 = vunpack.c.l.b16 %v541
        %v784 = vunpack.c.l.b16 %v542
        %v785 = vunpack.c.h.b16 %v542
        %v786 = vunpack.c.l.b16 %v543
        %v787 = vunpack.c.h.b16 %v543
        %v788 = vunpack.c.l.b16 %v544
        %v789 = vunpack.c.h.b16 %v544
        %v790 = vunpack.c.l.b16 %v545
        %v791 = vunpack.c.l.b16 %v546
        %v792 = vunpack.c.h.b16 %v546
        %v793 = vunpack.c.l.b16 %v547
        %v794 = vunpack.c.h.b16 %v547
        %v795 = vunpack.c.l.b16 %v548
        %v796 = vunpack.c.h.b16 %v548
        %v797 = vunpack.c.l.b16 %v549
        %v798 = vunpack.c.l.b16 %v550
        %v799 = vunpack.c.h.b16 %v550
        %v800 = vunpack.c.l.b16 %v551
        %v801 = vunpack.c.h.b16 %v551
        %v802 = vunpack.c.l.b16 %v552
        %v803 = vunpack.c.h.b16 %v552
        %v804 = vunpack.c.l.b16 %v553
        %v805 = vunpack.c.l.b16 %v554
        %v806 = vunpack.c.h.b16 %v554
        %v807 = vunpack.c.l.b16 %v555
        %v808 = vunpack.c.h.b16 %v555
        %v809 = vunpack.c.l.b16 %v556
        %v810 = vunpack.c.h.b16 %v556
        %v811 = vunpack.c.l.b16 %v557
        %v812 = vunpack.c.l.b16 %v558
        %v813 = vunpack.c.h.b16 %v558
        %v814 = vunpack.c.l.b16 %v559
        %v815 = vunpack.c.h.b16 %v559
        %v816 = vunpack.c.l.b16 %v560
        %v817 = vunpack.c.h.b16 %v560
        %v818 = vunpack.c.l.b16 %v561
        %v819 = vunpack.c.l.b16 %v562
        %v820 = vunpack.c.h.b16 %v562
        %v821 = vunpack.c.l.b16 %v563
        %v822 = vunpack.c.h.b16 %v563
        %v823 = vunpack.c.l.b16 %v564
        %v824 = vunpack.c.h.b16 %v564
        %v825 = vunpack.c.l.b16 %v565
        %v826 = vunpack.c.l.b16 %v566
        %v827 = vunpack.c.h.b16 %v566
        %v828 = vunpack.c.l.b16 %v567
        %v829 = vunpack.c.h.b16 %v567
        %v830 = vunpack.c.l.b16 %v568
        %v831 = vunpack.c.h.b16 %v568
        %v832 = vunpack.c.l.b16 %v569
        %v833 = vunpack.c.l.b16 %v570
        %v834 = vunpack.c.h.b16 %v570
        %v835 = vunpack.c.l.b16 %v571
        %v836 = vunpack.c.h.b16 %v571
        %v837 = vunpack.c.l.b16 %v572
        %v838 = vunpack.c.h.b16 %v572
        %v839 = vunpack.c.l.b16 %v573
        %v840 = vunpack.c.l.b16 %v574
        %v841 = vunpack.c.h.b16 %v574
        %v842 = vunpack.c.l.b16 %v575
        %v843 = vunpack.c.h.b16 %v575
        %v844 = vunpack.c.l.b16 %v576
        %v845 = vunpack.c.h.b16 %v576
        %v846 = vunpack.c.l.b16 %v577
        %v847 = vunpack.c.l.b16 %v578
        %v848 = vunpack.c.h.b16 %v578
        %v849 = vunpack.c.l.b16 %v579
        %v850 = vunpack.c.h.b16 %v579
        %v851 = vunpack.c.l.b16 %v580
        %v852 = vunpack.c.h.b16 %v580
        %v853 = vunpack.c.l.b16 %v581
        %v854 = vunpack.c.l.b16 %v582
        %v855 = vunpack.c.h.b16 %v582
        %v856 = vunpack.c.l.b16 %v583
        %v857 = vunpack.c.h.b16 %v583
        %v858 = vunpack.c.l.b16 %v584
        %v859 = vunpack.c.h.b16 %v584
        %v860 = vunpack.c.l.b16 %v585
        %v861 = vunpack.c.l.b16 %v586
        %v862 = vunpack.c.h.b16 %v586
        %v863 = vunpack.c.l.b16 %v587
        %v864 = vunpack.c.h.b16 %v587
        %v865 = vunpack.c.l.b16 %v588
        %v866 = vunpack.c.h.b16 %v588
        %v867 = vunpack.c.l.b16 %v589
        %v868 = vunpack.c.l.b16 %v590
        %v869 = vunpack.c.h.b16 %v590
        %v870 = vunpack.c.l.b16 %v591
        %v871 = vunpack.c.h.b16 %v591
        %v872 = vunpack.c.l.b16 %v592
        %v873 = vunpack.c.h.b16 %v592
        %v874 = vunpack.c.l.b16 %v593
        %v875 = vunpack.c.l.b16 %v594
        %v876 = vunpack.c.h.b16 %v594
        %v877 = vunpack.c.l.b16 %v595
        %v878 = vunpack.c.h.b16 %v595
        %v879 = vunpack.c.l.b16 %v596
        %v880 = vunpack.c.h.b16 %v596
        %v881 = vunpack.c.l.b16 %v597
        %v882 = vunpack.c.l.b16 %v598
        %v883 = vunpack.c.h.b16 %v598
        %v884 = vunpack.c.l.b16 %v599
        %v885 = vunpack.c.h.b16 %v599
        %v886 = vunpack.c.l.b16 %v600
        %v887 = vunpack.c.h.b16 %v600
        %v888 = vunpack.c.l.b16 %v601
        %v889 = vunpack.c.l.b16 %v602
        %v890 = vunpack.c.h.b16 %v602
        %v891 = vunpack.c.l.b16 %v603
        %v892 = vunpack.c.h.b16 %v603
        %v893 = vunpack.c.l.b16 %v604
        %v894 = vunpack.c.h.b16 %v604
        %v895 = vunpack.c.l.b16 %v605
        %v896 = vunpack.c.l.b16 %v606
        %v897 = vunpack.c.h.b16 %v606
        %v898 = vunpack.c.l.b16 %v607
        %v899 = vunpack.c.h.b16 %v607
        %v900 = vunpack.c.l.b16 %v608
        %v901 = vunpack.c.h.b16 %v608
        %v902 = vunpack.c.l.b16 %v609
        %v903 = vunpack.c.l.b16 %v610
        %v904 = vunpack.c.h.b16 %v610
        %v905 = vunpack.c.l.b16 %v611
        %v906 = vunpack.c.h.b16 %v611
        %v907 = vunpack.c.l.b16 %v612
        %v908 = vunpack.c.h.b16 %v612
        %v909 = vunpack.c.l.b16 %v613
        %v910 = vunpack.c.l.b16 %v614
        %v911 = vunpack.c.h.b16 %v614
        %v912 = vunpack.c.l.b16 %v615
        %v913 = vunpack.c.h.b16 %v615
        %v914 = vunpack.c.l.b16 %v616
        %v915 = vunpack.c.h.b16 %v616
        %v916 = vunpack.c.l.b16 %v617
        %v917 = vunpack.c.l.b16 %v618
        %v918 = vunpack.c.h.b16 %v618
        %v919 = vunpack.c.l.b16 %v619
        %v920 = vunpack.c.h.b16 %v619
        %v921 = vunpack.c.l.b16 %v620
        %v922 = vunpack.c.h.b16 %v620
        %v923 = vunpack.c.l.b16 %v621
        %v924 = vunpack.c.l.b16 %v622
        %v925 = vunpack.c.h.b16 %v622
        %v926 = vunpack.c.l.b16 %v623
        %v927 = vunpack.c.h.b16 %v623
        %v928 = vunpack.c.l.b16 %v624
        %v929 = vunpack.c.h.b16 %v624
        %v930 = vunpack.c.l.b16 %v625
        %v931 = vunpack.c.l.b16 %v626
        %v932 = vunpack.c.h.b16 %v626
        %v933 = vunpack.c.l.b16 %v627
        %v934 = vunpack.c.h.b16 %v627
        %v935 = vunpack.c.l.b16 %v628
        %v936 = vunpack.c.h.b16 %v628
        %v937 = vunpack.c.l.b16 %v629
        %v938 = vpack.c.b16 %v749, %v742
        %v939 = vpack.c.b16 %v750, %v743
        %v940 = vpack.c.b16 %v751, %v744
        %v941 = vpack.c.b16 %v752, %v745
        %v942 = vpack.c.b16 %v753, %v746
        %v943 = vpack.c.b16 %v754, %v747
        %v944 = vpack.c.b16 %v755, %v748
        %v945 = vpack.c.b16 %v763, %v756
        %v946 = vpack.c.b16 %v764, %v757
        %v947 = vpack.c.b16 %v765, %v758
        %v948 = vpack.c.b16 %v766, %v759
        %v949 = vpack.c.b16 %v767, %v760
        %v950 = vpack.c.b16 %v768, %v761
        %v951 = vpack.c.b16 %v769, %v762
        %v952 = vpack.c.b16 %v777, %v770
        %v953 = vpack.c.b16 %v778, %v771
        %v954 = vpack.c.b16 %v779, %v772
        %v955 = vpack.c.b16 %v780, %v773
        %v956 = vpack.c.b16 %v781, %v774
        %v957 = vpack.c.b16 %v782, %v775
        %v958 = vpack.c.b16 %v783, %v776
        %v959 = vpack.c.b16 %v791, %v784
        %v960 = vpack.c.b16 %v792, %v785
        %v961 = vpack.c.b16 %v793, %v786
        %v962 = vpack.c.b16 %v794, %v787
        %v963 = vpack.c.b16 %v795, %v788
        %v964 = vpack.c.b16 %v796, %v789
        %v965 = vpack.c.b16 %v797, %v790
        %v966 = vpack.c.b16 %v805, %v798
        %v967 = vpack.c.b16 %v806, %v799
        %v968 = vpack.c.b16 %v807, %v800
        %v969 = vpack.c.b16 %v808, %v801
        %v970 = vpack.c.b16 %v809, %v802
        %v971 = vpack.c.b16 %v810, %v803
        %v972 = vpack.c.b16 %v811, %v804
        %v973 = vpack.c.b16 %v819, %v812
        %v974 = vpack.c.b16 %v820, %v813
        %v975 = vpack.c.b16 %v821, %v814
        %v976 = vpack.c.b16 %v822, %v815
        %v977 = vpack.c.b16 %v823, %v816
        %v978 = vpack.c.b16 %v824, %v817
        %v979 = vpack.c.b16 %v825, %v818
        %v980 = vpack.c.b16 %v833, %v826
        %v981 = vpack.c.b16 %v834, %v827
        %v982 = vpack.c.b16 %v835, %v828
        %v983 = vpack.c.b16 %v836, %v829
        %v984 = vpack.c.b16 %v837, %v830
        %v985 = vpack.c.b16 %v838, %v831
        %v986 = vpack.c.b16 %v839, %v832
        %v987 = vpack.c.b16 %v847, %v840
        %v988 = vpack.c.b16 %v848, %v841
        %v989 = vpack.c.b16 %v849, %v842
        %v990 = vpack.c.b16 %v850, %v843
        %v991 = vpack.c.b16 %v851, %v844
        %v992 = vpack.c.b16 %v852, %v845
        %v993 = vpack.c.b16 %v853, %v846
        %v994 = vpack.c.b16 %v861, %v854
        %v995 = vpack.c.b16 %v862, %v855
        %v996 = vpack.c.b16 %v863, %v856
        %v997 = vpack.c.b16 %v864, %v857
        %v998 = vpack.c.b16 %v865, %v858
        %v999 = vpack.c.b16 %v866, %v859
        %v1000 = vpack.c.b16 %v867, %v860
        %v1001 = vpack.c.b16 %v875, %v868
        %v1002 = vpack.c.b16 %v876, %v869
        %v1003 = vpack.c.b16 %v877, %v870
        %v1004 = vpack.c.b16 %v878, %v871
        %v1005 = vpack.c.b16 %v879, %v872
        %v1006 = vpack.c.b16 %v880, %v873
        %v1007 = vpack.c.b16 %v881, %v874
        %v1008 = vpack.c.b16 %v889, %v882
        %v1009 = vpack.c.b16 %v890, %v883
        %v1010 = vpack.c.b16 %v891, %v884
        %v1011 = vpack.c.b16 %v892, %v885
        %v1012 = vpack.c.b16 %v893, %v886
        %v1013 = vpack.c.b16 %v894, %v887
        %v1014 = vpack.c.b16 %v895, %v888
        %v1015 = vpack.c.b16 %v903, %v896
        %v1016 = vpack.c.b16 %v904, %v897
        %v1017 = vpack.c.b16 %v905, %v898
        %v1018 = vpack.c.b16 %v906, %v899
        %v1019 = vpack.c.b16 %v907, %v900
        %v1020 = vpack.c.b16 %v908, %v901
        %v1021 = vpack.c.b16 %v909, %v902
        %v1022 = vpack.c.b16 %v917, %v910
        %v1023 = vpack.c.b16 %v918, %v911
        %v1024 = vpack.c.b16 %v919, %v912
        %v1025 = vpack.c.b16 %v920, %v913
        %v1026 = vpack.c.b16 %v921, %v914
        %v1027 = vpack.c.b16 %v922, %v915
        %v1028 = vpack.c.b16 %v923, %v916
        %v1029 = vpack.c.b16 %v931, %v924
        %v1030 = vpack.c.b16 %v932, %v925
        %v1031 = vpack.c.b16 %v933, %v926
        %v1032 = vpack.c.b16 %v934, %v927
        %v1033 = vpack.c.b16 %v935, %v928
        %v1034 = vpack.c.b16 %v936, %v929
        %v1035 = vpack.c.b16 %v937, %v930
        %vm1134 = vcmask 785408
        %v1136 = vsel %vm1134, %v503, 0
        %v1139 = vsel %vm1134, %v505, 0
        %v1142 = vsel %vm1134, %v507, 0
        %v1145 = vsel %vm1134, %v509, 0
        %v1148 = vsel %vm1134, %v511, 0
        %v1151 = vsel %vm1134, %v513, 0
        %v1154 = vsel %vm1134, %v515, 0
        %v1157 = vsel %vm1134, %v517, 0
        %1159 = vmatprep.subr.bf16.mxu0 %v939
        %1160 = vmatpush1.bf16.msra.mxu0 %v938
        %1161 = vmatprep.subr.bf16.mxu0 %v946
        %1162 = vmatpush1.bf16.msra.mxu0 %v945
        %1163 = vmatprep.subr.bf16.mxu0 %v953
        %1164 = vmatpush1.bf16.msra.mxu0 %v952
        %1165 = vmatprep.subr.bf16.mxu0 %v960
        %1166 = vmatpush1.bf16.msra.mxu0 %v959
        %1167 = vmatprep.subr.bf16.mxu0 %v967
        %1168 = vmatpush1.bf16.msra.mxu0 %v966
        %1169 = vmatprep.subr.bf16.mxu0 %v974
        %1170 = vmatpush1.bf16.msra.mxu0 %v973
        %1171 = vmatprep.subr.bf16.mxu0 %v981
        %1172 = vmatpush1.bf16.msra.mxu0 %v980
        %1173 = vmatprep.subr.bf16.mxu0 %v988
        %1174 = vmatpush1.bf16.msra.mxu0 %v987
        %1175 = vmatprep.subr.bf16.mxu0 %v995
        %1176 = vmatpush1.bf16.msra.mxu0 %v994
        %1177 = vmatprep.subr.bf16.mxu0 %v1002
        %1178 = vmatpush1.bf16.msra.mxu0 %v1001
        %1179 = vmatprep.subr.bf16.mxu0 %v1009
        %1180 = vmatpush1.bf16.msra.mxu0 %v1008
        %1181 = vmatprep.subr.bf16.mxu0 %v1016
        %1182 = vmatpush1.bf16.msra.mxu0 %v1015
        %1183 = vmatprep.subr.bf16.mxu0 %v1023
        %1184 = vmatpush1.bf16.msra.mxu0 %v1022
        %1185 = vmatprep.subr.bf16.mxu0 %v1030
        %1186 = vmatpush1.bf16.msra.mxu0 %v1029
        %1187 = vmatprep.subr.bf16.mxu0 0
        %1188 = vmatpush1.bf16.msra.mxu0 0
        %1189 = vmatprep.subr.bf16.mxu0 0
        %1190 = vmatpush1.bf16.msra.mxu0 0
        %1191 = vmatprep.mubr.bf16.mxu0 %v1136
        %1192 = vmatmul.mubr.bf16.gmra.mrb[0].mxu0 %v502
        %v1193 = vpop.f32.mrb[0].mxu0
        %v1194 = vadd.f32 0.0, %v1193
        %v1195 = vpop.f32.mrb[0].mxu0
        %v1196 = vadd.f32 0.0, %v1195
        %v1197 = vpop.f32.mrb[0].mxu0
        %v1198 = vadd.f32 0.0, %v1197
        %v1199 = vpop.f32.mrb[0].mxu0
        %v1200 = vadd.f32 0.0, %v1199
        %1201 = vmatprep.mubr.bf16.mxu0 %v1139
        %1202 = vmatmul.mubr.bf16.gmra.mrb[0].mxu0 %v504
        %v1203 = vpop.f32.mrb[0].mxu0
        %v1204 = vadd.f32 0.0, %v1203
        %v1205 = vpop.f32.mrb[0].mxu0
        %v1206 = vadd.f32 0.0, %v1205
        %v1207 = vpop.f32.mrb[0].mxu0
        %v1208 = vadd.f32 0.0, %v1207
        %v1209 = vpop.f32.mrb[0].mxu0
        %v1210 = vadd.f32 0.0, %v1209
        %1211 = vmatprep.mubr.bf16.mxu0 %v1142
        %1212 = vmatmul.mubr.bf16.gmra.mrb[0].mxu0 %v506
        %v1213 = vpop.f32.mrb[0].mxu0
        %v1214 = vadd.f32 0.0, %v1213
        %v1215 = vpop.f32.mrb[0].mxu0
        %v1216 = vadd.f32 0.0, %v1215
        %v1217 = vpop.f32.mrb[0].mxu0
        %v1218 = vadd.f32 0.0, %v1217
        %v1219 = vpop.f32.mrb[0].mxu0
        %v1220 = vadd.f32 0.0, %v1219
        %1221 = vmatprep.mubr.bf16.mxu0 %v1145
        %1222 = vmatmul.mubr.bf16.gmra.mrb[0].mxu0 %v508
        %v1223 = vpop.f32.mrb[0].mxu0
        %v1224 = vadd.f32 0.0, %v1223
        %v1225 = vpop.f32.mrb[0].mxu0
        %v1226 = vadd.f32 0.0, %v1225
        %v1227 = vpop.f32.mrb[0].mxu0
        %v1228 = vadd.f32 0.0, %v1227
        %v1229 = vpop.f32.mrb[0].mxu0
        %v1230 = vadd.f32 0.0, %v1229
        %1231 = vmatprep.mubr.bf16.mxu0 %v1148
        %1232 = vmatmul.mubr.bf16.gmra.mrb[0].mxu0 %v510
        %v1233 = vpop.f32.mrb[0].mxu0
        %v1234 = vadd.f32 0.0, %v1233
        %v1235 = vpop.f32.mrb[0].mxu0
        %v1236 = vadd.f32 0.0, %v1235
        %v1237 = vpop.f32.mrb[0].mxu0
        %v1238 = vadd.f32 0.0, %v1237
        %v1239 = vpop.f32.mrb[0].mxu0
        %v1240 = vadd.f32 0.0, %v1239
        %1241 = vmatprep.mubr.bf16.mxu0 %v1151
        %1242 = vmatmul.mubr.bf16.gmra.mrb[0].mxu0 %v512
        %v1243 = vpop.f32.mrb[0].mxu0
        %v1244 = vadd.f32 0.0, %v1243
        %v1245 = vpop.f32.mrb[0].mxu0
        %v1246 = vadd.f32 0.0, %v1245
        %v1247 = vpop.f32.mrb[0].mxu0
        %v1248 = vadd.f32 0.0, %v1247
        %v1249 = vpop.f32.mrb[0].mxu0
        %v1250 = vadd.f32 0.0, %v1249
        %1251 = vmatprep.mubr.bf16.mxu0 %v1154
        %1252 = vmatmul.mubr.bf16.gmra.mrb[0].mxu0 %v514
        %v1253 = vpop.f32.mrb[0].mxu0
        %v1254 = vadd.f32 0.0, %v1253
        %v1255 = vpop.f32.mrb[0].mxu0
        %v1256 = vadd.f32 0.0, %v1255
        %v1257 = vpop.f32.mrb[0].mxu0
        %v1258 = vadd.f32 0.0, %v1257
        %v1259 = vpop.f32.mrb[0].mxu0
        %v1260 = vadd.f32 0.0, %v1259
        %1261 = vmatprep.mubr.bf16.mxu0 %v1157
        %1262 = vmatmul.mubr.bf16.gmra.mrb[0].mxu0 %v516
        %v1263 = vpop.f32.mrb[0].mxu0
        %v1264 = vadd.f32 0.0, %v1263
        %v1265 = vpop.f32.mrb[0].mxu0
        %v1266 = vadd.f32 0.0, %v1265
        %v1267 = vpop.f32.mrb[0].mxu0
        %v1268 = vadd.f32 0.0, %v1267
        %v1269 = vpop.f32.mrb[0].mxu0
        %v1270 = vadd.f32 0.0, %v1269
        %1271 = vdwg.mxu0
        %1272 = vmatprep.subr.bf16.mxu0 %v941
        %1273 = vmatpush1.bf16.msra.mxu0 %v940
        %1274 = vmatprep.subr.bf16.mxu0 %v948
        %1275 = vmatpush1.bf16.msra.mxu0 %v947
        %1276 = vmatprep.subr.bf16.mxu0 %v955
        %1277 = vmatpush1.bf16.msra.mxu0 %v954
        %1278 = vmatprep.subr.bf16.mxu0 %v962
        %1279 = vmatpush1.bf16.msra.mxu0 %v961
        %1280 = vmatprep.subr.bf16.mxu0 %v969
        %1281 = vmatpush1.bf16.msra.mxu0 %v968
        %1282 = vmatprep.subr.bf16.mxu0 %v976
        %1283 = vmatpush1.bf16.msra.mxu0 %v975
        %1284 = vmatprep.subr.bf16.mxu0 %v983
        %1285 = vmatpush1.bf16.msra.mxu0 %v982
        %1286 = vmatprep.subr.bf16.mxu0 %v990
        %1287 = vmatpush1.bf16.msra.mxu0 %v989
        %1288 = vmatprep.subr.bf16.mxu0 %v997
        %1289 = vmatpush1.bf16.msra.mxu0 %v996
        %1290 = vmatprep.subr.bf16.mxu0 %v1004
        %1291 = vmatpush1.bf16.msra.mxu0 %v1003
        %1292 = vmatprep.subr.bf16.mxu0 %v1011
        %1293 = vmatpush1.bf16.msra.mxu0 %v1010
        %1294 = vmatprep.subr.bf16.mxu0 %v1018
        %1295 = vmatpush1.bf16.msra.mxu0 %v1017
        %1296 = vmatprep.subr.bf16.mxu0 %v1025
        %1297 = vmatpush1.bf16.msra.mxu0 %v1024
        %1298 = vmatprep.subr.bf16.mxu0 %v1032
        %1299 = vmatpush1.bf16.msra.mxu0 %v1031
        %1300 = vmatprep.subr.bf16.mxu0 0
        %1301 = vmatpush1.bf16.msra.mxu0 0
        %1302 = vmatprep.subr.bf16.mxu0 0
        %1303 = vmatpush1.bf16.msra.mxu0 0
        %1304 = vmatprep.mubr.bf16.mxu0 %v1136
        %1305 = vmatmul.mubr.bf16.gmra.mrb[0].mxu0 %v502
        %v1306 = vpop.f32.mrb[0].mxu0
        %v1307 = vadd.f32 0.0, %v1306
        %v1308 = vpop.f32.mrb[0].mxu0
        %v1309 = vadd.f32 0.0, %v1308
        %v1310 = vpop.f32.mrb[0].mxu0
        %v1311 = vadd.f32 0.0, %v1310
        %v1312 = vpop.f32.mrb[0].mxu0
        %v1313 = vadd.f32 0.0, %v1312
        %1314 = vmatprep.mubr.bf16.mxu0 %v1139
        %1315 = vmatmul.mubr.bf16.gmra.mrb[0].mxu0 %v504
        %v1316 = vpop.f32.mrb[0].mxu0
        %v1317 = vadd.f32 0.0, %v1316
        %v1318 = vpop.f32.mrb[0].mxu0
        %v1319 = vadd.f32 0.0, %v1318
        %v1320 = vpop.f32.mrb[0].mxu0
        %v1321 = vadd.f32 0.0, %v1320
        %v1322 = vpop.f32.mrb[0].mxu0
        %v1323 = vadd.f32 0.0, %v1322
        %1324 = vmatprep.mubr.bf16.mxu0 %v1142
        %1325 = vmatmul.mubr.bf16.gmra.mrb[0].mxu0 %v506
        %v1326 = vpop.f32.mrb[0].mxu0
        %v1327 = vadd.f32 0.0, %v1326
        %v1328 = vpop.f32.mrb[0].mxu0
        %v1329 = vadd.f32 0.0, %v1328
        %v1330 = vpop.f32.mrb[0].mxu0
        %v1331 = vadd.f32 0.0, %v1330
        %v1332 = vpop.f32.mrb[0].mxu0
        %v1333 = vadd.f32 0.0, %v1332
        %1334 = vmatprep.mubr.bf16.mxu0 %v1145
        %1335 = vmatmul.mubr.bf16.gmra.mrb[0].mxu0 %v508
        %v1336 = vpop.f32.mrb[0].mxu0
        %v1337 = vadd.f32 0.0, %v1336
        %v1338 = vpop.f32.mrb[0].mxu0
        %v1339 = vadd.f32 0.0, %v1338
        %v1340 = vpop.f32.mrb[0].mxu0
        %v1341 = vadd.f32 0.0, %v1340
        %v1342 = vpop.f32.mrb[0].mxu0
        %v1343 = vadd.f32 0.0, %v1342
        %1344 = vmatprep.mubr.bf16.mxu0 %v1148
        %1345 = vmatmul.mubr.bf16.gmra.mrb[0].mxu0 %v510
        %v1346 = vpop.f32.mrb[0].mxu0
        %v1347 = vadd.f32 0.0, %v1346
        %v1348 = vpop.f32.mrb[0].mxu0
        %v1349 = vadd.f32 0.0, %v1348
        %v1350 = vpop.f32.mrb[0].mxu0
        %v1351 = vadd.f32 0.0, %v1350
        %v1352 = vpop.f32.mrb[0].mxu0
        %v1353 = vadd.f32 0.0, %v1352
        %1354 = vmatprep.mubr.bf16.mxu0 %v1151
        %1355 = vmatmul.mubr.bf16.gmra.mrb[0].mxu0 %v512
        %v1356 = vpop.f32.mrb[0].mxu0
        %v1357 = vadd.f32 0.0, %v1356
        %v1358 = vpop.f32.mrb[0].mxu0
        %v1359 = vadd.f32 0.0, %v1358
        %v1360 = vpop.f32.mrb[0].mxu0
        %v1361 = vadd.f32 0.0, %v1360
        %v1362 = vpop.f32.mrb[0].mxu0
        %v1363 = vadd.f32 0.0, %v1362
        %1364 = vmatprep.mubr.bf16.mxu0 %v1154
        %1365 = vmatmul.mubr.bf16.gmra.mrb[0].mxu0 %v514
        %v1366 = vpop.f32.mrb[0].mxu0
        %v1367 = vadd.f32 0.0, %v1366
        %v1368 = vpop.f32.mrb[0].mxu0
        %v1369 = vadd.f32 0.0, %v1368
        %v1370 = vpop.f32.mrb[0].mxu0
        %v1371 = vadd.f32 0.0, %v1370
        %v1372 = vpop.f32.mrb[0].mxu0
        %v1373 = vadd.f32 0.0, %v1372
        %1374 = vmatprep.mubr.bf16.mxu0 %v1157
        %1375 = vmatmul.mubr.bf16.gmra.mrb[0].mxu0 %v516
        %v1376 = vpop.f32.mrb[0].mxu0
        %v1377 = vadd.f32 0.0, %v1376
        %v1378 = vpop.f32.mrb[0].mxu0
        %v1379 = vadd.f32 0.0, %v1378
        %v1380 = vpop.f32.mrb[0].mxu0
        %v1381 = vadd.f32 0.0, %v1380
        %v1382 = vpop.f32.mrb[0].mxu0
        %v1383 = vadd.f32 0.0, %v1382
        %1384 = vdwg.mxu0
        %1385 = vmatprep.subr.bf16.mxu0 %v943
        %1386 = vmatpush1.bf16.msra.mxu0 %v942
        %1387 = vmatprep.subr.bf16.mxu0 %v950
        %1388 = vmatpush1.bf16.msra.mxu0 %v949
        %1389 = vmatprep.subr.bf16.mxu0 %v957
        %1390 = vmatpush1.bf16.msra.mxu0 %v956
        %1391 = vmatprep.subr.bf16.mxu0 %v964
        %1392 = vmatpush1.bf16.msra.mxu0 %v963
        %1393 = vmatprep.subr.bf16.mxu0 %v971
        %1394 = vmatpush1.bf16.msra.mxu0 %v970
        %1395 = vmatprep.subr.bf16.mxu0 %v978
        %1396 = vmatpush1.bf16.msra.mxu0 %v977
        %1397 = vmatprep.subr.bf16.mxu0 %v985
        %1398 = vmatpush1.bf16.msra.mxu0 %v984
        %1399 = vmatprep.subr.bf16.mxu0 %v992
        %1400 = vmatpush1.bf16.msra.mxu0 %v991
        %1401 = vmatprep.subr.bf16.mxu0 %v999
        %1402 = vmatpush1.bf16.msra.mxu0 %v998
        %1403 = vmatprep.subr.bf16.mxu0 %v1006
        %1404 = vmatpush1.bf16.msra.mxu0 %v1005
        %1405 = vmatprep.subr.bf16.mxu0 %v1013
        %1406 = vmatpush1.bf16.msra.mxu0 %v1012
        %1407 = vmatprep.subr.bf16.mxu0 %v1020
        %1408 = vmatpush1.bf16.msra.mxu0 %v1019
        %1409 = vmatprep.subr.bf16.mxu0 %v1027
        %1410 = vmatpush1.bf16.msra.mxu0 %v1026
        %1411 = vmatprep.subr.bf16.mxu0 %v1034
        %1412 = vmatpush1.bf16.msra.mxu0 %v1033
        %1413 = vmatprep.subr.bf16.mxu0 0
        %1414 = vmatpush1.bf16.msra.mxu0 0
        %1415 = vmatprep.subr.bf16.mxu0 0
        %1416 = vmatpush1.bf16.msra.mxu0 0
        %1417 = vmatprep.mubr.bf16.mxu0 %v1136
        %1418 = vmatmul.mubr.bf16.gmra.mrb[0].mxu0 %v502
        %v1419 = vpop.f32.mrb[0].mxu0
        %v1420 = vadd.f32 0.0, %v1419
        %v1421 = vpop.f32.mrb[0].mxu0
        %v1422 = vadd.f32 0.0, %v1421
        %v1423 = vpop.f32.mrb[0].mxu0
        %v1424 = vadd.f32 0.0, %v1423
        %v1425 = vpop.f32.mrb[0].mxu0
        %v1426 = vadd.f32 0.0, %v1425
        %1427 = vmatprep.mubr.bf16.mxu0 %v1139
        %1428 = vmatmul.mubr.bf16.gmra.mrb[0].mxu0 %v504
        %v1429 = vpop.f32.mrb[0].mxu0
        %v1430 = vadd.f32 0.0, %v1429
        %v1431 = vpop.f32.mrb[0].mxu0
        %v1432 = vadd.f32 0.0, %v1431
        %v1433 = vpop.f32.mrb[0].mxu0
        %v1434 = vadd.f32 0.0, %v1433
        %v1435 = vpop.f32.mrb[0].mxu0
        %v1436 = vadd.f32 0.0, %v1435
        %1437 = vmatprep.mubr.bf16.mxu0 %v1142
        %1438 = vmatmul.mubr.bf16.gmra.mrb[0].mxu0 %v506
        %v1439 = vpop.f32.mrb[0].mxu0
        %v1440 = vadd.f32 0.0, %v1439
        %v1441 = vpop.f32.mrb[0].mxu0
        %v1442 = vadd.f32 0.0, %v1441
        %v1443 = vpop.f32.mrb[0].mxu0
        %v1444 = vadd.f32 0.0, %v1443
        %v1445 = vpop.f32.mrb[0].mxu0
        %v1446 = vadd.f32 0.0, %v1445
        %1447 = vmatprep.mubr.bf16.mxu0 %v1145
        %1448 = vmatmul.mubr.bf16.gmra.mrb[0].mxu0 %v508
        %v1449 = vpop.f32.mrb[0].mxu0
        %v1450 = vadd.f32 0.0, %v1449
        %v1451 = vpop.f32.mrb[0].mxu0
        %v1452 = vadd.f32 0.0, %v1451
        %v1453 = vpop.f32.mrb[0].mxu0
        %v1454 = vadd.f32 0.0, %v1453
        %v1455 = vpop.f32.mrb[0].mxu0
        %v1456 = vadd.f32 0.0, %v1455
        %1457 = vmatprep.mubr.bf16.mxu0 %v1148
        %1458 = vmatmul.mubr.bf16.gmra.mrb[0].mxu0 %v510
        %v1459 = vpop.f32.mrb[0].mxu0
        %v1460 = vadd.f32 0.0, %v1459
        %v1461 = vpop.f32.mrb[0].mxu0
        %v1462 = vadd.f32 0.0, %v1461
        %v1463 = vpop.f32.mrb[0].mxu0
        %v1464 = vadd.f32 0.0, %v1463
        %v1465 = vpop.f32.mrb[0].mxu0
        %v1466 = vadd.f32 0.0, %v1465
        %1467 = vmatprep.mubr.bf16.mxu0 %v1151
        %1468 = vmatmul.mubr.bf16.gmra.mrb[0].mxu0 %v512
        %v1469 = vpop.f32.mrb[0].mxu0
        %v1470 = vadd.f32 0.0, %v1469
        %v1471 = vpop.f32.mrb[0].mxu0
        %v1472 = vadd.f32 0.0, %v1471
        %v1473 = vpop.f32.mrb[0].mxu0
        %v1474 = vadd.f32 0.0, %v1473
        %v1475 = vpop.f32.mrb[0].mxu0
        %v1476 = vadd.f32 0.0, %v1475
        %1477 = vmatprep.mubr.bf16.mxu0 %v1154
        %1478 = vmatmul.mubr.bf16.gmra.mrb[0].mxu0 %v514
        %v1479 = vpop.f32.mrb[0].mxu0
        %v1480 = vadd.f32 0.0, %v1479
        %v1481 = vpop.f32.mrb[0].mxu0
        %v1482 = vadd.f32 0.0, %v1481
        %v1483 = vpop.f32.mrb[0].mxu0
        %v1484 = vadd.f32 0.0, %v1483
        %v1485 = vpop.f32.mrb[0].mxu0
        %v1486 = vadd.f32 0.0, %v1485
        %1487 = vmatprep.mubr.bf16.mxu0 %v1157
        %1488 = vmatmul.mubr.bf16.gmra.mrb[0].mxu0 %v516
        %v1489 = vpop.f32.mrb[0].mxu0
        %v1490 = vadd.f32 0.0, %v1489
        %v1491 = vpop.f32.mrb[0].mxu0
        %v1492 = vadd.f32 0.0, %v1491
        %v1493 = vpop.f32.mrb[0].mxu0
        %v1494 = vadd.f32 0.0, %v1493
        %v1495 = vpop.f32.mrb[0].mxu0
        %v1496 = vadd.f32 0.0, %v1495
        %1497 = vdwg.mxu0
        %1498 = vmatprep.subr.bf16.mxu0 0
        %1499 = vmatpush1.bf16.msra.mxu0 %v944
        %1500 = vmatprep.subr.bf16.mxu0 0
        %1501 = vmatpush1.bf16.msra.mxu0 %v951
        %1502 = vmatprep.subr.bf16.mxu0 0
        %1503 = vmatpush1.bf16.msra.mxu0 %v958
        %1504 = vmatprep.subr.bf16.mxu0 0
        %1505 = vmatpush1.bf16.msra.mxu0 %v965
        %1506 = vmatprep.subr.bf16.mxu0 0
        %1507 = vmatpush1.bf16.msra.mxu0 %v972
        %1508 = vmatprep.subr.bf16.mxu0 0
        %1509 = vmatpush1.bf16.msra.mxu0 %v979
        %1510 = vmatprep.subr.bf16.mxu0 0
        %1511 = vmatpush1.bf16.msra.mxu0 %v986
        %1512 = vmatprep.subr.bf16.mxu0 0
        %1513 = vmatpush1.bf16.msra.mxu0 %v993
        %1514 = vmatprep.subr.bf16.mxu0 0
        %1515 = vmatpush1.bf16.msra.mxu0 %v1000
        %1516 = vmatprep.subr.bf16.mxu0 0
        %1517 = vmatpush1.bf16.msra.mxu0 %v1007
        %1518 = vmatprep.subr.bf16.mxu0 0
        %1519 = vmatpush1.bf16.msra.mxu0 %v1014
        %1520 = vmatprep.subr.bf16.mxu0 0
        %1521 = vmatpush1.bf16.msra.mxu0 %v1021
        %1522 = vmatprep.subr.bf16.mxu0 0
        %1523 = vmatpush1.bf16.msra.mxu0 %v1028
        %1524 = vmatprep.subr.bf16.mxu0 0
        %1525 = vmatpush1.bf16.msra.mxu0 %v1035
        %1526 = vmatprep.subr.bf16.mxu0 0
        %1527 = vmatpush1.bf16.msra.mxu0 0
        %1528 = vmatprep.subr.bf16.mxu0 0
        %1529 = vmatpush1.bf16.msra.mxu0 0
        %1530 = vmatprep.mubr.bf16.mxu0 %v1136
        %1531 = vmatmul.mubr.bf16.gmra.mrb[0].mxu0 %v502
        %v1532 = vpop.f32.mrb[0].mxu0
        %v1533 = vadd.f32 0.0, %v1532
        %v1534 = vpop.f32.mrb[0].mxu0
        %v1535 = vpop.f32.mrb[0].mxu0
        %v1536 = vadd.f32 0.0, %v1535
        %v1537 = vpop.f32.mrb[0].mxu0
        %1538 = vmatprep.mubr.bf16.mxu0 %v1139
        %1539 = vmatmul.mubr.bf16.gmra.mrb[0].mxu0 %v504
        %v1540 = vpop.f32.mrb[0].mxu0
        %v1541 = vadd.f32 0.0, %v1540
        %v1542 = vpop.f32.mrb[0].mxu0
        %v1543 = vpop.f32.mrb[0].mxu0
        %v1544 = vadd.f32 0.0, %v1543
        %v1545 = vpop.f32.mrb[0].mxu0
        %1546 = vmatprep.mubr.bf16.mxu0 %v1142
        %1547 = vmatmul.mubr.bf16.gmra.mrb[0].mxu0 %v506
        %v1548 = vpop.f32.mrb[0].mxu0
        %v1549 = vadd.f32 0.0, %v1548
        %v1550 = vpop.f32.mrb[0].mxu0
        %v1551 = vpop.f32.mrb[0].mxu0
        %v1552 = vadd.f32 0.0, %v1551
        %v1553 = vpop.f32.mrb[0].mxu0
        %1554 = vmatprep.mubr.bf16.mxu0 %v1145
        %1555 = vmatmul.mubr.bf16.gmra.mrb[0].mxu0 %v508
        %v1556 = vpop.f32.mrb[0].mxu0
        %v1557 = vadd.f32 0.0, %v1556
        %v1558 = vpop.f32.mrb[0].mxu0
        %v1559 = vpop.f32.mrb[0].mxu0
        %v1560 = vadd.f32 0.0, %v1559
        %v1561 = vpop.f32.mrb[0].mxu0
        %1562 = vmatprep.mubr.bf16.mxu0 %v1148
        %1563 = vmatmul.mubr.bf16.gmra.mrb[0].mxu0 %v510
        %v1564 = vpop.f32.mrb[0].mxu0
        %v1565 = vadd.f32 0.0, %v1564
        %v1566 = vpop.f32.mrb[0].mxu0
        %v1567 = vpop.f32.mrb[0].mxu0
        %v1568 = vadd.f32 0.0, %v1567
        %v1569 = vpop.f32.mrb[0].mxu0
        %1570 = vmatprep.mubr.bf16.mxu0 %v1151
        %1571 = vmatmul.mubr.bf16.gmra.mrb[0].mxu0 %v512
        %v1572 = vpop.f32.mrb[0].mxu0
        %v1573 = vadd.f32 0.0, %v1572
        %v1574 = vpop.f32.mrb[0].mxu0
        %v1575 = vpop.f32.mrb[0].mxu0
        %v1576 = vadd.f32 0.0, %v1575
        %v1577 = vpop.f32.mrb[0].mxu0
        %1578 = vmatprep.mubr.bf16.mxu0 %v1154
        %1579 = vmatmul.mubr.bf16.gmra.mrb[0].mxu0 %v514
        %v1580 = vpop.f32.mrb[0].mxu0
        %v1581 = vadd.f32 0.0, %v1580
        %v1582 = vpop.f32.mrb[0].mxu0
        %v1583 = vpop.f32.mrb[0].mxu0
        %v1584 = vadd.f32 0.0, %v1583
        %v1585 = vpop.f32.mrb[0].mxu0
        %1586 = vmatprep.mubr.bf16.mxu0 %v1157
        %1587 = vmatmul.mubr.bf16.gmra.mrb[0].mxu0 %v516
        %v1588 = vpop.f32.mrb[0].mxu0
        %v1589 = vadd.f32 0.0, %v1588
        %v1590 = vpop.f32.mrb[0].mxu0
        %v1591 = vpop.f32.mrb[0].mxu0
        %v1592 = vadd.f32 0.0, %v1591
        %v1593 = vpop.f32.mrb[0].mxu0
        %1594 = vdwg.mxu0
        %v1595 = vmax.f32 %v1194, %v1196
        %v1596 = vmax.f32 %v1595, %v1307
        %v1597 = vmax.f32 %v1596, %v1309
        %v1598 = vmax.f32 %v1597, %v1420
        %v1599 = vmax.f32 %v1598, %v1422
        %v1600 = vmax.f32 %v1599, %v1533
        %v1601 = vmax.f32 %v1198, %v1200
        %v1602 = vmax.f32 %v1601, %v1311
        %v1603 = vmax.f32 %v1602, %v1313
        %v1604 = vmax.f32 %v1603, %v1424
        %v1605 = vmax.f32 %v1604, %v1426
        %v1606 = vmax.f32 %v1605, %v1536
        %v1607 = vmax.f32 %v1204, %v1206
        %v1608 = vmax.f32 %v1607, %v1317
        %v1609 = vmax.f32 %v1608, %v1319
        %v1610 = vmax.f32 %v1609, %v1430
        %v1611 = vmax.f32 %v1610, %v1432
        %v1612 = vmax.f32 %v1611, %v1541
        %v1613 = vmax.f32 %v1208, %v1210
        %v1614 = vmax.f32 %v1613, %v1321
        %v1615 = vmax.f32 %v1614, %v1323
        %v1616 = vmax.f32 %v1615, %v1434
        %v1617 = vmax.f32 %v1616, %v1436
        %v1618 = vmax.f32 %v1617, %v1544
        %v1619 = vmax.f32 %v1214, %v1216
        %v1620 = vmax.f32 %v1619, %v1327
        %v1621 = vmax.f32 %v1620, %v1329
        %v1622 = vmax.f32 %v1621, %v1440
        %v1623 = vmax.f32 %v1622, %v1442
        %v1624 = vmax.f32 %v1623, %v1549
        %v1625 = vmax.f32 %v1218, %v1220
        %v1626 = vmax.f32 %v1625, %v1331
        %v1627 = vmax.f32 %v1626, %v1333
        %v1628 = vmax.f32 %v1627, %v1444
        %v1629 = vmax.f32 %v1628, %v1446
        %v1630 = vmax.f32 %v1629, %v1552
        %v1631 = vmax.f32 %v1224, %v1226
        %v1632 = vmax.f32 %v1631, %v1337
        %v1633 = vmax.f32 %v1632, %v1339
        %v1634 = vmax.f32 %v1633, %v1450
        %v1635 = vmax.f32 %v1634, %v1452
        %v1636 = vmax.f32 %v1635, %v1557
        %v1637 = vmax.f32 %v1228, %v1230
        %v1638 = vmax.f32 %v1637, %v1341
        %v1639 = vmax.f32 %v1638, %v1343
        %v1640 = vmax.f32 %v1639, %v1454
        %v1641 = vmax.f32 %v1640, %v1456
        %v1642 = vmax.f32 %v1641, %v1560
        %v1643 = vmax.f32 %v1234, %v1236
        %v1644 = vmax.f32 %v1643, %v1347
        %v1645 = vmax.f32 %v1644, %v1349
        %v1646 = vmax.f32 %v1645, %v1460
        %v1647 = vmax.f32 %v1646, %v1462
        %v1648 = vmax.f32 %v1647, %v1565
        %v1649 = vmax.f32 %v1238, %v1240
        %v1650 = vmax.f32 %v1649, %v1351
        %v1651 = vmax.f32 %v1650, %v1353
        %v1652 = vmax.f32 %v1651, %v1464
        %v1653 = vmax.f32 %v1652, %v1466
        %v1654 = vmax.f32 %v1653, %v1568
        %v1655 = vmax.f32 %v1244, %v1246
        %v1656 = vmax.f32 %v1655, %v1357
        %v1657 = vmax.f32 %v1656, %v1359
        %v1658 = vmax.f32 %v1657, %v1470
        %v1659 = vmax.f32 %v1658, %v1472
        %v1660 = vmax.f32 %v1659, %v1573
        %v1661 = vmax.f32 %v1248, %v1250
        %v1662 = vmax.f32 %v1661, %v1361
        %v1663 = vmax.f32 %v1662, %v1363
        %v1664 = vmax.f32 %v1663, %v1474
        %v1665 = vmax.f32 %v1664, %v1476
        %v1666 = vmax.f32 %v1665, %v1576
        %v1667 = vmax.f32 %v1254, %v1256
        %v1668 = vmax.f32 %v1667, %v1367
        %v1669 = vmax.f32 %v1668, %v1369
        %v1670 = vmax.f32 %v1669, %v1480
        %v1671 = vmax.f32 %v1670, %v1482
        %v1672 = vmax.f32 %v1671, %v1581
        %v1673 = vmax.f32 %v1258, %v1260
        %v1674 = vmax.f32 %v1673, %v1371
        %v1675 = vmax.f32 %v1674, %v1373
        %v1676 = vmax.f32 %v1675, %v1484
        %v1677 = vmax.f32 %v1676, %v1486
        %v1678 = vmax.f32 %v1677, %v1584
        %v1679 = vmax.f32 %v1264, %v1266
        %v1680 = vmax.f32 %v1679, %v1377
        %v1681 = vmax.f32 %v1680, %v1379
        %v1682 = vmax.f32 %v1681, %v1490
        %v1683 = vmax.f32 %v1682, %v1492
        %v1684 = vmax.f32 %v1683, %v1589
        %v1685 = vmax.f32 %v1268, %v1270
        %v1686 = vmax.f32 %v1685, %v1381
        %v1687 = vmax.f32 %v1686, %v1383
        %v1688 = vmax.f32 %v1687, %v1494
        %v1689 = vmax.f32 %v1688, %v1496
        %v1690 = vmax.f32 %v1689, %v1592
        %v1691 = vsub.f32 %v1194, %v1600
        %v1692 = vsub.f32 %v1198, %v1606
        %v1693 = vsub.f32 %v1204, %v1612
        %v1694 = vsub.f32 %v1208, %v1618
        %v1695 = vsub.f32 %v1214, %v1624
        %v1696 = vsub.f32 %v1218, %v1630
        %v1697 = vsub.f32 %v1224, %v1636
        %v1698 = vsub.f32 %v1228, %v1642
        %v1699 = vsub.f32 %v1234, %v1648
        %v1700 = vsub.f32 %v1238, %v1654
        %v1701 = vsub.f32 %v1244, %v1660
        %v1702 = vsub.f32 %v1248, %v1666
        %v1703 = vsub.f32 %v1254, %v1672
        %v1704 = vsub.f32 %v1258, %v1678
        %v1705 = vsub.f32 %v1264, %v1684
        %v1706 = vsub.f32 %v1268, %v1690
        %v1707 = vsub.f32 %v1196, %v1600
        %v1708 = vsub.f32 %v1200, %v1606
        %v1709 = vsub.f32 %v1206, %v1612
        %v1710 = vsub.f32 %v1210, %v1618
        %v1711 = vsub.f32 %v1216, %v1624
        %v1712 = vsub.f32 %v1220, %v1630
        %v1713 = vsub.f32 %v1226, %v1636
        %v1714 = vsub.f32 %v1230, %v1642
        %v1715 = vsub.f32 %v1236, %v1648
        %v1716 = vsub.f32 %v1240, %v1654
        %v1717 = vsub.f32 %v1246, %v1660
        %v1718 = vsub.f32 %v1250, %v1666
        %v1719 = vsub.f32 %v1256, %v1672
        %v1720 = vsub.f32 %v1260, %v1678
        %v1721 = vsub.f32 %v1266, %v1684
        %v1722 = vsub.f32 %v1270, %v1690
        %v1723 = vsub.f32 %v1307, %v1600
        %v1724 = vsub.f32 %v1311, %v1606
        %v1725 = vsub.f32 %v1317, %v1612
        %v1726 = vsub.f32 %v1321, %v1618
        %v1727 = vsub.f32 %v1327, %v1624
        %v1728 = vsub.f32 %v1331, %v1630
        %v1729 = vsub.f32 %v1337, %v1636
        %v1730 = vsub.f32 %v1341, %v1642
        %v1731 = vsub.f32 %v1347, %v1648
        %v1732 = vsub.f32 %v1351, %v1654
        %v1733 = vsub.f32 %v1357, %v1660
        %v1734 = vsub.f32 %v1361, %v1666
        %v1735 = vsub.f32 %v1367, %v1672
        %v1736 = vsub.f32 %v1371, %v1678
        %v1737 = vsub.f32 %v1377, %v1684
        %v1738 = vsub.f32 %v1381, %v1690
        %v1739 = vsub.f32 %v1309, %v1600
        %v1740 = vsub.f32 %v1313, %v1606
        %v1741 = vsub.f32 %v1319, %v1612
        %v1742 = vsub.f32 %v1323, %v1618
        %v1743 = vsub.f32 %v1329, %v1624
        %v1744 = vsub.f32 %v1333, %v1630
        %v1745 = vsub.f32 %v1339, %v1636
        %v1746 = vsub.f32 %v1343, %v1642
        %v1747 = vsub.f32 %v1349, %v1648
        %v1748 = vsub.f32 %v1353, %v1654
        %v1749 = vsub.f32 %v1359, %v1660
        %v1750 = vsub.f32 %v1363, %v1666
        %v1751 = vsub.f32 %v1369, %v1672
        %v1752 = vsub.f32 %v1373, %v1678
        %v1753 = vsub.f32 %v1379, %v1684
        %v1754 = vsub.f32 %v1383, %v1690
        %v1755 = vsub.f32 %v1420, %v1600
        %v1756 = vsub.f32 %v1424, %v1606
        %v1757 = vsub.f32 %v1430, %v1612
        %v1758 = vsub.f32 %v1434, %v1618
        %v1759 = vsub.f32 %v1440, %v1624
        %v1760 = vsub.f32 %v1444, %v1630
        %v1761 = vsub.f32 %v1450, %v1636
        %v1762 = vsub.f32 %v1454, %v1642
        %v1763 = vsub.f32 %v1460, %v1648
        %v1764 = vsub.f32 %v1464, %v1654
        %v1765 = vsub.f32 %v1470, %v1660
        %v1766 = vsub.f32 %v1474, %v1666
        %v1767 = vsub.f32 %v1480, %v1672
        %v1768 = vsub.f32 %v1484, %v1678
        %v1769 = vsub.f32 %v1490, %v1684
        %v1770 = vsub.f32 %v1494, %v1690
        %v1771 = vsub.f32 %v1422, %v1600
        %v1772 = vsub.f32 %v1426, %v1606
        %v1773 = vsub.f32 %v1432, %v1612
        %v1774 = vsub.f32 %v1436, %v1618
        %v1775 = vsub.f32 %v1442, %v1624
        %v1776 = vsub.f32 %v1446, %v1630
        %v1777 = vsub.f32 %v1452, %v1636
        %v1778 = vsub.f32 %v1456, %v1642
        %v1779 = vsub.f32 %v1462, %v1648
        %v1780 = vsub.f32 %v1466, %v1654
        %v1781 = vsub.f32 %v1472, %v1660
        %v1782 = vsub.f32 %v1476, %v1666
        %v1783 = vsub.f32 %v1482, %v1672
        %v1784 = vsub.f32 %v1486, %v1678
        %v1785 = vsub.f32 %v1492, %v1684
        %v1786 = vsub.f32 %v1496, %v1690
        %v1787 = vsub.f32 %v1533, %v1600
        %v1788 = vsub.f32 %v1536, %v1606
        %v1789 = vsub.f32 %v1541, %v1612
        %v1790 = vsub.f32 %v1544, %v1618
        %v1791 = vsub.f32 %v1549, %v1624
        %v1792 = vsub.f32 %v1552, %v1630
        %v1793 = vsub.f32 %v1557, %v1636
        %v1794 = vsub.f32 %v1560, %v1642
        %v1795 = vsub.f32 %v1565, %v1648
        %v1796 = vsub.f32 %v1568, %v1654
        %v1797 = vsub.f32 %v1573, %v1660
        %v1798 = vsub.f32 %v1576, %v1666
        %v1799 = vsub.f32 %v1581, %v1672
        %v1800 = vsub.f32 %v1584, %v1678
        %v1801 = vsub.f32 %v1589, %v1684
        %v1802 = vsub.f32 %v1592, %v1690
        %v1803 = vmul.f32 %v1691, 1.442695
        %v1804 = vpow.pop %v1803
        %v1805 = vmul.f32 %v1692, 1.442695
        %v1806 = vpow.pop %v1805
        %v1807 = vmul.f32 %v1693, 1.442695
        %v1808 = vpow.pop %v1807
        %v1809 = vmul.f32 %v1694, 1.442695
        %v1810 = vpow.pop %v1809
        %v1811 = vmul.f32 %v1695, 1.442695
        %v1812 = vpow.pop %v1811
        %v1813 = vmul.f32 %v1696, 1.442695
        %v1814 = vpow.pop %v1813
        %v1815 = vmul.f32 %v1697, 1.442695
        %v1816 = vpow.pop %v1815
        %v1817 = vmul.f32 %v1698, 1.442695
        %v1818 = vpow.pop %v1817
        %v1819 = vmul.f32 %v1699, 1.442695
        %v1820 = vpow.pop %v1819
        %v1821 = vmul.f32 %v1700, 1.442695
        %v1822 = vpow.pop %v1821
        %v1823 = vmul.f32 %v1701, 1.442695
        %v1824 = vpow.pop %v1823
        %v1825 = vmul.f32 %v1702, 1.442695
        %v1826 = vpow.pop %v1825
        %v1827 = vmul.f32 %v1703, 1.442695
        %v1828 = vpow.pop %v1827
        %v1829 = vmul.f32 %v1704, 1.442695
        %v1830 = vpow.pop %v1829
        %v1831 = vmul.f32 %v1705, 1.442695
        %v1832 = vpow.pop %v1831
        %v1833 = vmul.f32 %v1706, 1.442695
        %v1834 = vpow.pop %v1833
        %v1835 = vmul.f32 %v1707, 1.442695
        %v1836 = vpow.pop %v1835
        %v1837 = vmul.f32 %v1708, 1.442695
        %v1838 = vpow.pop %v1837
        %v1839 = vmul.f32 %v1709, 1.442695
        %v1840 = vpow.pop %v1839
        %v1841 = vmul.f32 %v1710, 1.442695
        %v1842 = vpow.pop %v1841
        %v1843 = vmul.f32 %v1711, 1.442695
        %v1844 = vpow.pop %v1843
        %v1845 = vmul.f32 %v1712, 1.442695
        %v1846 = vpow.pop %v1845
        %v1847 = vmul.f32 %v1713, 1.442695
        %v1848 = vpow.pop %v1847
        %v1849 = vmul.f32 %v1714, 1.442695
        %v1850 = vpow.pop %v1849
        %v1851 = vmul.f32 %v1715, 1.442695
        %v1852 = vpow.pop %v1851
        %v1853 = vmul.f32 %v1716, 1.442695
        %v1854 = vpow.pop %v1853
        %v1855 = vmul.f32 %v1717, 1.442695
        %v1856 = vpow.pop %v1855
        %v1857 = vmul.f32 %v1718, 1.442695
        %v1858 = vpow.pop %v1857
        %v1859 = vmul.f32 %v1719, 1.442695
        %v1860 = vpow.pop %v1859
        %v1861 = vmul.f32 %v1720, 1.442695
        %v1862 = vpow.pop %v1861
        %v1863 = vmul.f32 %v1721, 1.442695
        %v1864 = vpow.pop %v1863
        %v1865 = vmul.f32 %v1722, 1.442695
        %v1866 = vpow.pop %v1865
        %v1867 = vmul.f32 %v1723, 1.442695
        %v1868 = vpow.pop %v1867
        %v1869 = vmul.f32 %v1724, 1.442695
        %v1870 = vpow.pop %v1869
        %v1871 = vmul.f32 %v1725, 1.442695
        %v1872 = vpow.pop %v1871
        %v1873 = vmul.f32 %v1726, 1.442695
        %v1874 = vpow.pop %v1873
        %v1875 = vmul.f32 %v1727, 1.442695
        %v1876 = vpow.pop %v1875
        %v1877 = vmul.f32 %v1728, 1.442695
        %v1878 = vpow.pop %v1877
        %v1879 = vmul.f32 %v1729, 1.442695
        %v1880 = vpow.pop %v1879
        %v1881 = vmul.f32 %v1730, 1.442695
        %v1882 = vpow.pop %v1881
        %v1883 = vmul.f32 %v1731, 1.442695
        %v1884 = vpow.pop %v1883
        %v1885 = vmul.f32 %v1732, 1.442695
        %v1886 = vpow.pop %v1885
        %v1887 = vmul.f32 %v1733, 1.442695
        %v1888 = vpow.pop %v1887
        %v1889 = vmul.f32 %v1734, 1.442695
        %v1890 = vpow.pop %v1889
        %v1891 = vmul.f32 %v1735, 1.442695
        %v1892 = vpow.pop %v1891
        %v1893 = vmul.f32 %v1736, 1.442695
        %v1894 = vpow.pop %v1893
        %v1895 = vmul.f32 %v1737, 1.442695
        %v1896 = vpow.pop %v1895
        %v1897 = vmul.f32 %v1738, 1.442695
        %v1898 = vpow.pop %v1897
        %v1899 = vmul.f32 %v1739, 1.442695
        %v1900 = vpow.pop %v1899
        %v1901 = vmul.f32 %v1740, 1.442695
        %v1902 = vpow.pop %v1901
        %v1903 = vmul.f32 %v1741, 1.442695
        %v1904 = vpow.pop %v1903
        %v1905 = vmul.f32 %v1742, 1.442695
        %v1906 = vpow.pop %v1905
        %v1907 = vmul.f32 %v1743, 1.442695
        %v1908 = vpow.pop %v1907
        %v1909 = vmul.f32 %v1744, 1.442695
        %v1910 = vpow.pop %v1909
        %v1911 = vmul.f32 %v1745, 1.442695
        %v1912 = vpow.pop %v1911
        %v1913 = vmul.f32 %v1746, 1.442695
        %v1914 = vpow.pop %v1913
        %v1915 = vmul.f32 %v1747, 1.442695
        %v1916 = vpow.pop %v1915
        %v1917 = vmul.f32 %v1748, 1.442695
        %v1918 = vpow.pop %v1917
        %v1919 = vmul.f32 %v1749, 1.442695
        %v1920 = vpow.pop %v1919
        %v1921 = vmul.f32 %v1750, 1.442695
        %v1922 = vpow.pop %v1921
        %v1923 = vmul.f32 %v1751, 1.442695
        %v1924 = vpow.pop %v1923
        %v1925 = vmul.f32 %v1752, 1.442695
        %v1926 = vpow.pop %v1925
        %v1927 = vmul.f32 %v1753, 1.442695
        %v1928 = vpow.pop %v1927
        %v1929 = vmul.f32 %v1754, 1.442695
        %v1930 = vpow.pop %v1929
        %v1931 = vmul.f32 %v1755, 1.442695
        %v1932 = vpow.pop %v1931
        %v1933 = vmul.f32 %v1756, 1.442695
        %v1934 = vpow.pop %v1933
        %v1935 = vmul.f32 %v1757, 1.442695
        %v1936 = vpow.pop %v1935
        %v1937 = vmul.f32 %v1758, 1.442695
        %v1938 = vpow.pop %v1937
        %v1939 = vmul.f32 %v1759, 1.442695
        %v1940 = vpow.pop %v1939
        %v1941 = vmul.f32 %v1760, 1.442695
        %v1942 = vpow.pop %v1941
        %v1943 = vmul.f32 %v1761, 1.442695
        %v1944 = vpow.pop %v1943
        %v1945 = vmul.f32 %v1762, 1.442695
        %v1946 = vpow.pop %v1945
        %v1947 = vmul.f32 %v1763, 1.442695
        %v1948 = vpow.pop %v1947
        %v1949 = vmul.f32 %v1764, 1.442695
        %v1950 = vpow.pop %v1949
        %v1951 = vmul.f32 %v1765, 1.442695
        %v1952 = vpow.pop %v1951
        %v1953 = vmul.f32 %v1766, 1.442695
        %v1954 = vpow.pop %v1953
        %v1955 = vmul.f32 %v1767, 1.442695
        %v1956 = vpow.pop %v1955
        %v1957 = vmul.f32 %v1768, 1.442695
        %v1958 = vpow.pop %v1957
        %v1959 = vmul.f32 %v1769, 1.442695
        %v1960 = vpow.pop %v1959
        %v1961 = vmul.f32 %v1770, 1.442695
        %v1962 = vpow.pop %v1961
        %v1963 = vmul.f32 %v1771, 1.442695
        %v1964 = vpow.pop %v1963
        %v1965 = vmul.f32 %v1772, 1.442695
        %v1966 = vpow.pop %v1965
        %v1967 = vmul.f32 %v1773, 1.442695
        %v1968 = vpow.pop %v1967
        %v1969 = vmul.f32 %v1774, 1.442695
        %v1970 = vpow.pop %v1969
        %v1971 = vmul.f32 %v1775, 1.442695
        %v1972 = vpow.pop %v1971
        %v1973 = vmul.f32 %v1776, 1.442695
        %v1974 = vpow.pop %v1973
        %v1975 = vmul.f32 %v1777, 1.442695
        %v1976 = vpow.pop %v1975
        %v1977 = vmul.f32 %v1778, 1.442695
        %v1978 = vpow.pop %v1977
        %v1979 = vmul.f32 %v1779, 1.442695
        %v1980 = vpow.pop %v1979
        %v1981 = vmul.f32 %v1780, 1.442695
        %v1982 = vpow.pop %v1981
        %v1983 = vmul.f32 %v1781, 1.442695
        %v1984 = vpow.pop %v1983
        %v1985 = vmul.f32 %v1782, 1.442695
        %v1986 = vpow.pop %v1985
        %v1987 = vmul.f32 %v1783, 1.442695
        %v1988 = vpow.pop %v1987
        %v1989 = vmul.f32 %v1784, 1.442695
        %v1990 = vpow.pop %v1989
        %v1991 = vmul.f32 %v1785, 1.442695
        %v1992 = vpow.pop %v1991
        %v1993 = vmul.f32 %v1786, 1.442695
        %v1994 = vpow.pop %v1993
        %v1995 = vmul.f32 %v1787, 1.442695
        %v1996 = vpow.pop %v1995
        %v1997 = vmul.f32 %v1788, 1.442695
        %v1998 = vpow.pop %v1997
        %v1999 = vmul.f32 %v1789, 1.442695
        %v2000 = vpow.pop %v1999
        %v2001 = vmul.f32 %v1790, 1.442695
        %v2002 = vpow.pop %v2001
        %v2003 = vmul.f32 %v1791, 1.442695
        %v2004 = vpow.pop %v2003
        %v2005 = vmul.f32 %v1792, 1.442695
        %v2006 = vpow.pop %v2005
        %v2007 = vmul.f32 %v1793, 1.442695
        %v2008 = vpow.pop %v2007
        %v2009 = vmul.f32 %v1794, 1.442695
        %v2010 = vpow.pop %v2009
        %v2011 = vmul.f32 %v1795, 1.442695
        %v2012 = vpow.pop %v2011
        %v2013 = vmul.f32 %v1796, 1.442695
        %v2014 = vpow.pop %v2013
        %v2015 = vmul.f32 %v1797, 1.442695
        %v2016 = vpow.pop %v2015
        %v2017 = vmul.f32 %v1798, 1.442695
        %v2018 = vpow.pop %v2017
        %v2019 = vmul.f32 %v1799, 1.442695
        %v2020 = vpow.pop %v2019
        %v2021 = vmul.f32 %v1800, 1.442695
        %v2022 = vpow.pop %v2021
        %v2023 = vmul.f32 %v1801, 1.442695
        %v2024 = vpow.pop %v2023
        %v2025 = vmul.f32 %v1802, 1.442695
        %v2026 = vpow.pop %v2025
        %v2027 = vadd.f32 %v1804, %v1836
        %v2028 = vadd.f32 %v2027, %v1868
        %v2029 = vadd.f32 %v2028, %v1900
        %v2030 = vadd.f32 %v2029, %v1932
        %v2031 = vadd.f32 %v2030, %v1964
        %v2032 = vadd.f32 %v2031, %v1996
        %v2033 = vadd.f32 %v1806, %v1838
        %v2034 = vadd.f32 %v2033, %v1870
        %v2035 = vadd.f32 %v2034, %v1902
        %v2036 = vadd.f32 %v2035, %v1934
        %v2037 = vadd.f32 %v2036, %v1966
        %v2038 = vadd.f32 %v2037, %v1998
        %v2039 = vadd.f32 %v1808, %v1840
        %v2040 = vadd.f32 %v2039, %v1872
        %v2041 = vadd.f32 %v2040, %v1904
        %v2042 = vadd.f32 %v2041, %v1936
        %v2043 = vadd.f32 %v2042, %v1968
        %v2044 = vadd.f32 %v2043, %v2000
        %v2045 = vadd.f32 %v1810, %v1842
        %v2046 = vadd.f32 %v2045, %v1874
        %v2047 = vadd.f32 %v2046, %v1906
        %v2048 = vadd.f32 %v2047, %v1938
        %v2049 = vadd.f32 %v2048, %v1970
        %v2050 = vadd.f32 %v2049, %v2002
        %v2051 = vadd.f32 %v1812, %v1844
        %v2052 = vadd.f32 %v2051, %v1876
        %v2053 = vadd.f32 %v2052, %v1908
        %v2054 = vadd.f32 %v2053, %v1940
        %v2055 = vadd.f32 %v2054, %v1972
        %v2056 = vadd.f32 %v2055, %v2004
        %v2057 = vadd.f32 %v1814, %v1846
        %v2058 = vadd.f32 %v2057, %v1878
        %v2059 = vadd.f32 %v2058, %v1910
        %v2060 = vadd.f32 %v2059, %v1942
        %v2061 = vadd.f32 %v2060, %v1974
        %v2062 = vadd.f32 %v2061, %v2006
        %v2063 = vadd.f32 %v1816, %v1848
        %v2064 = vadd.f32 %v2063, %v1880
        %v2065 = vadd.f32 %v2064, %v1912
        %v2066 = vadd.f32 %v2065, %v1944
        %v2067 = vadd.f32 %v2066, %v1976
        %v2068 = vadd.f32 %v2067, %v2008
        %v2069 = vadd.f32 %v1818, %v1850
        %v2070 = vadd.f32 %v2069, %v1882
        %v2071 = vadd.f32 %v2070, %v1914
        %v2072 = vadd.f32 %v2071, %v1946
        %v2073 = vadd.f32 %v2072, %v1978
        %v2074 = vadd.f32 %v2073, %v2010
        %v2075 = vadd.f32 %v1820, %v1852
        %v2076 = vadd.f32 %v2075, %v1884
        %v2077 = vadd.f32 %v2076, %v1916
        %v2078 = vadd.f32 %v2077, %v1948
        %v2079 = vadd.f32 %v2078, %v1980
        %v2080 = vadd.f32 %v2079, %v2012
        %v2081 = vadd.f32 %v1822, %v1854
        %v2082 = vadd.f32 %v2081, %v1886
        %v2083 = vadd.f32 %v2082, %v1918
        %v2084 = vadd.f32 %v2083, %v1950
        %v2085 = vadd.f32 %v2084, %v1982
        %v2086 = vadd.f32 %v2085, %v2014
        %v2087 = vadd.f32 %v1824, %v1856
        %v2088 = vadd.f32 %v2087, %v1888
        %v2089 = vadd.f32 %v2088, %v1920
        %v2090 = vadd.f32 %v2089, %v1952
        %v2091 = vadd.f32 %v2090, %v1984
        %v2092 = vadd.f32 %v2091, %v2016
        %v2093 = vadd.f32 %v1826, %v1858
        %v2094 = vadd.f32 %v2093, %v1890
        %v2095 = vadd.f32 %v2094, %v1922
        %v2096 = vadd.f32 %v2095, %v1954
        %v2097 = vadd.f32 %v2096, %v1986
        %v2098 = vadd.f32 %v2097, %v2018
        %v2099 = vadd.f32 %v1828, %v1860
        %v2100 = vadd.f32 %v2099, %v1892
        %v2101 = vadd.f32 %v2100, %v1924
        %v2102 = vadd.f32 %v2101, %v1956
        %v2103 = vadd.f32 %v2102, %v1988
        %v2104 = vadd.f32 %v2103, %v2020
        %v2105 = vadd.f32 %v1830, %v1862
        %v2106 = vadd.f32 %v2105, %v1894
        %v2107 = vadd.f32 %v2106, %v1926
        %v2108 = vadd.f32 %v2107, %v1958
        %v2109 = vadd.f32 %v2108, %v1990
        %v2110 = vadd.f32 %v2109, %v2022
        %v2111 = vadd.f32 %v1832, %v1864
        %v2112 = vadd.f32 %v2111, %v1896
        %v2113 = vadd.f32 %v2112, %v1928
        %v2114 = vadd.f32 %v2113, %v1960
        %v2115 = vadd.f32 %v2114, %v1992
        %v2116 = vadd.f32 %v2115, %v2024
        %v2117 = vadd.f32 %v1834, %v1866
        %v2118 = vadd.f32 %v2117, %v1898
        %v2119 = vadd.f32 %v2118, %v1930
        %v2120 = vadd.f32 %v2119, %v1962
        %v2121 = vadd.f32 %v2120, %v1994
        %v2122 = vadd.f32 %v2121, %v2026
        %v2123 = vrcp.pop %v2032
        %v2124 = vmul.f32 %v1804, %v2123
        %v2125 = vrcp.pop %v2038
        %v2126 = vmul.f32 %v1806, %v2125
        %v2127 = vrcp.pop %v2044
        %v2128 = vmul.f32 %v1808, %v2127
        %v2129 = vrcp.pop %v2050
        %v2130 = vmul.f32 %v1810, %v2129
        %v2131 = vrcp.pop %v2056
        %v2132 = vmul.f32 %v1812, %v2131
        %v2133 = vrcp.pop %v2062
        %v2134 = vmul.f32 %v1814, %v2133
        %v2135 = vrcp.pop %v2068
        %v2136 = vmul.f32 %v1816, %v2135
        %v2137 = vrcp.pop %v2074
        %v2138 = vmul.f32 %v1818, %v2137
        %v2139 = vrcp.pop %v2080
        %v2140 = vmul.f32 %v1820, %v2139
        %v2141 = vrcp.pop %v2086
        %v2142 = vmul.f32 %v1822, %v2141
        %v2143 = vrcp.pop %v2092
        %v2144 = vmul.f32 %v1824, %v2143
        %v2145 = vrcp.pop %v2098
        %v2146 = vmul.f32 %v1826, %v2145
        %v2147 = vrcp.pop %v2104
        %v2148 = vmul.f32 %v1828, %v2147
        %v2149 = vrcp.pop %v2110
        %v2150 = vmul.f32 %v1830, %v2149
        %v2151 = vrcp.pop %v2116
        %v2152 = vmul.f32 %v1832, %v2151
        %v2153 = vrcp.pop %v2122
        %v2154 = vmul.f32 %v1834, %v2153
        %v2155 = vmul.f32 %v1836, %v2123
        %v2156 = vmul.f32 %v1838, %v2125
        %v2157 = vmul.f32 %v1840, %v2127
        %v2158 = vmul.f32 %v1842, %v2129
        %v2159 = vmul.f32 %v1844, %v2131
        %v2160 = vmul.f32 %v1846, %v2133
        %v2161 = vmul.f32 %v1848, %v2135
        %v2162 = vmul.f32 %v1850, %v2137
        %v2163 = vmul.f32 %v1852, %v2139
        %v2164 = vmul.f32 %v1854, %v2141
        %v2165 = vmul.f32 %v1856, %v2143
        %v2166 = vmul.f32 %v1858, %v2145
        %v2167 = vmul.f32 %v1860, %v2147
        %v2168 = vmul.f32 %v1862, %v2149
        %v2169 = vmul.f32 %v1864, %v2151
        %v2170 = vmul.f32 %v1866, %v2153
        %v2171 = vmul.f32 %v1868, %v2123
        %v2172 = vmul.f32 %v1870, %v2125
        %v2173 = vmul.f32 %v1872, %v2127
        %v2174 = vmul.f32 %v1874, %v2129
        %v2175 = vmul.f32 %v1876, %v2131
        %v2176 = vmul.f32 %v1878, %v2133
        %v2177 = vmul.f32 %v1880, %v2135
        %v2178 = vmul.f32 %v1882, %v2137
        %v2179 = vmul.f32 %v1884, %v2139
        %v2180 = vmul.f32 %v1886, %v2141
        %v2181 = vmul.f32 %v1888, %v2143
        %v2182 = vmul.f32 %v1890, %v2145
        %v2183 = vmul.f32 %v1892, %v2147
        %v2184 = vmul.f32 %v1894, %v2149
        %v2185 = vmul.f32 %v1896, %v2151
        %v2186 = vmul.f32 %v1898, %v2153
        %v2187 = vmul.f32 %v1900, %v2123
        %v2188 = vmul.f32 %v1902, %v2125
        %v2189 = vmul.f32 %v1904, %v2127
        %v2190 = vmul.f32 %v1906, %v2129
        %v2191 = vmul.f32 %v1908, %v2131
        %v2192 = vmul.f32 %v1910, %v2133
        %v2193 = vmul.f32 %v1912, %v2135
        %v2194 = vmul.f32 %v1914, %v2137
        %v2195 = vmul.f32 %v1916, %v2139
        %v2196 = vmul.f32 %v1918, %v2141
        %v2197 = vmul.f32 %v1920, %v2143
        %v2198 = vmul.f32 %v1922, %v2145
        %v2199 = vmul.f32 %v1924, %v2147
        %v2200 = vmul.f32 %v1926, %v2149
        %v2201 = vmul.f32 %v1928, %v2151
        %v2202 = vmul.f32 %v1930, %v2153
        %v2203 = vmul.f32 %v1932, %v2123
        %v2204 = vmul.f32 %v1934, %v2125
        %v2205 = vmul.f32 %v1936, %v2127
        %v2206 = vmul.f32 %v1938, %v2129
        %v2207 = vmul.f32 %v1940, %v2131
        %v2208 = vmul.f32 %v1942, %v2133
        %v2209 = vmul.f32 %v1944, %v2135
        %v2210 = vmul.f32 %v1946, %v2137
        %v2211 = vmul.f32 %v1948, %v2139
        %v2212 = vmul.f32 %v1950, %v2141
        %v2213 = vmul.f32 %v1952, %v2143
        %v2214 = vmul.f32 %v1954, %v2145
        %v2215 = vmul.f32 %v1956, %v2147
        %v2216 = vmul.f32 %v1958, %v2149
        %v2217 = vmul.f32 %v1960, %v2151
        %v2218 = vmul.f32 %v1962, %v2153
        %v2219 = vmul.f32 %v1964, %v2123
        %v2220 = vmul.f32 %v1966, %v2125
        %v2221 = vmul.f32 %v1968, %v2127
        %v2222 = vmul.f32 %v1970, %v2129
        %v2223 = vmul.f32 %v1972, %v2131
        %v2224 = vmul.f32 %v1974, %v2133
        %v2225 = vmul.f32 %v1976, %v2135
        %v2226 = vmul.f32 %v1978, %v2137
        %v2227 = vmul.f32 %v1980, %v2139
        %v2228 = vmul.f32 %v1982, %v2141
        %v2229 = vmul.f32 %v1984, %v2143
        %v2230 = vmul.f32 %v1986, %v2145
        %v2231 = vmul.f32 %v1988, %v2147
        %v2232 = vmul.f32 %v1990, %v2149
        %v2233 = vmul.f32 %v1992, %v2151
        %v2234 = vmul.f32 %v1994, %v2153
        %v2235 = vmul.f32 %v1996, %v2123
        %v2236 = vmul.f32 %v1998, %v2125
        %v2237 = vmul.f32 %v2000, %v2127
        %v2238 = vmul.f32 %v2002, %v2129
        %v2239 = vmul.f32 %v2004, %v2131
        %v2240 = vmul.f32 %v2006, %v2133
        %v2241 = vmul.f32 %v2008, %v2135
        %v2242 = vmul.f32 %v2010, %v2137
        %v2243 = vmul.f32 %v2012, %v2139
        %v2244 = vmul.f32 %v2014, %v2141
        %v2245 = vmul.f32 %v2016, %v2143
        %v2246 = vmul.f32 %v2018, %v2145
        %v2247 = vmul.f32 %v2020, %v2147
        %v2248 = vmul.f32 %v2022, %v2149
        %v2249 = vmul.f32 %v2024, %v2151
        %v2250 = vmul.f32 %v2026, %v2153
        %v2251 = vld [vmem:[%s259] sm:$0xff]
        %v2252 = vld [vmem:[%s259 + $0x8] sm:$0xff]
        %v2253 = vld [vmem:[%s259 + $0x10] sm:$0xff]
        %v2254 = vld [vmem:[%s259 + $0x18] sm:$0xff]
        %v2255 = vld [vmem:[%s259 + $0x20] sm:$0xff]
        %v2256 = vld [vmem:[%s259 + $0x28] sm:$0xff]
        %v2257 = vld [vmem:[%s259 + $0x30] sm:$0xff]
        %v2258 = vld [vmem:[%s259 + $0x38] sm:$0xff]
        %v2259 = vld [vmem:[%s259 + $0x40] sm:$0xff]
        %v2260 = vld [vmem:[%s259 + $0x48] sm:$0xff]
        %v2261 = vld [vmem:[%s259 + $0x50] sm:$0xff]
        %v2262 = vld [vmem:[%s259 + $0x58] sm:$0xff]
        %v2263 = vld [vmem:[%s259 + $0x60] sm:$0xff]
        %v2264 = vld [vmem:[%s259 + $0x68] sm:$0xff]
        %v2265 = vld [vmem:[%s259 + $0x70] sm:$0xff]
        %v2266 = vld [vmem:[%s259 + $0x78] sm:$0xff]
        %vm2267 = vcmp.eq.s32.totalorder %v2251, 0
        %vm2268 = vcmp.eq.s32.totalorder %v2252, 0
        %vm2269 = vcmp.eq.s32.totalorder %v2253, 0
        %vm2270 = vcmp.eq.s32.totalorder %v2254, 0
        %vm2271 = vcmp.eq.s32.totalorder %v2255, 0
        %vm2272 = vcmp.eq.s32.totalorder %v2256, 0
        %vm2273 = vcmp.eq.s32.totalorder %v2257, 0
        %vm2274 = vcmp.eq.s32.totalorder %v2258, 0
        %vm2275 = vcmp.eq.s32.totalorder %v2259, 0
        %vm2276 = vcmp.eq.s32.totalorder %v2260, 0
        %vm2277 = vcmp.eq.s32.totalorder %v2261, 0
        %vm2278 = vcmp.eq.s32.totalorder %v2262, 0
        %vm2279 = vcmp.eq.s32.totalorder %v2263, 0
        %vm2280 = vcmp.eq.s32.totalorder %v2264, 0
        %vm2281 = vcmp.eq.s32.totalorder %v2265, 0
        %vm2282 = vcmp.eq.s32.totalorder %v2266, 0
        %vm2283 = vcmp.eq.s32.totalorder %v2251, 1
        %vm2284 = vcmp.eq.s32.totalorder %v2252, 1
        %vm2285 = vcmp.eq.s32.totalorder %v2253, 1
        %vm2286 = vcmp.eq.s32.totalorder %v2254, 1
        %vm2287 = vcmp.eq.s32.totalorder %v2255, 1
        %vm2288 = vcmp.eq.s32.totalorder %v2256, 1
        %vm2289 = vcmp.eq.s32.totalorder %v2257, 1
        %vm2290 = vcmp.eq.s32.totalorder %v2258, 1
        %vm2291 = vcmp.eq.s32.totalorder %v2259, 1
        %vm2292 = vcmp.eq.s32.totalorder %v2260, 1
        %vm2293 = vcmp.eq.s32.totalorder %v2261, 1
        %vm2294 = vcmp.eq.s32.totalorder %v2262, 1
        %vm2295 = vcmp.eq.s32.totalorder %v2263, 1
        %vm2296 = vcmp.eq.s32.totalorder %v2264, 1
        %vm2297 = vcmp.eq.s32.totalorder %v2265, 1
        %vm2298 = vcmp.eq.s32.totalorder %v2266, 1
        %vm2299 = vcmp.eq.s32.totalorder %v2251, 2
        %vm2300 = vcmp.eq.s32.totalorder %v2252, 2
        %vm2301 = vcmp.eq.s32.totalorder %v2253, 2
        %vm2302 = vcmp.eq.s32.totalorder %v2254, 2
        %vm2303 = vcmp.eq.s32.totalorder %v2255, 2
        %vm2304 = vcmp.eq.s32.totalorder %v2256, 2
        %vm2305 = vcmp.eq.s32.totalorder %v2257, 2
        %vm2306 = vcmp.eq.s32.totalorder %v2258, 2
        %vm2307 = vcmp.eq.s32.totalorder %v2259, 2
        %vm2308 = vcmp.eq.s32.totalorder %v2260, 2
        %vm2309 = vcmp.eq.s32.totalorder %v2261, 2
        %vm2310 = vcmp.eq.s32.totalorder %v2262, 2
        %vm2311 = vcmp.eq.s32.totalorder %v2263, 2
        %vm2312 = vcmp.eq.s32.totalorder %v2264, 2
        %vm2313 = vcmp.eq.s32.totalorder %v2265, 2
        %vm2314 = vcmp.eq.s32.totalorder %v2266, 2
        %vm2315 = vcmp.eq.s32.totalorder %v2251, 3
        %vm2316 = vcmp.eq.s32.totalorder %v2252, 3
        %vm2317 = vcmp.eq.s32.totalorder %v2253, 3
        %vm2318 = vcmp.eq.s32.totalorder %v2254, 3
        %vm2319 = vcmp.eq.s32.totalorder %v2255, 3
        %vm2320 = vcmp.eq.s32.totalorder %v2256, 3
        %vm2321 = vcmp.eq.s32.totalorder %v2257, 3
        %vm2322 = vcmp.eq.s32.totalorder %v2258, 3
        %vm2323 = vcmp.eq.s32.totalorder %v2259, 3
        %vm2324 = vcmp.eq.s32.totalorder %v2260, 3
        %vm2325 = vcmp.eq.s32.totalorder %v2261, 3
        %vm2326 = vcmp.eq.s32.totalorder %v2262, 3
        %vm2327 = vcmp.eq.s32.totalorder %v2263, 3
        %vm2328 = vcmp.eq.s32.totalorder %v2264, 3
        %vm2329 = vcmp.eq.s32.totalorder %v2265, 3
        %vm2330 = vcmp.eq.s32.totalorder %v2266, 3
        %vm2331 = vcmp.eq.s32.totalorder %v2251, 4
        %vm2332 = vcmp.eq.s32.totalorder %v2252, 4
        %vm2333 = vcmp.eq.s32.totalorder %v2253, 4
        %vm2334 = vcmp.eq.s32.totalorder %v2254, 4
        %vm2335 = vcmp.eq.s32.totalorder %v2255, 4
        %vm2336 = vcmp.eq.s32.totalorder %v2256, 4
        %vm2337 = vcmp.eq.s32.totalorder %v2257, 4
        %vm2338 = vcmp.eq.s32.totalorder %v2258, 4
        %vm2339 = vcmp.eq.s32.totalorder %v2259, 4
        %vm2340 = vcmp.eq.s32.totalorder %v2260, 4
        %vm2341 = vcmp.eq.s32.totalorder %v2261, 4
        %vm2342 = vcmp.eq.s32.totalorder %v2262, 4
        %vm2343 = vcmp.eq.s32.totalorder %v2263, 4
        %vm2344 = vcmp.eq.s32.totalorder %v2264, 4
        %vm2345 = vcmp.eq.s32.totalorder %v2265, 4
        %vm2346 = vcmp.eq.s32.totalorder %v2266, 4
        %vm2347 = vcmp.eq.s32.totalorder %v2251, 5
        %vm2348 = vcmp.eq.s32.totalorder %v2252, 5
        %vm2349 = vcmp.eq.s32.totalorder %v2253, 5
        %vm2350 = vcmp.eq.s32.totalorder %v2254, 5
        %vm2351 = vcmp.eq.s32.totalorder %v2255, 5
        %vm2352 = vcmp.eq.s32.totalorder %v2256, 5
        %vm2353 = vcmp.eq.s32.totalorder %v2257, 5
        %vm2354 = vcmp.eq.s32.totalorder %v2258, 5
        %vm2355 = vcmp.eq.s32.totalorder %v2259, 5
        %vm2356 = vcmp.eq.s32.totalorder %v2260, 5
        %vm2357 = vcmp.eq.s32.totalorder %v2261, 5
        %vm2358 = vcmp.eq.s32.totalorder %v2262, 5
        %vm2359 = vcmp.eq.s32.totalorder %v2263, 5
        %vm2360 = vcmp.eq.s32.totalorder %v2264, 5
        %vm2361 = vcmp.eq.s32.totalorder %v2265, 5
        %vm2362 = vcmp.eq.s32.totalorder %v2266, 5
        %vm2363 = vcmp.eq.s32.totalorder %v2251, 6
        %vm2364 = vcmp.eq.s32.totalorder %v2252, 6
        %vm2365 = vcmp.eq.s32.totalorder %v2253, 6
        %vm2366 = vcmp.eq.s32.totalorder %v2254, 6
        %vm2367 = vcmp.eq.s32.totalorder %v2255, 6
        %vm2368 = vcmp.eq.s32.totalorder %v2256, 6
        %vm2369 = vcmp.eq.s32.totalorder %v2257, 6
        %vm2370 = vcmp.eq.s32.totalorder %v2258, 6
        %vm2371 = vcmp.eq.s32.totalorder %v2259, 6
        %vm2372 = vcmp.eq.s32.totalorder %v2260, 6
        %vm2373 = vcmp.eq.s32.totalorder %v2261, 6
        %vm2374 = vcmp.eq.s32.totalorder %v2262, 6
        %vm2375 = vcmp.eq.s32.totalorder %v2263, 6
        %vm2376 = vcmp.eq.s32.totalorder %v2264, 6
        %vm2377 = vcmp.eq.s32.totalorder %v2265, 6
        %vm2378 = vcmp.eq.s32.totalorder %v2266, 6
        %v2379 = vsel %vm2267, 1, 0
        %v2380 = vsel %vm2268, 1, 0
        %v2381 = vsel %vm2269, 1, 0
        %v2382 = vsel %vm2270, 1, 0
        %v2383 = vsel %vm2271, 1, 0
        %v2384 = vsel %vm2272, 1, 0
        %v2385 = vsel %vm2273, 1, 0
        %v2386 = vsel %vm2274, 1, 0
        %v2387 = vsel %vm2275, 1, 0
        %v2388 = vsel %vm2276, 1, 0
        %v2389 = vsel %vm2277, 1, 0
        %v2390 = vsel %vm2278, 1, 0
        %v2391 = vsel %vm2279, 1, 0
        %v2392 = vsel %vm2280, 1, 0
        %v2393 = vsel %vm2281, 1, 0
        %v2394 = vsel %vm2282, 1, 0
        %v2395 = vsel %vm2283, 1, 0
        %v2396 = vsel %vm2284, 1, 0
        %v2397 = vsel %vm2285, 1, 0
        %v2398 = vsel %vm2286, 1, 0
        %v2399 = vsel %vm2287, 1, 0
        %v2400 = vsel %vm2288, 1, 0
        %v2401 = vsel %vm2289, 1, 0
        %v2402 = vsel %vm2290, 1, 0
        %v2403 = vsel %vm2291, 1, 0
        %v2404 = vsel %vm2292, 1, 0
        %v2405 = vsel %vm2293, 1, 0
        %v2406 = vsel %vm2294, 1, 0
        %v2407 = vsel %vm2295, 1, 0
        %v2408 = vsel %vm2296, 1, 0
        %v2409 = vsel %vm2297, 1, 0
        %v2410 = vsel %vm2298, 1, 0
        %v2411 = vsel %vm2299, 1, 0
        %v2412 = vsel %vm2300, 1, 0
        %v2413 = vsel %vm2301, 1, 0
        %v2414 = vsel %vm2302, 1, 0
        %v2415 = vsel %vm2303, 1, 0
        %v2416 = vsel %vm2304, 1, 0
        %v2417 = vsel %vm2305, 1, 0
        %v2418 = vsel %vm2306, 1, 0
        %v2419 = vsel %vm2307, 1, 0
        %v2420 = vsel %vm2308, 1, 0
        %v2421 = vsel %vm2309, 1, 0
        %v2422 = vsel %vm2310, 1, 0
        %v2423 = vsel %vm2311, 1, 0
        %v2424 = vsel %vm2312, 1, 0
        %v2425 = vsel %vm2313, 1, 0
        %v2426 = vsel %vm2314, 1, 0
        %v2427 = vsel %vm2315, 1, 0
        %v2428 = vsel %vm2316, 1, 0
        %v2429 = vsel %vm2317, 1, 0
        %v2430 = vsel %vm2318, 1, 0
        %v2431 = vsel %vm2319, 1, 0
        %v2432 = vsel %vm2320, 1, 0
        %v2433 = vsel %vm2321, 1, 0
        %v2434 = vsel %vm2322, 1, 0
        %v2435 = vsel %vm2323, 1, 0
        %v2436 = vsel %vm2324, 1, 0
        %v2437 = vsel %vm2325, 1, 0
        %v2438 = vsel %vm2326, 1, 0
        %v2439 = vsel %vm2327, 1, 0
        %v2440 = vsel %vm2328, 1, 0
        %v2441 = vsel %vm2329, 1, 0
        %v2442 = vsel %vm2330, 1, 0
        %v2443 = vsel %vm2331, 1, 0
        %v2444 = vsel %vm2332, 1, 0
        %v2445 = vsel %vm2333, 1, 0
        %v2446 = vsel %vm2334, 1, 0
        %v2447 = vsel %vm2335, 1, 0
        %v2448 = vsel %vm2336, 1, 0
        %v2449 = vsel %vm2337, 1, 0
        %v2450 = vsel %vm2338, 1, 0
        %v2451 = vsel %vm2339, 1, 0
        %v2452 = vsel %vm2340, 1, 0
        %v2453 = vsel %vm2341, 1, 0
        %v2454 = vsel %vm2342, 1, 0
        %v2455 = vsel %vm2343, 1, 0
        %v2456 = vsel %vm2344, 1, 0
        %v2457 = vsel %vm2345, 1, 0
        %v2458 = vsel %vm2346, 1, 0
        %v2459 = vsel %vm2347, 1, 0
        %v2460 = vsel %vm2348, 1, 0
        %v2461 = vsel %vm2349, 1, 0
        %v2462 = vsel %vm2350, 1, 0
        %v2463 = vsel %vm2351, 1, 0
        %v2464 = vsel %vm2352, 1, 0
        %v2465 = vsel %vm2353, 1, 0
        %v2466 = vsel %vm2354, 1, 0
        %v2467 = vsel %vm2355, 1, 0
        %v2468 = vsel %vm2356, 1, 0
        %v2469 = vsel %vm2357, 1, 0
        %v2470 = vsel %vm2358, 1, 0
        %v2471 = vsel %vm2359, 1, 0
        %v2472 = vsel %vm2360, 1, 0
        %v2473 = vsel %vm2361, 1, 0
        %v2474 = vsel %vm2362, 1, 0
        %v2475 = vsel %vm2363, 1, 0
        %v2476 = vsel %vm2364, 1, 0
        %v2477 = vsel %vm2365, 1, 0
        %v2478 = vsel %vm2366, 1, 0
        %v2479 = vsel %vm2367, 1, 0
        %v2480 = vsel %vm2368, 1, 0
        %v2481 = vsel %vm2369, 1, 0
        %v2482 = vsel %vm2370, 1, 0
        %v2483 = vsel %vm2371, 1, 0
        %v2484 = vsel %vm2372, 1, 0
        %v2485 = vsel %vm2373, 1, 0
        %v2486 = vsel %vm2374, 1, 0
        %v2487 = vsel %vm2375, 1, 0
        %v2488 = vsel %vm2376, 1, 0
        %v2489 = vsel %vm2377, 1, 0
        %v2490 = vsel %vm2378, 1, 0
        %v2491 = vcvt.s32.f32 %v2379
        %v2492 = vcvt.s32.f32 %v2380
        %v2493 = vcvt.s32.f32 %v2381
        %v2494 = vcvt.s32.f32 %v2382
        %v2495 = vcvt.s32.f32 %v2383
        %v2496 = vcvt.s32.f32 %v2384
        %v2497 = vcvt.s32.f32 %v2385
        %v2498 = vcvt.s32.f32 %v2386
        %v2499 = vcvt.s32.f32 %v2387
        %v2500 = vcvt.s32.f32 %v2388
        %v2501 = vcvt.s32.f32 %v2389
        %v2502 = vcvt.s32.f32 %v2390
        %v2503 = vcvt.s32.f32 %v2391
        %v2504 = vcvt.s32.f32 %v2392
        %v2505 = vcvt.s32.f32 %v2393
        %v2506 = vcvt.s32.f32 %v2394
        %v2507 = vcvt.s32.f32 %v2395
        %v2508 = vcvt.s32.f32 %v2396
        %v2509 = vcvt.s32.f32 %v2397
        %v2510 = vcvt.s32.f32 %v2398
        %v2511 = vcvt.s32.f32 %v2399
        %v2512 = vcvt.s32.f32 %v2400
        %v2513 = vcvt.s32.f32 %v2401
        %v2514 = vcvt.s32.f32 %v2402
        %v2515 = vcvt.s32.f32 %v2403
        %v2516 = vcvt.s32.f32 %v2404
        %v2517 = vcvt.s32.f32 %v2405
        %v2518 = vcvt.s32.f32 %v2406
        %v2519 = vcvt.s32.f32 %v2407
        %v2520 = vcvt.s32.f32 %v2408
        %v2521 = vcvt.s32.f32 %v2409
        %v2522 = vcvt.s32.f32 %v2410
        %v2523 = vcvt.s32.f32 %v2411
        %v2524 = vcvt.s32.f32 %v2412
        %v2525 = vcvt.s32.f32 %v2413
        %v2526 = vcvt.s32.f32 %v2414
        %v2527 = vcvt.s32.f32 %v2415
        %v2528 = vcvt.s32.f32 %v2416
        %v2529 = vcvt.s32.f32 %v2417
        %v2530 = vcvt.s32.f32 %v2418
        %v2531 = vcvt.s32.f32 %v2419
        %v2532 = vcvt.s32.f32 %v2420
        %v2533 = vcvt.s32.f32 %v2421
        %v2534 = vcvt.s32.f32 %v2422
        %v2535 = vcvt.s32.f32 %v2423
        %v2536 = vcvt.s32.f32 %v2424
        %v2537 = vcvt.s32.f32 %v2425
        %v2538 = vcvt.s32.f32 %v2426
        %v2539 = vcvt.s32.f32 %v2427
        %v2540 = vcvt.s32.f32 %v2428
        %v2541 = vcvt.s32.f32 %v2429
        %v2542 = vcvt.s32.f32 %v2430
        %v2543 = vcvt.s32.f32 %v2431
        %v2544 = vcvt.s32.f32 %v2432
        %v2545 = vcvt.s32.f32 %v2433
        %v2546 = vcvt.s32.f32 %v2434
        %v2547 = vcvt.s32.f32 %v2435
        %v2548 = vcvt.s32.f32 %v2436
        %v2549 = vcvt.s32.f32 %v2437
        %v2550 = vcvt.s32.f32 %v2438
        %v2551 = vcvt.s32.f32 %v2439
        %v2552 = vcvt.s32.f32 %v2440
        %v2553 = vcvt.s32.f32 %v2441
        %v2554 = vcvt.s32.f32 %v2442
        %v2555 = vcvt.s32.f32 %v2443
        %v2556 = vcvt.s32.f32 %v2444
        %v2557 = vcvt.s32.f32 %v2445
        %v2558 = vcvt.s32.f32 %v2446
        %v2559 = vcvt.s32.f32 %v2447
        %v2560 = vcvt.s32.f32 %v2448
        %v2561 = vcvt.s32.f32 %v2449
        %v2562 = vcvt.s32.f32 %v2450
        %v2563 = vcvt.s32.f32 %v2451
        %v2564 = vcvt.s32.f32 %v2452
        %v2565 = vcvt.s32.f32 %v2453
        %v2566 = vcvt.s32.f32 %v2454
        %v2567 = vcvt.s32.f32 %v2455
        %v2568 = vcvt.s32.f32 %v2456
        %v2569 = vcvt.s32.f32 %v2457
        %v2570 = vcvt.s32.f32 %v2458
        %v2571 = vcvt.s32.f32 %v2459
        %v2572 = vcvt.s32.f32 %v2460
        %v2573 = vcvt.s32.f32 %v2461
        %v2574 = vcvt.s32.f32 %v2462
        %v2575 = vcvt.s32.f32 %v2463
        %v2576 = vcvt.s32.f32 %v2464
        %v2577 = vcvt.s32.f32 %v2465
        %v2578 = vcvt.s32.f32 %v2466
        %v2579 = vcvt.s32.f32 %v2467
        %v2580 = vcvt.s32.f32 %v2468
        %v2581 = vcvt.s32.f32 %v2469
        %v2582 = vcvt.s32.f32 %v2470
        %v2583 = vcvt.s32.f32 %v2471
        %v2584 = vcvt.s32.f32 %v2472
        %v2585 = vcvt.s32.f32 %v2473
        %v2586 = vcvt.s32.f32 %v2474
        %v2587 = vcvt.s32.f32 %v2475
        %v2588 = vcvt.s32.f32 %v2476
        %v2589 = vcvt.s32.f32 %v2477
        %v2590 = vcvt.s32.f32 %v2478
        %v2591 = vcvt.s32.f32 %v2479
        %v2592 = vcvt.s32.f32 %v2480
        %v2593 = vcvt.s32.f32 %v2481
        %v2594 = vcvt.s32.f32 %v2482
        %v2595 = vcvt.s32.f32 %v2483
        %v2596 = vcvt.s32.f32 %v2484
        %v2597 = vcvt.s32.f32 %v2485
        %v2598 = vcvt.s32.f32 %v2486
        %v2599 = vcvt.s32.f32 %v2487
        %v2600 = vcvt.s32.f32 %v2488
        %v2601 = vcvt.s32.f32 %v2489
        %v2602 = vcvt.s32.f32 %v2490
        %v2603 = vmul.f32 %v1194, %v2491
        %v2604 = vmul.f32 %v1198, %v2492
        %v2605 = vmul.f32 %v1204, %v2493
        %v2606 = vmul.f32 %v1208, %v2494
        %v2607 = vmul.f32 %v1214, %v2495
        %v2608 = vmul.f32 %v1218, %v2496
        %v2609 = vmul.f32 %v1224, %v2497
        %v2610 = vmul.f32 %v1228, %v2498
        %v2611 = vmul.f32 %v1234, %v2499
        %v2612 = vmul.f32 %v1238, %v2500
        %v2613 = vmul.f32 %v1244, %v2501
        %v2614 = vmul.f32 %v1248, %v2502
        %v2615 = vmul.f32 %v1254, %v2503
        %v2616 = vmul.f32 %v1258, %v2504
        %v2617 = vmul.f32 %v1264, %v2505
        %v2618 = vmul.f32 %v1268, %v2506
        %v2619 = vmul.f32 %v1196, %v2507
        %v2620 = vmul.f32 %v1200, %v2508
        %v2621 = vmul.f32 %v1206, %v2509
        %v2622 = vmul.f32 %v1210, %v2510
        %v2623 = vmul.f32 %v1216, %v2511
        %v2624 = vmul.f32 %v1220, %v2512
        %v2625 = vmul.f32 %v1226, %v2513
        %v2626 = vmul.f32 %v1230, %v2514
        %v2627 = vmul.f32 %v1236, %v2515
        %v2628 = vmul.f32 %v1240, %v2516
        %v2629 = vmul.f32 %v1246, %v2517
        %v2630 = vmul.f32 %v1250, %v2518
        %v2631 = vmul.f32 %v1256, %v2519
        %v2632 = vmul.f32 %v1260, %v2520
        %v2633 = vmul.f32 %v1266, %v2521
        %v2634 = vmul.f32 %v1270, %v2522
        %v2635 = vmul.f32 %v1307, %v2523
        %v2636 = vmul.f32 %v1311, %v2524
        %v2637 = vmul.f32 %v1317, %v2525
        %v2638 = vmul.f32 %v1321, %v2526
        %v2639 = vmul.f32 %v1327, %v2527
        %v2640 = vmul.f32 %v1331, %v2528
        %v2641 = vmul.f32 %v1337, %v2529
        %v2642 = vmul.f32 %v1341, %v2530
        %v2643 = vmul.f32 %v1347, %v2531
        %v2644 = vmul.f32 %v1351, %v2532
        %v2645 = vmul.f32 %v1357, %v2533
        %v2646 = vmul.f32 %v1361, %v2534
        %v2647 = vmul.f32 %v1367, %v2535
        %v2648 = vmul.f32 %v1371, %v2536
        %v2649 = vmul.f32 %v1377, %v2537
        %v2650 = vmul.f32 %v1381, %v2538
        %v2651 = vmul.f32 %v1309, %v2539
        %v2652 = vmul.f32 %v1313, %v2540
        %v2653 = vmul.f32 %v1319, %v2541
        %v2654 = vmul.f32 %v1323, %v2542
        %v2655 = vmul.f32 %v1329, %v2543
        %v2656 = vmul.f32 %v1333, %v2544
        %v2657 = vmul.f32 %v1339, %v2545
        %v2658 = vmul.f32 %v1343, %v2546
        %v2659 = vmul.f32 %v1349, %v2547
        %v2660 = vmul.f32 %v1353, %v2548
        %v2661 = vmul.f32 %v1359, %v2549
        %v2662 = vmul.f32 %v1363, %v2550
        %v2663 = vmul.f32 %v1369, %v2551
        %v2664 = vmul.f32 %v1373, %v2552
        %v2665 = vmul.f32 %v1379, %v2553
        %v2666 = vmul.f32 %v1383, %v2554
        %v2667 = vmul.f32 %v1420, %v2555
        %v2668 = vmul.f32 %v1424, %v2556
        %v2669 = vmul.f32 %v1430, %v2557
        %v2670 = vmul.f32 %v1434, %v2558
        %v2671 = vmul.f32 %v1440, %v2559
        %v2672 = vmul.f32 %v1444, %v2560
        %v2673 = vmul.f32 %v1450, %v2561
        %v2674 = vmul.f32 %v1454, %v2562
        %v2675 = vmul.f32 %v1460, %v2563
        %v2676 = vmul.f32 %v1464, %v2564
        %v2677 = vmul.f32 %v1470, %v2565
        %v2678 = vmul.f32 %v1474, %v2566
        %v2679 = vmul.f32 %v1480, %v2567
        %v2680 = vmul.f32 %v1484, %v2568
        %v2681 = vmul.f32 %v1490, %v2569
        %v2682 = vmul.f32 %v1494, %v2570
        %v2683 = vmul.f32 %v1422, %v2571
        %v2684 = vmul.f32 %v1426, %v2572
        %v2685 = vmul.f32 %v1432, %v2573
        %v2686 = vmul.f32 %v1436, %v2574
        %v2687 = vmul.f32 %v1442, %v2575
        %v2688 = vmul.f32 %v1446, %v2576
        %v2689 = vmul.f32 %v1452, %v2577
        %v2690 = vmul.f32 %v1456, %v2578
        %v2691 = vmul.f32 %v1462, %v2579
        %v2692 = vmul.f32 %v1466, %v2580
        %v2693 = vmul.f32 %v1472, %v2581
        %v2694 = vmul.f32 %v1476, %v2582
        %v2695 = vmul.f32 %v1482, %v2583
        %v2696 = vmul.f32 %v1486, %v2584
        %v2697 = vmul.f32 %v1492, %v2585
        %v2698 = vmul.f32 %v1496, %v2586
        %v2699 = vmul.f32 %v1533, %v2587
        %v2700 = vmul.f32 %v1536, %v2588
        %v2701 = vmul.f32 %v1541, %v2589
        %v2702 = vmul.f32 %v1544, %v2590
        %v2703 = vmul.f32 %v1549, %v2591
        %v2704 = vmul.f32 %v1552, %v2592
        %v2705 = vmul.f32 %v1557, %v2593
        %v2706 = vmul.f32 %v1560, %v2594
        %v2707 = vmul.f32 %v1565, %v2595
        %v2708 = vmul.f32 %v1568, %v2596
        %v2709 = vmul.f32 %v1573, %v2597
        %v2710 = vmul.f32 %v1576, %v2598
        %v2711 = vmul.f32 %v1581, %v2599
        %v2712 = vmul.f32 %v1584, %v2600
        %v2713 = vmul.f32 %v1589, %v2601
        %v2714 = vmul.f32 %v1592, %v2602
        %v2715 = vadd.f32 %v2603, %v2619
        %v2716 = vadd.f32 %v2715, %v2635
        %v2717 = vadd.f32 %v2716, %v2651
        %v2718 = vadd.f32 %v2717, %v2667
        %v2719 = vadd.f32 %v2718, %v2683
        %v2720 = vadd.f32 %v2719, %v2699
        %v2721 = vadd.f32 %v2604, %v2620
        %v2722 = vadd.f32 %v2721, %v2636
        %v2723 = vadd.f32 %v2722, %v2652
        %v2724 = vadd.f32 %v2723, %v2668
        %v2725 = vadd.f32 %v2724, %v2684
        %v2726 = vadd.f32 %v2725, %v2700
        %v2727 = vadd.f32 %v2605, %v2621
        %v2728 = vadd.f32 %v2727, %v2637
        %v2729 = vadd.f32 %v2728, %v2653
        %v2730 = vadd.f32 %v2729, %v2669
        %v2731 = vadd.f32 %v2730, %v2685
        %v2732 = vadd.f32 %v2731, %v2701
        %v2733 = vadd.f32 %v2606, %v2622
        %v2734 = vadd.f32 %v2733, %v2638
        %v2735 = vadd.f32 %v2734, %v2654
        %v2736 = vadd.f32 %v2735, %v2670
        %v2737 = vadd.f32 %v2736, %v2686
        %v2738 = vadd.f32 %v2737, %v2702
        %v2739 = vadd.f32 %v2607, %v2623
        %v2740 = vadd.f32 %v2739, %v2639
        %v2741 = vadd.f32 %v2740, %v2655
        %v2742 = vadd.f32 %v2741, %v2671
        %v2743 = vadd.f32 %v2742, %v2687
        %v2744 = vadd.f32 %v2743, %v2703
        %v2745 = vadd.f32 %v2608, %v2624
        %v2746 = vadd.f32 %v2745, %v2640
        %v2747 = vadd.f32 %v2746, %v2656
        %v2748 = vadd.f32 %v2747, %v2672
        %v2749 = vadd.f32 %v2748, %v2688
        %v2750 = vadd.f32 %v2749, %v2704
        %v2751 = vadd.f32 %v2609, %v2625
        %v2752 = vadd.f32 %v2751, %v2641
        %v2753 = vadd.f32 %v2752, %v2657
        %v2754 = vadd.f32 %v2753, %v2673
        %v2755 = vadd.f32 %v2754, %v2689
        %v2756 = vadd.f32 %v2755, %v2705
        %v2757 = vadd.f32 %v2610, %v2626
        %v2758 = vadd.f32 %v2757, %v2642
        %v2759 = vadd.f32 %v2758, %v2658
        %v2760 = vadd.f32 %v2759, %v2674
        %v2761 = vadd.f32 %v2760, %v2690
        %v2762 = vadd.f32 %v2761, %v2706
        %v2763 = vadd.f32 %v2611, %v2627
        %v2764 = vadd.f32 %v2763, %v2643
        %v2765 = vadd.f32 %v2764, %v2659
        %v2766 = vadd.f32 %v2765, %v2675
        %v2767 = vadd.f32 %v2766, %v2691
        %v2768 = vadd.f32 %v2767, %v2707
        %v2769 = vadd.f32 %v2612, %v2628
        %v2770 = vadd.f32 %v2769, %v2644
        %v2771 = vadd.f32 %v2770, %v2660
        %v2772 = vadd.f32 %v2771, %v2676
        %v2773 = vadd.f32 %v2772, %v2692
        %v2774 = vadd.f32 %v2773, %v2708
        %v2775 = vadd.f32 %v2613, %v2629
        %v2776 = vadd.f32 %v2775, %v2645
        %v2777 = vadd.f32 %v2776, %v2661
        %v2778 = vadd.f32 %v2777, %v2677
        %v2779 = vadd.f32 %v2778, %v2693
        %v2780 = vadd.f32 %v2779, %v2709
        %v2781 = vadd.f32 %v2614, %v2630
        %v2782 = vadd.f32 %v2781, %v2646
        %v2783 = vadd.f32 %v2782, %v2662
        %v2784 = vadd.f32 %v2783, %v2678
        %v2785 = vadd.f32 %v2784, %v2694
        %v2786 = vadd.f32 %v2785, %v2710
        %v2787 = vadd.f32 %v2615, %v2631
        %v2788 = vadd.f32 %v2787, %v2647
        %v2789 = vadd.f32 %v2788, %v2663
        %v2790 = vadd.f32 %v2789, %v2679
        %v2791 = vadd.f32 %v2790, %v2695
        %v2792 = vadd.f32 %v2791, %v2711
        %v2793 = vadd.f32 %v2616, %v2632
        %v2794 = vadd.f32 %v2793, %v2648
        %v2795 = vadd.f32 %v2794, %v2664
        %v2796 = vadd.f32 %v2795, %v2680
        %v2797 = vadd.f32 %v2796, %v2696
        %v2798 = vadd.f32 %v2797, %v2712
        %v2799 = vadd.f32 %v2617, %v2633
        %v2800 = vadd.f32 %v2799, %v2649
        %v2801 = vadd.f32 %v2800, %v2665
        %v2802 = vadd.f32 %v2801, %v2681
        %v2803 = vadd.f32 %v2802, %v2697
        %v2804 = vadd.f32 %v2803, %v2713
        %v2805 = vadd.f32 %v2618, %v2634
        %v2806 = vadd.f32 %v2805, %v2650
        %v2807 = vadd.f32 %v2806, %v2666
        %v2808 = vadd.f32 %v2807, %v2682
        %v2809 = vadd.f32 %v2808, %v2698
        %v2810 = vadd.f32 %v2809, %v2714
        %v2811 = vlog2.pop %v2032
        %v2812 = vmul.f32 %v2811, 0.6931472
        %v2813 = vlog2.pop %v2038
        %v2814 = vmul.f32 %v2813, 0.6931472
        %v2815 = vlog2.pop %v2044
        %v2816 = vmul.f32 %v2815, 0.6931472
        %v2817 = vlog2.pop %v2050
        %v2818 = vmul.f32 %v2817, 0.6931472
        %v2819 = vlog2.pop %v2056
        %v2820 = vmul.f32 %v2819, 0.6931472
        %v2821 = vlog2.pop %v2062
        %v2822 = vmul.f32 %v2821, 0.6931472
        %v2823 = vlog2.pop %v2068
        %v2824 = vmul.f32 %v2823, 0.6931472
        %v2825 = vlog2.pop %v2074
        %v2826 = vmul.f32 %v2825, 0.6931472
        %v2827 = vlog2.pop %v2080
        %v2828 = vmul.f32 %v2827, 0.6931472
        %v2829 = vlog2.pop %v2086
        %v2830 = vmul.f32 %v2829, 0.6931472
        %v2831 = vlog2.pop %v2092
        %v2832 = vmul.f32 %v2831, 0.6931472
        %v2833 = vlog2.pop %v2098
        %v2834 = vmul.f32 %v2833, 0.6931472
        %v2835 = vlog2.pop %v2104
        %v2836 = vmul.f32 %v2835, 0.6931472
        %v2837 = vlog2.pop %v2110
        %v2838 = vmul.f32 %v2837, 0.6931472
        %v2839 = vlog2.pop %v2116
        %v2840 = vmul.f32 %v2839, 0.6931472
        %v2841 = vlog2.pop %v2122
        %v2842 = vmul.f32 %v2841, 0.6931472
        %v2843 = vadd.f32 %v2812, %v1600
        %v2844 = vadd.f32 %v2814, %v1606
        %v2845 = vadd.f32 %v2816, %v1612
        %v2846 = vadd.f32 %v2818, %v1618
        %v2847 = vadd.f32 %v2820, %v1624
        %v2848 = vadd.f32 %v2822, %v1630
        %v2849 = vadd.f32 %v2824, %v1636
        %v2850 = vadd.f32 %v2826, %v1642
        %v2851 = vadd.f32 %v2828, %v1648
        %v2852 = vadd.f32 %v2830, %v1654
        %v2853 = vadd.f32 %v2832, %v1660
        %v2854 = vadd.f32 %v2834, %v1666
        %v2855 = vadd.f32 %v2836, %v1672
        %v2856 = vadd.f32 %v2838, %v1678
        %v2857 = vadd.f32 %v2840, %v1684
        %v2858 = vadd.f32 %v2842, %v1690
        %v2859 = vsub.f32 %v2843, %v2720
        %v2860 = vsub.f32 %v2844, %v2726
        %v2861 = vsub.f32 %v2845, %v2732
        %v2862 = vsub.f32 %v2846, %v2738
        %v2863 = vsub.f32 %v2847, %v2744
        %v2864 = vsub.f32 %v2848, %v2750
        %v2865 = vsub.f32 %v2849, %v2756
        %v2866 = vsub.f32 %v2850, %v2762
        %v2867 = vsub.f32 %v2851, %v2768
        %v2868 = vsub.f32 %v2852, %v2774
        %v2869 = vsub.f32 %v2853, %v2780
        %v2870 = vsub.f32 %v2854, %v2786
        %v2871 = vsub.f32 %v2855, %v2792
        %v2872 = vsub.f32 %v2856, %v2798
        %v2873 = vsub.f32 %v2857, %v2804
        %v2874 = vsub.f32 %v2858, %v2810
        %v2875 = vsub.f32 0.0, %v2859
        %v2876 = vsub.f32 0.0, %v2860
        %v2877 = vsub.f32 0.0, %v2861
        %v2878 = vsub.f32 0.0, %v2862
        %v2879 = vsub.f32 0.0, %v2863
        %v2880 = vsub.f32 0.0, %v2864
        %v2881 = vsub.f32 0.0, %v2865
        %v2882 = vsub.f32 0.0, %v2866
        %v2883 = vsub.f32 0.0, %v2867
        %v2884 = vsub.f32 0.0, %v2868
        %v2885 = vsub.f32 0.0, %v2869
        %v2886 = vsub.f32 0.0, %v2870
        %v2887 = vsub.f32 0.0, %v2871
        %v2888 = vsub.f32 0.0, %v2872
        %v2889 = vsub.f32 0.0, %v2873
        %v2890 = vsub.f32 0.0, %v2874
        %v2891 = vmul.f32 %v2875, 1.442695
        %v2892 = vpow.pop %v2891
        %v2893 = vmul.f32 %v2876, 1.442695
        %v2894 = vpow.pop %v2893
        %v2895 = vmul.f32 %v2877, 1.442695
        %v2896 = vpow.pop %v2895
        %v2897 = vmul.f32 %v2878, 1.442695
        %v2898 = vpow.pop %v2897
        %v2899 = vmul.f32 %v2879, 1.442695
        %v2900 = vpow.pop %v2899
        %v2901 = vmul.f32 %v2880, 1.442695
        %v2902 = vpow.pop %v2901
        %v2903 = vmul.f32 %v2881, 1.442695
        %v2904 = vpow.pop %v2903
        %v2905 = vmul.f32 %v2882, 1.442695
        %v2906 = vpow.pop %v2905
        %v2907 = vmul.f32 %v2883, 1.442695
        %v2908 = vpow.pop %v2907
        %v2909 = vmul.f32 %v2884, 1.442695
        %v2910 = vpow.pop %v2909
        %v2911 = vmul.f32 %v2885, 1.442695
        %v2912 = vpow.pop %v2911
        %v2913 = vmul.f32 %v2886, 1.442695
        %v2914 = vpow.pop %v2913
        %v2915 = vmul.f32 %v2887, 1.442695
        %v2916 = vpow.pop %v2915
        %v2917 = vmul.f32 %v2888, 1.442695
        %v2918 = vpow.pop %v2917
        %v2919 = vmul.f32 %v2889, 1.442695
        %v2920 = vpow.pop %v2919
        %v2921 = vmul.f32 %v2890, 1.442695
        %v2922 = vpow.pop %v2921
        %v2923 = vsub.f32 1.0, %v2892
        %v2924 = vsub.f32 1.0, %v2894
        %v2925 = vsub.f32 1.0, %v2896
        %v2926 = vsub.f32 1.0, %v2898
        %v2927 = vsub.f32 1.0, %v2900
        %v2928 = vsub.f32 1.0, %v2902
        %v2929 = vsub.f32 1.0, %v2904
        %v2930 = vsub.f32 1.0, %v2906
        %v2931 = vsub.f32 1.0, %v2908
        %v2932 = vsub.f32 1.0, %v2910
        %v2933 = vsub.f32 1.0, %v2912
        %v2934 = vsub.f32 1.0, %v2914
        %v2935 = vsub.f32 1.0, %v2916
        %v2936 = vsub.f32 1.0, %v2918
        %v2937 = vsub.f32 1.0, %v2920
        %v2938 = vsub.f32 1.0, %v2922
        %v2939 = vmul.f32 %v2923, %v2923
        %v2940 = vmul.f32 %v2924, %v2924
        %v2941 = vmul.f32 %v2925, %v2925
        %v2942 = vmul.f32 %v2926, %v2926
        %v2943 = vmul.f32 %v2927, %v2927
        %v2944 = vmul.f32 %v2928, %v2928
        %v2945 = vmul.f32 %v2929, %v2929
        %v2946 = vmul.f32 %v2930, %v2930
        %v2947 = vmul.f32 %v2931, %v2931
        %v2948 = vmul.f32 %v2932, %v2932
        %v2949 = vmul.f32 %v2933, %v2933
        %v2950 = vmul.f32 %v2934, %v2934
        %v2951 = vmul.f32 %v2935, %v2935
        %v2952 = vmul.f32 %v2936, %v2936
        %v2953 = vmul.f32 %v2937, %v2937
        %v2954 = vmul.f32 %v2938, %v2938
        %v2955 = vmul.f32 %v2491, %v2859
        %v2956 = vmul.f32 %v2492, %v2860
        %v2957 = vmul.f32 %v2493, %v2861
        %v2958 = vmul.f32 %v2494, %v2862
        %v2959 = vmul.f32 %v2495, %v2863
        %v2960 = vmul.f32 %v2496, %v2864
        %v2961 = vmul.f32 %v2497, %v2865
        %v2962 = vmul.f32 %v2498, %v2866
        %v2963 = vmul.f32 %v2499, %v2867
        %v2964 = vmul.f32 %v2500, %v2868
        %v2965 = vmul.f32 %v2501, %v2869
        %v2966 = vmul.f32 %v2502, %v2870
        %v2967 = vmul.f32 %v2503, %v2871
        %v2968 = vmul.f32 %v2504, %v2872
        %v2969 = vmul.f32 %v2505, %v2873
        %v2970 = vmul.f32 %v2506, %v2874
        %v2971 = vmul.f32 %v2507, %v2859
        %v2972 = vmul.f32 %v2508, %v2860
        %v2973 = vmul.f32 %v2509, %v2861
        %v2974 = vmul.f32 %v2510, %v2862
        %v2975 = vmul.f32 %v2511, %v2863
        %v2976 = vmul.f32 %v2512, %v2864
        %v2977 = vmul.f32 %v2513, %v2865
        %v2978 = vmul.f32 %v2514, %v2866
        %v2979 = vmul.f32 %v2515, %v2867
        %v2980 = vmul.f32 %v2516, %v2868
        %v2981 = vmul.f32 %v2517, %v2869
        %v2982 = vmul.f32 %v2518, %v2870
        %v2983 = vmul.f32 %v2519, %v2871
        %v2984 = vmul.f32 %v2520, %v2872
        %v2985 = vmul.f32 %v2521, %v2873
        %v2986 = vmul.f32 %v2522, %v2874
        %v2987 = vmul.f32 %v2523, %v2859
        %v2988 = vmul.f32 %v2524, %v2860
        %v2989 = vmul.f32 %v2525, %v2861
        %v2990 = vmul.f32 %v2526, %v2862
        %v2991 = vmul.f32 %v2527, %v2863
        %v2992 = vmul.f32 %v2528, %v2864
        %v2993 = vmul.f32 %v2529, %v2865
        %v2994 = vmul.f32 %v2530, %v2866
        %v2995 = vmul.f32 %v2531, %v2867
        %v2996 = vmul.f32 %v2532, %v2868
        %v2997 = vmul.f32 %v2533, %v2869
        %v2998 = vmul.f32 %v2534, %v2870
        %v2999 = vmul.f32 %v2535, %v2871
        %v3000 = vmul.f32 %v2536, %v2872
        %v3001 = vmul.f32 %v2537, %v2873
        %v3002 = vmul.f32 %v2538, %v2874
        %v3003 = vmul.f32 %v2539, %v2859
        %v3004 = vmul.f32 %v2540, %v2860
        %v3005 = vmul.f32 %v2541, %v2861
        %v3006 = vmul.f32 %v2542, %v2862
        %v3007 = vmul.f32 %v2543, %v2863
        %v3008 = vmul.f32 %v2544, %v2864
        %v3009 = vmul.f32 %v2545, %v2865
        %v3010 = vmul.f32 %v2546, %v2866
        %v3011 = vmul.f32 %v2547, %v2867
        %v3012 = vmul.f32 %v2548, %v2868
        %v3013 = vmul.f32 %v2549, %v2869
        %v3014 = vmul.f32 %v2550, %v2870
        %v3015 = vmul.f32 %v2551, %v2871
        %v3016 = vmul.f32 %v2552, %v2872
        %v3017 = vmul.f32 %v2553, %v2873
        %v3018 = vmul.f32 %v2554, %v2874
        %v3019 = vmul.f32 %v2555, %v2859
        %v3020 = vmul.f32 %v2556, %v2860
        %v3021 = vmul.f32 %v2557, %v2861
        %v3022 = vmul.f32 %v2558, %v2862
        %v3023 = vmul.f32 %v2559, %v2863
        %v3024 = vmul.f32 %v2560, %v2864
        %v3025 = vmul.f32 %v2561, %v2865
        %v3026 = vmul.f32 %v2562, %v2866
        %v3027 = vmul.f32 %v2563, %v2867
        %v3028 = vmul.f32 %v2564, %v2868
        %v3029 = vmul.f32 %v2565, %v2869
        %v3030 = vmul.f32 %v2566, %v2870
        %v3031 = vmul.f32 %v2567, %v2871
        %v3032 = vmul.f32 %v2568, %v2872
        %v3033 = vmul.f32 %v2569, %v2873
        %v3034 = vmul.f32 %v2570, %v2874
        %v3035 = vmul.f32 %v2571, %v2859
        %v3036 = vmul.f32 %v2572, %v2860
        %v3037 = vmul.f32 %v2573, %v2861
        %v3038 = vmul.f32 %v2574, %v2862
        %v3039 = vmul.f32 %v2575, %v2863
        %v3040 = vmul.f32 %v2576, %v2864
        %v3041 = vmul.f32 %v2577, %v2865
        %v3042 = vmul.f32 %v2578, %v2866
        %v3043 = vmul.f32 %v2579, %v2867
        %v3044 = vmul.f32 %v2580, %v2868
        %v3045 = vmul.f32 %v2581, %v2869
        %v3046 = vmul.f32 %v2582, %v2870
        %v3047 = vmul.f32 %v2583, %v2871
        %v3048 = vmul.f32 %v2584, %v2872
        %v3049 = vmul.f32 %v2585, %v2873
        %v3050 = vmul.f32 %v2586, %v2874
        %v3051 = vmul.f32 %v2587, %v2859
        %v3052 = vmul.f32 %v2588, %v2860
        %v3053 = vmul.f32 %v2589, %v2861
        %v3054 = vmul.f32 %v2590, %v2862
        %v3055 = vmul.f32 %v2591, %v2863
        %v3056 = vmul.f32 %v2592, %v2864
        %v3057 = vmul.f32 %v2593, %v2865
        %v3058 = vmul.f32 %v2594, %v2866
        %v3059 = vmul.f32 %v2595, %v2867
        %v3060 = vmul.f32 %v2596, %v2868
        %v3061 = vmul.f32 %v2597, %v2869
        %v3062 = vmul.f32 %v2598, %v2870
        %v3063 = vmul.f32 %v2599, %v2871
        %v3064 = vmul.f32 %v2600, %v2872
        %v3065 = vmul.f32 %v2601, %v2873
        %v3066 = vmul.f32 %v2602, %v2874
        %v3067 = vmul.f32 %v2491, %v2892
        %v3068 = vmul.f32 %v2492, %v2894
        %v3069 = vmul.f32 %v2493, %v2896
        %v3070 = vmul.f32 %v2494, %v2898
        %v3071 = vmul.f32 %v2495, %v2900
        %v3072 = vmul.f32 %v2496, %v2902
        %v3073 = vmul.f32 %v2497, %v2904
        %v3074 = vmul.f32 %v2498, %v2906
        %v3075 = vmul.f32 %v2499, %v2908
        %v3076 = vmul.f32 %v2500, %v2910
        %v3077 = vmul.f32 %v2501, %v2912
        %v3078 = vmul.f32 %v2502, %v2914
        %v3079 = vmul.f32 %v2503, %v2916
        %v3080 = vmul.f32 %v2504, %v2918
        %v3081 = vmul.f32 %v2505, %v2920
        %v3082 = vmul.f32 %v2506, %v2922
        %v3083 = vmul.f32 %v2507, %v2892
        %v3084 = vmul.f32 %v2508, %v2894
        %v3085 = vmul.f32 %v2509, %v2896
        %v3086 = vmul.f32 %v2510, %v2898
        %v3087 = vmul.f32 %v2511, %v2900
        %v3088 = vmul.f32 %v2512, %v2902
        %v3089 = vmul.f32 %v2513, %v2904
        %v3090 = vmul.f32 %v2514, %v2906
        %v3091 = vmul.f32 %v2515, %v2908
        %v3092 = vmul.f32 %v2516, %v2910
        %v3093 = vmul.f32 %v2517, %v2912
        %v3094 = vmul.f32 %v2518, %v2914
        %v3095 = vmul.f32 %v2519, %v2916
        %v3096 = vmul.f32 %v2520, %v2918
        %v3097 = vmul.f32 %v2521, %v2920
        %v3098 = vmul.f32 %v2522, %v2922
        %v3099 = vmul.f32 %v2523, %v2892
        %v3100 = vmul.f32 %v2524, %v2894
        %v3101 = vmul.f32 %v2525, %v2896
        %v3102 = vmul.f32 %v2526, %v2898
        %v3103 = vmul.f32 %v2527, %v2900
        %v3104 = vmul.f32 %v2528, %v2902
        %v3105 = vmul.f32 %v2529, %v2904
        %v3106 = vmul.f32 %v2530, %v2906
        %v3107 = vmul.f32 %v2531, %v2908
        %v3108 = vmul.f32 %v2532, %v2910
        %v3109 = vmul.f32 %v2533, %v2912
        %v3110 = vmul.f32 %v2534, %v2914
        %v3111 = vmul.f32 %v2535, %v2916
        %v3112 = vmul.f32 %v2536, %v2918
        %v3113 = vmul.f32 %v2537, %v2920
        %v3114 = vmul.f32 %v2538, %v2922
        %v3115 = vmul.f32 %v2539, %v2892
        %v3116 = vmul.f32 %v2540, %v2894
        %v3117 = vmul.f32 %v2541, %v2896
        %v3118 = vmul.f32 %v2542, %v2898
        %v3119 = vmul.f32 %v2543, %v2900
        %v3120 = vmul.f32 %v2544, %v2902
        %v3121 = vmul.f32 %v2545, %v2904
        %v3122 = vmul.f32 %v2546, %v2906
        %v3123 = vmul.f32 %v2547, %v2908
        %v3124 = vmul.f32 %v2548, %v2910
        %v3125 = vmul.f32 %v2549, %v2912
        %v3126 = vmul.f32 %v2550, %v2914
        %v3127 = vmul.f32 %v2551, %v2916
        %v3128 = vmul.f32 %v2552, %v2918
        %v3129 = vmul.f32 %v2553, %v2920
        %v3130 = vmul.f32 %v2554, %v2922
        %v3131 = vmul.f32 %v2555, %v2892
        %v3132 = vmul.f32 %v2556, %v2894
        %v3133 = vmul.f32 %v2557, %v2896
        %v3134 = vmul.f32 %v2558, %v2898
        %v3135 = vmul.f32 %v2559, %v2900
        %v3136 = vmul.f32 %v2560, %v2902
        %v3137 = vmul.f32 %v2561, %v2904
        %v3138 = vmul.f32 %v2562, %v2906
        %v3139 = vmul.f32 %v2563, %v2908
        %v3140 = vmul.f32 %v2564, %v2910
        %v3141 = vmul.f32 %v2565, %v2912
        %v3142 = vmul.f32 %v2566, %v2914
        %v3143 = vmul.f32 %v2567, %v2916
        %v3144 = vmul.f32 %v2568, %v2918
        %v3145 = vmul.f32 %v2569, %v2920
        %v3146 = vmul.f32 %v2570, %v2922
        %v3147 = vmul.f32 %v2571, %v2892
        %v3148 = vmul.f32 %v2572, %v2894
        %v3149 = vmul.f32 %v2573, %v2896
        %v3150 = vmul.f32 %v2574, %v2898
        %v3151 = vmul.f32 %v2575, %v2900
        %v3152 = vmul.f32 %v2576, %v2902
        %v3153 = vmul.f32 %v2577, %v2904
        %v3154 = vmul.f32 %v2578, %v2906
        %v3155 = vmul.f32 %v2579, %v2908
        %v3156 = vmul.f32 %v2580, %v2910
        %v3157 = vmul.f32 %v2581, %v2912
        %v3158 = vmul.f32 %v2582, %v2914
        %v3159 = vmul.f32 %v2583, %v2916
        %v3160 = vmul.f32 %v2584, %v2918
        %v3161 = vmul.f32 %v2585, %v2920
        %v3162 = vmul.f32 %v2586, %v2922
        %v3163 = vmul.f32 %v2587, %v2892
        %v3164 = vmul.f32 %v2588, %v2894
        %v3165 = vmul.f32 %v2589, %v2896
        %v3166 = vmul.f32 %v2590, %v2898
        %v3167 = vmul.f32 %v2591, %v2900
        %v3168 = vmul.f32 %v2592, %v2902
        %v3169 = vmul.f32 %v2593, %v2904
        %v3170 = vmul.f32 %v2594, %v2906
        %v3171 = vmul.f32 %v2595, %v2908
        %v3172 = vmul.f32 %v2596, %v2910
        %v3173 = vmul.f32 %v2597, %v2912
        %v3174 = vmul.f32 %v2598, %v2914
        %v3175 = vmul.f32 %v2599, %v2916
        %v3176 = vmul.f32 %v2600, %v2918
        %v3177 = vmul.f32 %v2601, %v2920
        %v3178 = vmul.f32 %v2602, %v2922
        %3179 = vadd.xlane.f32.xlu0 %v3067
        %v3180 = vpop.xlane.xlu0 %3179
        %3181 = vadd.xlane.f32.xlu0 %v3068
        %v3182 = vpop.xlane.xlu0 %3181
        %3183 = vadd.xlane.f32.xlu0 %v3069
        %v3184 = vpop.xlane.xlu0 %3183
        %3185 = vadd.xlane.f32.xlu0 %v3070
        %v3186 = vpop.xlane.xlu0 %3185
        %3187 = vadd.xlane.f32.xlu0 %v3071
        %v3188 = vpop.xlane.xlu0 %3187
        %3189 = vadd.xlane.f32.xlu0 %v3072
        %v3190 = vpop.xlane.xlu0 %3189
        %3191 = vadd.xlane.f32.xlu0 %v3073
        %v3192 = vpop.xlane.xlu0 %3191
        %3193 = vadd.xlane.f32.xlu0 %v3074
        %v3194 = vpop.xlane.xlu0 %3193
        %3195 = vadd.xlane.f32.xlu0 %v3075
        %v3196 = vpop.xlane.xlu0 %3195
        %3197 = vadd.xlane.f32.xlu0 %v3076
        %v3198 = vpop.xlane.xlu0 %3197
        %3199 = vadd.xlane.f32.xlu0 %v3077
        %v3200 = vpop.xlane.xlu0 %3199
        %3201 = vadd.xlane.f32.xlu0 %v3078
        %v3202 = vpop.xlane.xlu0 %3201
        %3203 = vadd.xlane.f32.xlu0 %v3079
        %v3204 = vpop.xlane.xlu0 %3203
        %3205 = vadd.xlane.f32.xlu0 %v3080
        %v3206 = vpop.xlane.xlu0 %3205
        %3207 = vadd.xlane.f32.xlu0 %v3081
        %v3208 = vpop.xlane.xlu0 %3207
        %3209 = vadd.xlane.f32.xlu0 %v3082
        %v3210 = vpop.xlane.xlu0 %3209
        %3211 = vadd.xlane.f32.xlu0 %v3083
        %v3212 = vpop.xlane.xlu0 %3211
        %3213 = vadd.xlane.f32.xlu0 %v3084
        %v3214 = vpop.xlane.xlu0 %3213
        %3215 = vadd.xlane.f32.xlu0 %v3085
        %v3216 = vpop.xlane.xlu0 %3215
        %3217 = vadd.xlane.f32.xlu0 %v3086
        %v3218 = vpop.xlane.xlu0 %3217
        %3219 = vadd.xlane.f32.xlu0 %v3087
        %v3220 = vpop.xlane.xlu0 %3219
        %3221 = vadd.xlane.f32.xlu0 %v3088
        %v3222 = vpop.xlane.xlu0 %3221
        %3223 = vadd.xlane.f32.xlu0 %v3089
        %v3224 = vpop.xlane.xlu0 %3223
        %3225 = vadd.xlane.f32.xlu0 %v3090
        %v3226 = vpop.xlane.xlu0 %3225
        %3227 = vadd.xlane.f32.xlu0 %v3091
        %v3228 = vpop.xlane.xlu0 %3227
        %3229 = vadd.xlane.f32.xlu0 %v3092
        %v3230 = vpop.xlane.xlu0 %3229
        %3231 = vadd.xlane.f32.xlu0 %v3093
        %v3232 = vpop.xlane.xlu0 %3231
        %3233 = vadd.xlane.f32.xlu0 %v3094
        %v3234 = vpop.xlane.xlu0 %3233
        %3235 = vadd.xlane.f32.xlu0 %v3095
        %v3236 = vpop.xlane.xlu0 %3235
        %3237 = vadd.xlane.f32.xlu0 %v3096
        %v3238 = vpop.xlane.xlu0 %3237
        %3239 = vadd.xlane.f32.xlu0 %v3097
        %v3240 = vpop.xlane.xlu0 %3239
        %3241 = vadd.xlane.f32.xlu0 %v3098
        %v3242 = vpop.xlane.xlu0 %3241
        %3243 = vadd.xlane.f32.xlu0 %v3099
        %v3244 = vpop.xlane.xlu0 %3243
        %3245 = vadd.xlane.f32.xlu0 %v3100
        %v3246 = vpop.xlane.xlu0 %3245
        %3247 = vadd.xlane.f32.xlu0 %v3101
        %v3248 = vpop.xlane.xlu0 %3247
        %3249 = vadd.xlane.f32.xlu0 %v3102
        %v3250 = vpop.xlane.xlu0 %3249
        %3251 = vadd.xlane.f32.xlu0 %v3103
        %v3252 = vpop.xlane.xlu0 %3251
        %3253 = vadd.xlane.f32.xlu0 %v3104
        %v3254 = vpop.xlane.xlu0 %3253
        %3255 = vadd.xlane.f32.xlu0 %v3105
        %v3256 = vpop.xlane.xlu0 %3255
        %3257 = vadd.xlane.f32.xlu0 %v3106
        %v3258 = vpop.xlane.xlu0 %3257
        %3259 = vadd.xlane.f32.xlu0 %v3107
        %v3260 = vpop.xlane.xlu0 %3259
        %3261 = vadd.xlane.f32.xlu0 %v3108
        %v3262 = vpop.xlane.xlu0 %3261
        %3263 = vadd.xlane.f32.xlu0 %v3109
        %v3264 = vpop.xlane.xlu0 %3263
        %3265 = vadd.xlane.f32.xlu0 %v3110
        %v3266 = vpop.xlane.xlu0 %3265
        %3267 = vadd.xlane.f32.xlu0 %v3111
        %v3268 = vpop.xlane.xlu0 %3267
        %3269 = vadd.xlane.f32.xlu0 %v3112
        %v3270 = vpop.xlane.xlu0 %3269
        %3271 = vadd.xlane.f32.xlu0 %v3113
        %v3272 = vpop.xlane.xlu0 %3271
        %3273 = vadd.xlane.f32.xlu0 %v3114
        %v3274 = vpop.xlane.xlu0 %3273
        %3275 = vadd.xlane.f32.xlu0 %v3115
        %v3276 = vpop.xlane.xlu0 %3275
        %3277 = vadd.xlane.f32.xlu0 %v3116
        %v3278 = vpop.xlane.xlu0 %3277
        %3279 = vadd.xlane.f32.xlu0 %v3117
        %v3280 = vpop.xlane.xlu0 %3279
        %3281 = vadd.xlane.f32.xlu0 %v3118
        %v3282 = vpop.xlane.xlu0 %3281
        %3283 = vadd.xlane.f32.xlu0 %v3119
        %v3284 = vpop.xlane.xlu0 %3283
        %3285 = vadd.xlane.f32.xlu0 %v3120
        %v3286 = vpop.xlane.xlu0 %3285
        %3287 = vadd.xlane.f32.xlu0 %v3121
        %v3288 = vpop.xlane.xlu0 %3287
        %3289 = vadd.xlane.f32.xlu0 %v3122
        %v3290 = vpop.xlane.xlu0 %3289
        %3291 = vadd.xlane.f32.xlu0 %v3123
        %v3292 = vpop.xlane.xlu0 %3291
        %3293 = vadd.xlane.f32.xlu0 %v3124
        %v3294 = vpop.xlane.xlu0 %3293
        %3295 = vadd.xlane.f32.xlu0 %v3125
        %v3296 = vpop.xlane.xlu0 %3295
        %3297 = vadd.xlane.f32.xlu0 %v3126
        %v3298 = vpop.xlane.xlu0 %3297
        %3299 = vadd.xlane.f32.xlu0 %v3127
        %v3300 = vpop.xlane.xlu0 %3299
        %3301 = vadd.xlane.f32.xlu0 %v3128
        %v3302 = vpop.xlane.xlu0 %3301
        %3303 = vadd.xlane.f32.xlu0 %v3129
        %v3304 = vpop.xlane.xlu0 %3303
        %3305 = vadd.xlane.f32.xlu0 %v3130
        %v3306 = vpop.xlane.xlu0 %3305
        %3307 = vadd.xlane.f32.xlu0 %v3131
        %v3308 = vpop.xlane.xlu0 %3307
        %3309 = vadd.xlane.f32.xlu0 %v3132
        %v3310 = vpop.xlane.xlu0 %3309
        %3311 = vadd.xlane.f32.xlu0 %v3133
        %v3312 = vpop.xlane.xlu0 %3311
        %3313 = vadd.xlane.f32.xlu0 %v3134
        %v3314 = vpop.xlane.xlu0 %3313
        %3315 = vadd.xlane.f32.xlu0 %v3135
        %v3316 = vpop.xlane.xlu0 %3315
        %3317 = vadd.xlane.f32.xlu0 %v3136
        %v3318 = vpop.xlane.xlu0 %3317
        %3319 = vadd.xlane.f32.xlu0 %v3137
        %v3320 = vpop.xlane.xlu0 %3319
        %3321 = vadd.xlane.f32.xlu0 %v3138
        %v3322 = vpop.xlane.xlu0 %3321
        %3323 = vadd.xlane.f32.xlu0 %v3139
        %v3324 = vpop.xlane.xlu0 %3323
        %3325 = vadd.xlane.f32.xlu0 %v3140
        %v3326 = vpop.xlane.xlu0 %3325
        %3327 = vadd.xlane.f32.xlu0 %v3141
        %v3328 = vpop.xlane.xlu0 %3327
        %3329 = vadd.xlane.f32.xlu0 %v3142
        %v3330 = vpop.xlane.xlu0 %3329
        %3331 = vadd.xlane.f32.xlu0 %v3143
        %v3332 = vpop.xlane.xlu0 %3331
        %3333 = vadd.xlane.f32.xlu0 %v3144
        %v3334 = vpop.xlane.xlu0 %3333
        %3335 = vadd.xlane.f32.xlu0 %v3145
        %v3336 = vpop.xlane.xlu0 %3335
        %3337 = vadd.xlane.f32.xlu0 %v3146
        %v3338 = vpop.xlane.xlu0 %3337
        %3339 = vadd.xlane.f32.xlu0 %v3147
        %v3340 = vpop.xlane.xlu0 %3339
        %3341 = vadd.xlane.f32.xlu0 %v3148
        %v3342 = vpop.xlane.xlu0 %3341
        %3343 = vadd.xlane.f32.xlu0 %v3149
        %v3344 = vpop.xlane.xlu0 %3343
        %3345 = vadd.xlane.f32.xlu0 %v3150
        %v3346 = vpop.xlane.xlu0 %3345
        %3347 = vadd.xlane.f32.xlu0 %v3151
        %v3348 = vpop.xlane.xlu0 %3347
        %3349 = vadd.xlane.f32.xlu0 %v3152
        %v3350 = vpop.xlane.xlu0 %3349
        %3351 = vadd.xlane.f32.xlu0 %v3153
        %v3352 = vpop.xlane.xlu0 %3351
        %3353 = vadd.xlane.f32.xlu0 %v3154
        %v3354 = vpop.xlane.xlu0 %3353
        %3355 = vadd.xlane.f32.xlu0 %v3155
        %v3356 = vpop.xlane.xlu0 %3355
        %3357 = vadd.xlane.f32.xlu0 %v3156
        %v3358 = vpop.xlane.xlu0 %3357
        %3359 = vadd.xlane.f32.xlu0 %v3157
        %v3360 = vpop.xlane.xlu0 %3359
        %3361 = vadd.xlane.f32.xlu0 %v3158
        %v3362 = vpop.xlane.xlu0 %3361
        %3363 = vadd.xlane.f32.xlu0 %v3159
        %v3364 = vpop.xlane.xlu0 %3363
        %3365 = vadd.xlane.f32.xlu0 %v3160
        %v3366 = vpop.xlane.xlu0 %3365
        %3367 = vadd.xlane.f32.xlu0 %v3161
        %v3368 = vpop.xlane.xlu0 %3367
        %3369 = vadd.xlane.f32.xlu0 %v3162
        %v3370 = vpop.xlane.xlu0 %3369
        %3371 = vadd.xlane.f32.xlu0 %v3163
        %v3372 = vpop.xlane.xlu0 %3371
        %3373 = vadd.xlane.f32.xlu0 %v3164
        %v3374 = vpop.xlane.xlu0 %3373
        %3375 = vadd.xlane.f32.xlu0 %v3165
        %v3376 = vpop.xlane.xlu0 %3375
        %3377 = vadd.xlane.f32.xlu0 %v3166
        %v3378 = vpop.xlane.xlu0 %3377
        %3379 = vadd.xlane.f32.xlu0 %v3167
        %v3380 = vpop.xlane.xlu0 %3379
        %3381 = vadd.xlane.f32.xlu0 %v3168
        %v3382 = vpop.xlane.xlu0 %3381
        %3383 = vadd.xlane.f32.xlu0 %v3169
        %v3384 = vpop.xlane.xlu0 %3383
        %3385 = vadd.xlane.f32.xlu0 %v3170
        %v3386 = vpop.xlane.xlu0 %3385
        %3387 = vadd.xlane.f32.xlu0 %v3171
        %v3388 = vpop.xlane.xlu0 %3387
        %3389 = vadd.xlane.f32.xlu0 %v3172
        %v3390 = vpop.xlane.xlu0 %3389
        %3391 = vadd.xlane.f32.xlu0 %v3173
        %v3392 = vpop.xlane.xlu0 %3391
        %3393 = vadd.xlane.f32.xlu0 %v3174
        %v3394 = vpop.xlane.xlu0 %3393
        %3395 = vadd.xlane.f32.xlu0 %v3175
        %v3396 = vpop.xlane.xlu0 %3395
        %3397 = vadd.xlane.f32.xlu0 %v3176
        %v3398 = vpop.xlane.xlu0 %3397
        %3399 = vadd.xlane.f32.xlu0 %v3177
        %v3400 = vpop.xlane.xlu0 %3399
        %3401 = vadd.xlane.f32.xlu0 %v3178
        %v3402 = vpop.xlane.xlu0 %3401
        %v3403 = vadd.f32 %v3180, %v3182
        %v3404 = vadd.f32 %v3403, %v3184
        %v3405 = vadd.f32 %v3404, %v3186
        %v3406 = vadd.f32 %v3405, %v3188
        %v3407 = vadd.f32 %v3406, %v3190
        %v3408 = vadd.f32 %v3407, %v3192
        %v3409 = vadd.f32 %v3408, %v3194
        %v3410 = vadd.f32 %v3409, %v3196
        %v3411 = vadd.f32 %v3410, %v3198
        %v3412 = vadd.f32 %v3411, %v3200
        %v3413 = vadd.f32 %v3412, %v3202
        %v3414 = vadd.f32 %v3413, %v3204
        %v3415 = vadd.f32 %v3414, %v3206
        %v3416 = vadd.f32 %v3415, %v3208
        %v3417 = vadd.f32 %v3416, %v3210
        %v3418 = vrot.slane %v3417, 4
        %v3419 = vadd.f32 %v3417, %v3418
        %v3420 = vrot.slane %v3419, 2
        %v3421 = vadd.f32 %v3419, %v3420
        %v3422 = vrot.slane %v3421, 1
        %v3423 = vadd.f32 %v3421, %v3422
        %v3424 = vadd.f32 %v3212, %v3214
        %v3425 = vadd.f32 %v3424, %v3216
        %v3426 = vadd.f32 %v3425, %v3218
        %v3427 = vadd.f32 %v3426, %v3220
        %v3428 = vadd.f32 %v3427, %v3222
        %v3429 = vadd.f32 %v3428, %v3224
        %v3430 = vadd.f32 %v3429, %v3226
        %v3431 = vadd.f32 %v3430, %v3228
        %v3432 = vadd.f32 %v3431, %v3230
        %v3433 = vadd.f32 %v3432, %v3232
        %v3434 = vadd.f32 %v3433, %v3234
        %v3435 = vadd.f32 %v3434, %v3236
        %v3436 = vadd.f32 %v3435, %v3238
        %v3437 = vadd.f32 %v3436, %v3240
        %v3438 = vadd.f32 %v3437, %v3242
        %v3439 = vrot.slane %v3438, 4
        %v3440 = vadd.f32 %v3438, %v3439
        %v3441 = vrot.slane %v3440, 2
        %v3442 = vadd.f32 %v3440, %v3441
        %v3443 = vrot.slane %v3442, 1
        %v3444 = vadd.f32 %v3442, %v3443
        %v3445 = vadd.f32 %v3244, %v3246
        %v3446 = vadd.f32 %v3445, %v3248
        %v3447 = vadd.f32 %v3446, %v3250
        %v3448 = vadd.f32 %v3447, %v3252
        %v3449 = vadd.f32 %v3448, %v3254
        %v3450 = vadd.f32 %v3449, %v3256
        %v3451 = vadd.f32 %v3450, %v3258
        %v3452 = vadd.f32 %v3451, %v3260
        %v3453 = vadd.f32 %v3452, %v3262
        %v3454 = vadd.f32 %v3453, %v3264
        %v3455 = vadd.f32 %v3454, %v3266
        %v3456 = vadd.f32 %v3455, %v3268
        %v3457 = vadd.f32 %v3456, %v3270
        %v3458 = vadd.f32 %v3457, %v3272
        %v3459 = vadd.f32 %v3458, %v3274
        %v3460 = vrot.slane %v3459, 4
        %v3461 = vadd.f32 %v3459, %v3460
        %v3462 = vrot.slane %v3461, 2
        %v3463 = vadd.f32 %v3461, %v3462
        %v3464 = vrot.slane %v3463, 1
        %v3465 = vadd.f32 %v3463, %v3464
        %v3466 = vadd.f32 %v3276, %v3278
        %v3467 = vadd.f32 %v3466, %v3280
        %v3468 = vadd.f32 %v3467, %v3282
        %v3469 = vadd.f32 %v3468, %v3284
        %v3470 = vadd.f32 %v3469, %v3286
        %v3471 = vadd.f32 %v3470, %v3288
        %v3472 = vadd.f32 %v3471, %v3290
        %v3473 = vadd.f32 %v3472, %v3292
        %v3474 = vadd.f32 %v3473, %v3294
        %v3475 = vadd.f32 %v3474, %v3296
        %v3476 = vadd.f32 %v3475, %v3298
        %v3477 = vadd.f32 %v3476, %v3300
        %v3478 = vadd.f32 %v3477, %v3302
        %v3479 = vadd.f32 %v3478, %v3304
        %v3480 = vadd.f32 %v3479, %v3306
        %v3481 = vrot.slane %v3480, 4
        %v3482 = vadd.f32 %v3480, %v3481
        %v3483 = vrot.slane %v3482, 2
        %v3484 = vadd.f32 %v3482, %v3483
        %v3485 = vrot.slane %v3484, 1
        %v3486 = vadd.f32 %v3484, %v3485
        %v3487 = vadd.f32 %v3308, %v3310
        %v3488 = vadd.f32 %v3487, %v3312
        %v3489 = vadd.f32 %v3488, %v3314
        %v3490 = vadd.f32 %v3489, %v3316
        %v3491 = vadd.f32 %v3490, %v3318
        %v3492 = vadd.f32 %v3491, %v3320
        %v3493 = vadd.f32 %v3492, %v3322
        %v3494 = vadd.f32 %v3493, %v3324
        %v3495 = vadd.f32 %v3494, %v3326
        %v3496 = vadd.f32 %v3495, %v3328
        %v3497 = vadd.f32 %v3496, %v3330
        %v3498 = vadd.f32 %v3497, %v3332
        %v3499 = vadd.f32 %v3498, %v3334
        %v3500 = vadd.f32 %v3499, %v3336
        %v3501 = vadd.f32 %v3500, %v3338
        %v3502 = vrot.slane %v3501, 4
        %v3503 = vadd.f32 %v3501, %v3502
        %v3504 = vrot.slane %v3503, 2
        %v3505 = vadd.f32 %v3503, %v3504
        %v3506 = vrot.slane %v3505, 1
        %v3507 = vadd.f32 %v3505, %v3506
        %v3508 = vadd.f32 %v3340, %v3342
        %v3509 = vadd.f32 %v3508, %v3344
        %v3510 = vadd.f32 %v3509, %v3346
        %v3511 = vadd.f32 %v3510, %v3348
        %v3512 = vadd.f32 %v3511, %v3350
        %v3513 = vadd.f32 %v3512, %v3352
        %v3514 = vadd.f32 %v3513, %v3354
        %v3515 = vadd.f32 %v3514, %v3356
        %v3516 = vadd.f32 %v3515, %v3358
        %v3517 = vadd.f32 %v3516, %v3360
        %v3518 = vadd.f32 %v3517, %v3362
        %v3519 = vadd.f32 %v3518, %v3364
        %v3520 = vadd.f32 %v3519, %v3366
        %v3521 = vadd.f32 %v3520, %v3368
        %v3522 = vadd.f32 %v3521, %v3370
        %v3523 = vrot.slane %v3522, 4
        %v3524 = vadd.f32 %v3522, %v3523
        %v3525 = vrot.slane %v3524, 2
        %v3526 = vadd.f32 %v3524, %v3525
        %v3527 = vrot.slane %v3526, 1
        %v3528 = vadd.f32 %v3526, %v3527
        %v3529 = vadd.f32 %v3372, %v3374
        %v3530 = vadd.f32 %v3529, %v3376
        %v3531 = vadd.f32 %v3530, %v3378
        %v3532 = vadd.f32 %v3531, %v3380
        %v3533 = vadd.f32 %v3532, %v3382
        %v3534 = vadd.f32 %v3533, %v3384
        %v3535 = vadd.f32 %v3534, %v3386
        %v3536 = vadd.f32 %v3535, %v3388
        %v3537 = vadd.f32 %v3536, %v3390
        %v3538 = vadd.f32 %v3537, %v3392
        %v3539 = vadd.f32 %v3538, %v3394
        %v3540 = vadd.f32 %v3539, %v3396
        %v3541 = vadd.f32 %v3540, %v3398
        %v3542 = vadd.f32 %v3541, %v3400
        %v3543 = vadd.f32 %v3542, %v3402
        %v3544 = vrot.slane %v3543, 4
        %v3545 = vadd.f32 %v3543, %v3544
        %v3546 = vrot.slane %v3545, 2
        %v3547 = vadd.f32 %v3545, %v3546
        %v3548 = vrot.slane %v3547, 1
        %v3549 = vadd.f32 %v3547, %v3548
        %3550 = vadd.xlane.f32.xlu0 %v2124
        %v3551 = vpop.xlane.xlu0 %3550
        %3552 = vadd.xlane.f32.xlu0 %v2126
        %v3553 = vpop.xlane.xlu0 %3552
        %3554 = vadd.xlane.f32.xlu0 %v2128
        %v3555 = vpop.xlane.xlu0 %3554
        %3556 = vadd.xlane.f32.xlu0 %v2130
        %v3557 = vpop.xlane.xlu0 %3556
        %3558 = vadd.xlane.f32.xlu0 %v2132
        %v3559 = vpop.xlane.xlu0 %3558
        %3560 = vadd.xlane.f32.xlu0 %v2134
        %v3561 = vpop.xlane.xlu0 %3560
        %3562 = vadd.xlane.f32.xlu0 %v2136
        %v3563 = vpop.xlane.xlu0 %3562
        %3564 = vadd.xlane.f32.xlu0 %v2138
        %v3565 = vpop.xlane.xlu0 %3564
        %3566 = vadd.xlane.f32.xlu0 %v2140
        %v3567 = vpop.xlane.xlu0 %3566
        %3568 = vadd.xlane.f32.xlu0 %v2142
        %v3569 = vpop.xlane.xlu0 %3568
        %3570 = vadd.xlane.f32.xlu0 %v2144
        %v3571 = vpop.xlane.xlu0 %3570
        %3572 = vadd.xlane.f32.xlu0 %v2146
        %v3573 = vpop.xlane.xlu0 %3572
        %3574 = vadd.xlane.f32.xlu0 %v2148
        %v3575 = vpop.xlane.xlu0 %3574
        %3576 = vadd.xlane.f32.xlu0 %v2150
        %v3577 = vpop.xlane.xlu0 %3576
        %3578 = vadd.xlane.f32.xlu0 %v2152
        %v3579 = vpop.xlane.xlu0 %3578
        %3580 = vadd.xlane.f32.xlu0 %v2154
        %v3581 = vpop.xlane.xlu0 %3580
        %3582 = vadd.xlane.f32.xlu0 %v2155
        %v3583 = vpop.xlane.xlu0 %3582
        %3584 = vadd.xlane.f32.xlu0 %v2156
        %v3585 = vpop.xlane.xlu0 %3584
        %3586 = vadd.xlane.f32.xlu0 %v2157
        %v3587 = vpop.xlane.xlu0 %3586
        %3588 = vadd.xlane.f32.xlu0 %v2158
        %v3589 = vpop.xlane.xlu0 %3588
        %3590 = vadd.xlane.f32.xlu0 %v2159
        %v3591 = vpop.xlane.xlu0 %3590
        %3592 = vadd.xlane.f32.xlu0 %v2160
        %v3593 = vpop.xlane.xlu0 %3592
        %3594 = vadd.xlane.f32.xlu0 %v2161
        %v3595 = vpop.xlane.xlu0 %3594
        %3596 = vadd.xlane.f32.xlu0 %v2162
        %v3597 = vpop.xlane.xlu0 %3596
        %3598 = vadd.xlane.f32.xlu0 %v2163
        %v3599 = vpop.xlane.xlu0 %3598
        %3600 = vadd.xlane.f32.xlu0 %v2164
        %v3601 = vpop.xlane.xlu0 %3600
        %3602 = vadd.xlane.f32.xlu0 %v2165
        %v3603 = vpop.xlane.xlu0 %3602
        %3604 = vadd.xlane.f32.xlu0 %v2166
        %v3605 = vpop.xlane.xlu0 %3604
        %3606 = vadd.xlane.f32.xlu0 %v2167
        %v3607 = vpop.xlane.xlu0 %3606
        %3608 = vadd.xlane.f32.xlu0 %v2168
        %v3609 = vpop.xlane.xlu0 %3608
        %3610 = vadd.xlane.f32.xlu0 %v2169
        %v3611 = vpop.xlane.xlu0 %3610
        %3612 = vadd.xlane.f32.xlu0 %v2170
        %v3613 = vpop.xlane.xlu0 %3612
        %3614 = vadd.xlane.f32.xlu0 %v2171
        %v3615 = vpop.xlane.xlu0 %3614
        %3616 = vadd.xlane.f32.xlu0 %v2172
        %v3617 = vpop.xlane.xlu0 %3616
        %3618 = vadd.xlane.f32.xlu0 %v2173
        %v3619 = vpop.xlane.xlu0 %3618
        %3620 = vadd.xlane.f32.xlu0 %v2174
        %v3621 = vpop.xlane.xlu0 %3620
        %3622 = vadd.xlane.f32.xlu0 %v2175
        %v3623 = vpop.xlane.xlu0 %3622
        %3624 = vadd.xlane.f32.xlu0 %v2176
        %v3625 = vpop.xlane.xlu0 %3624
        %3626 = vadd.xlane.f32.xlu0 %v2177
        %v3627 = vpop.xlane.xlu0 %3626
        %3628 = vadd.xlane.f32.xlu0 %v2178
        %v3629 = vpop.xlane.xlu0 %3628
        %3630 = vadd.xlane.f32.xlu0 %v2179
        %v3631 = vpop.xlane.xlu0 %3630
        %3632 = vadd.xlane.f32.xlu0 %v2180
        %v3633 = vpop.xlane.xlu0 %3632
        %3634 = vadd.xlane.f32.xlu0 %v2181
        %v3635 = vpop.xlane.xlu0 %3634
        %3636 = vadd.xlane.f32.xlu0 %v2182
        %v3637 = vpop.xlane.xlu0 %3636
        %3638 = vadd.xlane.f32.xlu0 %v2183
        %v3639 = vpop.xlane.xlu0 %3638
        %3640 = vadd.xlane.f32.xlu0 %v2184
        %v3641 = vpop.xlane.xlu0 %3640
        %3642 = vadd.xlane.f32.xlu0 %v2185
        %v3643 = vpop.xlane.xlu0 %3642
        %3644 = vadd.xlane.f32.xlu0 %v2186
        %v3645 = vpop.xlane.xlu0 %3644
        %3646 = vadd.xlane.f32.xlu0 %v2187
        %v3647 = vpop.xlane.xlu0 %3646
        %3648 = vadd.xlane.f32.xlu0 %v2188
        %v3649 = vpop.xlane.xlu0 %3648
        %3650 = vadd.xlane.f32.xlu0 %v2189
        %v3651 = vpop.xlane.xlu0 %3650
        %3652 = vadd.xlane.f32.xlu0 %v2190
        %v3653 = vpop.xlane.xlu0 %3652
        %3654 = vadd.xlane.f32.xlu0 %v2191
        %v3655 = vpop.xlane.xlu0 %3654
        %3656 = vadd.xlane.f32.xlu0 %v2192
        %v3657 = vpop.xlane.xlu0 %3656
        %3658 = vadd.xlane.f32.xlu0 %v2193
        %v3659 = vpop.xlane.xlu0 %3658
        %3660 = vadd.xlane.f32.xlu0 %v2194
        %v3661 = vpop.xlane.xlu0 %3660
        %3662 = vadd.xlane.f32.xlu0 %v2195
        %v3663 = vpop.xlane.xlu0 %3662
        %3664 = vadd.xlane.f32.xlu0 %v2196
        %v3665 = vpop.xlane.xlu0 %3664
        %3666 = vadd.xlane.f32.xlu0 %v2197
        %v3667 = vpop.xlane.xlu0 %3666
        %3668 = vadd.xlane.f32.xlu0 %v2198
        %v3669 = vpop.xlane.xlu0 %3668
        %3670 = vadd.xlane.f32.xlu0 %v2199
        %v3671 = vpop.xlane.xlu0 %3670
        %3672 = vadd.xlane.f32.xlu0 %v2200
        %v3673 = vpop.xlane.xlu0 %3672
        %3674 = vadd.xlane.f32.xlu0 %v2201
        %v3675 = vpop.xlane.xlu0 %3674
        %3676 = vadd.xlane.f32.xlu0 %v2202
        %v3677 = vpop.xlane.xlu0 %3676
        %3678 = vadd.xlane.f32.xlu0 %v2203
        %v3679 = vpop.xlane.xlu0 %3678
        %3680 = vadd.xlane.f32.xlu0 %v2204
        %v3681 = vpop.xlane.xlu0 %3680
        %3682 = vadd.xlane.f32.xlu0 %v2205
        %v3683 = vpop.xlane.xlu0 %3682
        %3684 = vadd.xlane.f32.xlu0 %v2206
        %v3685 = vpop.xlane.xlu0 %3684
        %3686 = vadd.xlane.f32.xlu0 %v2207
        %v3687 = vpop.xlane.xlu0 %3686
        %3688 = vadd.xlane.f32.xlu0 %v2208
        %v3689 = vpop.xlane.xlu0 %3688
        %3690 = vadd.xlane.f32.xlu0 %v2209
        %v3691 = vpop.xlane.xlu0 %3690
        %3692 = vadd.xlane.f32.xlu0 %v2210
        %v3693 = vpop.xlane.xlu0 %3692
        %3694 = vadd.xlane.f32.xlu0 %v2211
        %v3695 = vpop.xlane.xlu0 %3694
        %3696 = vadd.xlane.f32.xlu0 %v2212
        %v3697 = vpop.xlane.xlu0 %3696
        %3698 = vadd.xlane.f32.xlu0 %v2213
        %v3699 = vpop.xlane.xlu0 %3698
        %3700 = vadd.xlane.f32.xlu0 %v2214
        %v3701 = vpop.xlane.xlu0 %3700
        %3702 = vadd.xlane.f32.xlu0 %v2215
        %v3703 = vpop.xlane.xlu0 %3702
        %3704 = vadd.xlane.f32.xlu0 %v2216
        %v3705 = vpop.xlane.xlu0 %3704
        %3706 = vadd.xlane.f32.xlu0 %v2217
        %v3707 = vpop.xlane.xlu0 %3706
        %3708 = vadd.xlane.f32.xlu0 %v2218
        %v3709 = vpop.xlane.xlu0 %3708
        %3710 = vadd.xlane.f32.xlu0 %v2219
        %v3711 = vpop.xlane.xlu0 %3710
        %3712 = vadd.xlane.f32.xlu0 %v2220
        %v3713 = vpop.xlane.xlu0 %3712
        %3714 = vadd.xlane.f32.xlu0 %v2221
        %v3715 = vpop.xlane.xlu0 %3714
        %3716 = vadd.xlane.f32.xlu0 %v2222
        %v3717 = vpop.xlane.xlu0 %3716
        %3718 = vadd.xlane.f32.xlu0 %v2223
        %v3719 = vpop.xlane.xlu0 %3718
        %3720 = vadd.xlane.f32.xlu0 %v2224
        %v3721 = vpop.xlane.xlu0 %3720
        %3722 = vadd.xlane.f32.xlu0 %v2225
        %v3723 = vpop.xlane.xlu0 %3722
        %3724 = vadd.xlane.f32.xlu0 %v2226
        %v3725 = vpop.xlane.xlu0 %3724
        %3726 = vadd.xlane.f32.xlu0 %v2227
        %v3727 = vpop.xlane.xlu0 %3726
        %3728 = vadd.xlane.f32.xlu0 %v2228
        %v3729 = vpop.xlane.xlu0 %3728
        %3730 = vadd.xlane.f32.xlu0 %v2229
        %v3731 = vpop.xlane.xlu0 %3730
        %3732 = vadd.xlane.f32.xlu0 %v2230
        %v3733 = vpop.xlane.xlu0 %3732
        %3734 = vadd.xlane.f32.xlu0 %v2231
        %v3735 = vpop.xlane.xlu0 %3734
        %3736 = vadd.xlane.f32.xlu0 %v2232
        %v3737 = vpop.xlane.xlu0 %3736
        %3738 = vadd.xlane.f32.xlu0 %v2233
        %v3739 = vpop.xlane.xlu0 %3738
        %3740 = vadd.xlane.f32.xlu0 %v2234
        %v3741 = vpop.xlane.xlu0 %3740
        %3742 = vadd.xlane.f32.xlu0 %v2235
        %v3743 = vpop.xlane.xlu0 %3742
        %3744 = vadd.xlane.f32.xlu0 %v2236
        %v3745 = vpop.xlane.xlu0 %3744
        %3746 = vadd.xlane.f32.xlu0 %v2237
        %v3747 = vpop.xlane.xlu0 %3746
        %3748 = vadd.xlane.f32.xlu0 %v2238
        %v3749 = vpop.xlane.xlu0 %3748
        %3750 = vadd.xlane.f32.xlu0 %v2239
        %v3751 = vpop.xlane.xlu0 %3750
        %3752 = vadd.xlane.f32.xlu0 %v2240
        %v3753 = vpop.xlane.xlu0 %3752
        %3754 = vadd.xlane.f32.xlu0 %v2241
        %v3755 = vpop.xlane.xlu0 %3754
        %3756 = vadd.xlane.f32.xlu0 %v2242
        %v3757 = vpop.xlane.xlu0 %3756
        %3758 = vadd.xlane.f32.xlu0 %v2243
        %v3759 = vpop.xlane.xlu0 %3758
        %3760 = vadd.xlane.f32.xlu0 %v2244
        %v3761 = vpop.xlane.xlu0 %3760
        %3762 = vadd.xlane.f32.xlu0 %v2245
        %v3763 = vpop.xlane.xlu0 %3762
        %3764 = vadd.xlane.f32.xlu0 %v2246
        %v3765 = vpop.xlane.xlu0 %3764
        %3766 = vadd.xlane.f32.xlu0 %v2247
        %v3767 = vpop.xlane.xlu0 %3766
        %3768 = vadd.xlane.f32.xlu0 %v2248
        %v3769 = vpop.xlane.xlu0 %3768
        %3770 = vadd.xlane.f32.xlu0 %v2249
        %v3771 = vpop.xlane.xlu0 %3770
        %3772 = vadd.xlane.f32.xlu0 %v2250
        %v3773 = vpop.xlane.xlu0 %3772
        %v3774 = vadd.f32 %v3551, %v3553
        %v3775 = vadd.f32 %v3774, %v3555
        %v3776 = vadd.f32 %v3775, %v3557
        %v3777 = vadd.f32 %v3776, %v3559
        %v3778 = vadd.f32 %v3777, %v3561
        %v3779 = vadd.f32 %v3778, %v3563
        %v3780 = vadd.f32 %v3779, %v3565
        %v3781 = vadd.f32 %v3780, %v3567
        %v3782 = vadd.f32 %v3781, %v3569
        %v3783 = vadd.f32 %v3782, %v3571
        %v3784 = vadd.f32 %v3783, %v3573
        %v3785 = vadd.f32 %v3784, %v3575
        %v3786 = vadd.f32 %v3785, %v3577
        %v3787 = vadd.f32 %v3786, %v3579
        %v3788 = vadd.f32 %v3787, %v3581
        %v3789 = vrot.slane %v3788, 4
        %v3790 = vadd.f32 %v3788, %v3789
        %v3791 = vrot.slane %v3790, 2
        %v3792 = vadd.f32 %v3790, %v3791
        %v3793 = vrot.slane %v3792, 1
        %v3794 = vadd.f32 %v3792, %v3793
        %v3795 = vadd.f32 %v3583, %v3585
        %v3796 = vadd.f32 %v3795, %v3587
        %v3797 = vadd.f32 %v3796, %v3589
        %v3798 = vadd.f32 %v3797, %v3591
        %v3799 = vadd.f32 %v3798, %v3593
        %v3800 = vadd.f32 %v3799, %v3595
        %v3801 = vadd.f32 %v3800, %v3597
        %v3802 = vadd.f32 %v3801, %v3599
        %v3803 = vadd.f32 %v3802, %v3601
        %v3804 = vadd.f32 %v3803, %v3603
        %v3805 = vadd.f32 %v3804, %v3605
        %v3806 = vadd.f32 %v3805, %v3607
        %v3807 = vadd.f32 %v3806, %v3609
        %v3808 = vadd.f32 %v3807, %v3611
        %v3809 = vadd.f32 %v3808, %v3613
        %v3810 = vrot.slane %v3809, 4
        %v3811 = vadd.f32 %v3809, %v3810
        %v3812 = vrot.slane %v3811, 2
        %v3813 = vadd.f32 %v3811, %v3812
        %v3814 = vrot.slane %v3813, 1
        %v3815 = vadd.f32 %v3813, %v3814
        %v3816 = vadd.f32 %v3615, %v3617
        %v3817 = vadd.f32 %v3816, %v3619
        %v3818 = vadd.f32 %v3817, %v3621
        %v3819 = vadd.f32 %v3818, %v3623
        %v3820 = vadd.f32 %v3819, %v3625
        %v3821 = vadd.f32 %v3820, %v3627
        %v3822 = vadd.f32 %v3821, %v3629
        %v3823 = vadd.f32 %v3822, %v3631
        %v3824 = vadd.f32 %v3823, %v3633
        %v3825 = vadd.f32 %v3824, %v3635
        %v3826 = vadd.f32 %v3825, %v3637
        %v3827 = vadd.f32 %v3826, %v3639
        %v3828 = vadd.f32 %v3827, %v3641
        %v3829 = vadd.f32 %v3828, %v3643
        %v3830 = vadd.f32 %v3829, %v3645
        %v3831 = vrot.slane %v3830, 4
        %v3832 = vadd.f32 %v3830, %v3831
        %v3833 = vrot.slane %v3832, 2
        %v3834 = vadd.f32 %v3832, %v3833
        %v3835 = vrot.slane %v3834, 1
        %v3836 = vadd.f32 %v3834, %v3835
        %v3837 = vadd.f32 %v3647, %v3649
        %v3838 = vadd.f32 %v3837, %v3651
        %v3839 = vadd.f32 %v3838, %v3653
        %v3840 = vadd.f32 %v3839, %v3655
        %v3841 = vadd.f32 %v3840, %v3657
        %v3842 = vadd.f32 %v3841, %v3659
        %v3843 = vadd.f32 %v3842, %v3661
        %v3844 = vadd.f32 %v3843, %v3663
        %v3845 = vadd.f32 %v3844, %v3665
        %v3846 = vadd.f32 %v3845, %v3667
        %v3847 = vadd.f32 %v3846, %v3669
        %v3848 = vadd.f32 %v3847, %v3671
        %v3849 = vadd.f32 %v3848, %v3673
        %v3850 = vadd.f32 %v3849, %v3675
        %v3851 = vadd.f32 %v3850, %v3677
        %v3852 = vrot.slane %v3851, 4
        %v3853 = vadd.f32 %v3851, %v3852
        %v3854 = vrot.slane %v3853, 2
        %v3855 = vadd.f32 %v3853, %v3854
        %v3856 = vrot.slane %v3855, 1
        %v3857 = vadd.f32 %v3855, %v3856
        %v3858 = vadd.f32 %v3679, %v3681
        %v3859 = vadd.f32 %v3858, %v3683
        %v3860 = vadd.f32 %v3859, %v3685
        %v3861 = vadd.f32 %v3860, %v3687
        %v3862 = vadd.f32 %v3861, %v3689
        %v3863 = vadd.f32 %v3862, %v3691
        %v3864 = vadd.f32 %v3863, %v3693
        %v3865 = vadd.f32 %v3864, %v3695
        %v3866 = vadd.f32 %v3865, %v3697
        %v3867 = vadd.f32 %v3866, %v3699
        %v3868 = vadd.f32 %v3867, %v3701
        %v3869 = vadd.f32 %v3868, %v3703
        %v3870 = vadd.f32 %v3869, %v3705
        %v3871 = vadd.f32 %v3870, %v3707
        %v3872 = vadd.f32 %v3871, %v3709
        %v3873 = vrot.slane %v3872, 4
        %v3874 = vadd.f32 %v3872, %v3873
        %v3875 = vrot.slane %v3874, 2
        %v3876 = vadd.f32 %v3874, %v3875
        %v3877 = vrot.slane %v3876, 1
        %v3878 = vadd.f32 %v3876, %v3877
        %v3879 = vadd.f32 %v3711, %v3713
        %v3880 = vadd.f32 %v3879, %v3715
        %v3881 = vadd.f32 %v3880, %v3717
        %v3882 = vadd.f32 %v3881, %v3719
        %v3883 = vadd.f32 %v3882, %v3721
        %v3884 = vadd.f32 %v3883, %v3723
        %v3885 = vadd.f32 %v3884, %v3725
        %v3886 = vadd.f32 %v3885, %v3727
        %v3887 = vadd.f32 %v3886, %v3729
        %v3888 = vadd.f32 %v3887, %v3731
        %v3889 = vadd.f32 %v3888, %v3733
        %v3890 = vadd.f32 %v3889, %v3735
        %v3891 = vadd.f32 %v3890, %v3737
        %v3892 = vadd.f32 %v3891, %v3739
        %v3893 = vadd.f32 %v3892, %v3741
        %v3894 = vrot.slane %v3893, 4
        %v3895 = vadd.f32 %v3893, %v3894
        %v3896 = vrot.slane %v3895, 2
        %v3897 = vadd.f32 %v3895, %v3896
        %v3898 = vrot.slane %v3897, 1
        %v3899 = vadd.f32 %v3897, %v3898
        %v3900 = vadd.f32 %v3743, %v3745
        %v3901 = vadd.f32 %v3900, %v3747
        %v3902 = vadd.f32 %v3901, %v3749
        %v3903 = vadd.f32 %v3902, %v3751
        %v3904 = vadd.f32 %v3903, %v3753
        %v3905 = vadd.f32 %v3904, %v3755
        %v3906 = vadd.f32 %v3905, %v3757
        %v3907 = vadd.f32 %v3906, %v3759
        %v3908 = vadd.f32 %v3907, %v3761
        %v3909 = vadd.f32 %v3908, %v3763
        %v3910 = vadd.f32 %v3909, %v3765
        %v3911 = vadd.f32 %v3910, %v3767
        %v3912 = vadd.f32 %v3911, %v3769
        %v3913 = vadd.f32 %v3912, %v3771
        %v3914 = vadd.f32 %v3913, %v3773
        %v3915 = vrot.slane %v3914, 4
        %v3916 = vadd.f32 %v3914, %v3915
        %v3917 = vrot.slane %v3916, 2
        %v3918 = vadd.f32 %v3916, %v3917
        %v3919 = vrot.slane %v3918, 1
        %v3920 = vadd.f32 %v3918, %v3919
        %3921 = vadd.xlane.f32.xlu0 %v2491
        %v3922 = vpop.xlane.xlu0 %3921
        %3923 = vadd.xlane.f32.xlu0 %v2492
        %v3924 = vpop.xlane.xlu0 %3923
        %3925 = vadd.xlane.f32.xlu0 %v2493
        %v3926 = vpop.xlane.xlu0 %3925
        %3927 = vadd.xlane.f32.xlu0 %v2494
        %v3928 = vpop.xlane.xlu0 %3927
        %3929 = vadd.xlane.f32.xlu0 %v2495
        %v3930 = vpop.xlane.xlu0 %3929
        %3931 = vadd.xlane.f32.xlu0 %v2496
        %v3932 = vpop.xlane.xlu0 %3931
        %3933 = vadd.xlane.f32.xlu0 %v2497
        %v3934 = vpop.xlane.xlu0 %3933
        %3935 = vadd.xlane.f32.xlu0 %v2498
        %v3936 = vpop.xlane.xlu0 %3935
        %3937 = vadd.xlane.f32.xlu0 %v2499
        %v3938 = vpop.xlane.xlu0 %3937
        %3939 = vadd.xlane.f32.xlu0 %v2500
        %v3940 = vpop.xlane.xlu0 %3939
        %3941 = vadd.xlane.f32.xlu0 %v2501
        %v3942 = vpop.xlane.xlu0 %3941
        %3943 = vadd.xlane.f32.xlu0 %v2502
        %v3944 = vpop.xlane.xlu0 %3943
        %3945 = vadd.xlane.f32.xlu0 %v2503
        %v3946 = vpop.xlane.xlu0 %3945
        %3947 = vadd.xlane.f32.xlu0 %v2504
        %v3948 = vpop.xlane.xlu0 %3947
        %3949 = vadd.xlane.f32.xlu0 %v2505
        %v3950 = vpop.xlane.xlu0 %3949
        %3951 = vadd.xlane.f32.xlu0 %v2506
        %v3952 = vpop.xlane.xlu0 %3951
        %3953 = vadd.xlane.f32.xlu0 %v2507
        %v3954 = vpop.xlane.xlu0 %3953
        %3955 = vadd.xlane.f32.xlu0 %v2508
        %v3956 = vpop.xlane.xlu0 %3955
        %3957 = vadd.xlane.f32.xlu0 %v2509
        %v3958 = vpop.xlane.xlu0 %3957
        %3959 = vadd.xlane.f32.xlu0 %v2510
        %v3960 = vpop.xlane.xlu0 %3959
        %3961 = vadd.xlane.f32.xlu0 %v2511
        %v3962 = vpop.xlane.xlu0 %3961
        %3963 = vadd.xlane.f32.xlu0 %v2512
        %v3964 = vpop.xlane.xlu0 %3963
        %3965 = vadd.xlane.f32.xlu0 %v2513
        %v3966 = vpop.xlane.xlu0 %3965
        %3967 = vadd.xlane.f32.xlu0 %v2514
        %v3968 = vpop.xlane.xlu0 %3967
        %3969 = vadd.xlane.f32.xlu0 %v2515
        %v3970 = vpop.xlane.xlu0 %3969
        %3971 = vadd.xlane.f32.xlu0 %v2516
        %v3972 = vpop.xlane.xlu0 %3971
        %3973 = vadd.xlane.f32.xlu0 %v2517
        %v3974 = vpop.xlane.xlu0 %3973
        %3975 = vadd.xlane.f32.xlu0 %v2518
        %v3976 = vpop.xlane.xlu0 %3975
        %3977 = vadd.xlane.f32.xlu0 %v2519
        %v3978 = vpop.xlane.xlu0 %3977
        %3979 = vadd.xlane.f32.xlu0 %v2520
        %v3980 = vpop.xlane.xlu0 %3979
        %3981 = vadd.xlane.f32.xlu0 %v2521
        %v3982 = vpop.xlane.xlu0 %3981
        %3983 = vadd.xlane.f32.xlu0 %v2522
        %v3984 = vpop.xlane.xlu0 %3983
        %3985 = vadd.xlane.f32.xlu0 %v2523
        %v3986 = vpop.xlane.xlu0 %3985
        %3987 = vadd.xlane.f32.xlu0 %v2524
        %v3988 = vpop.xlane.xlu0 %3987
        %3989 = vadd.xlane.f32.xlu0 %v2525
        %v3990 = vpop.xlane.xlu0 %3989
        %3991 = vadd.xlane.f32.xlu0 %v2526
        %v3992 = vpop.xlane.xlu0 %3991
        %3993 = vadd.xlane.f32.xlu0 %v2527
        %v3994 = vpop.xlane.xlu0 %3993
        %3995 = vadd.xlane.f32.xlu0 %v2528
        %v3996 = vpop.xlane.xlu0 %3995
        %3997 = vadd.xlane.f32.xlu0 %v2529
        %v3998 = vpop.xlane.xlu0 %3997
        %3999 = vadd.xlane.f32.xlu0 %v2530
        %v4000 = vpop.xlane.xlu0 %3999
        %4001 = vadd.xlane.f32.xlu0 %v2531
        %v4002 = vpop.xlane.xlu0 %4001
        %4003 = vadd.xlane.f32.xlu0 %v2532
        %v4004 = vpop.xlane.xlu0 %4003
        %4005 = vadd.xlane.f32.xlu0 %v2533
        %v4006 = vpop.xlane.xlu0 %4005
        %4007 = vadd.xlane.f32.xlu0 %v2534
        %v4008 = vpop.xlane.xlu0 %4007
        %4009 = vadd.xlane.f32.xlu0 %v2535
        %v4010 = vpop.xlane.xlu0 %4009
        %4011 = vadd.xlane.f32.xlu0 %v2536
        %v4012 = vpop.xlane.xlu0 %4011
        %4013 = vadd.xlane.f32.xlu0 %v2537
        %v4014 = vpop.xlane.xlu0 %4013
        %4015 = vadd.xlane.f32.xlu0 %v2538
        %v4016 = vpop.xlane.xlu0 %4015
        %4017 = vadd.xlane.f32.xlu0 %v2539
        %v4018 = vpop.xlane.xlu0 %4017
        %4019 = vadd.xlane.f32.xlu0 %v2540
        %v4020 = vpop.xlane.xlu0 %4019
        %4021 = vadd.xlane.f32.xlu0 %v2541
        %v4022 = vpop.xlane.xlu0 %4021
        %4023 = vadd.xlane.f32.xlu0 %v2542
        %v4024 = vpop.xlane.xlu0 %4023
        %4025 = vadd.xlane.f32.xlu0 %v2543
        %v4026 = vpop.xlane.xlu0 %4025
        %4027 = vadd.xlane.f32.xlu0 %v2544
        %v4028 = vpop.xlane.xlu0 %4027
        %4029 = vadd.xlane.f32.xlu0 %v2545
        %v4030 = vpop.xlane.xlu0 %4029
        %4031 = vadd.xlane.f32.xlu0 %v2546
        %v4032 = vpop.xlane.xlu0 %4031
        %4033 = vadd.xlane.f32.xlu0 %v2547
        %v4034 = vpop.xlane.xlu0 %4033
        %4035 = vadd.xlane.f32.xlu0 %v2548
        %v4036 = vpop.xlane.xlu0 %4035
        %4037 = vadd.xlane.f32.xlu0 %v2549
        %v4038 = vpop.xlane.xlu0 %4037
        %4039 = vadd.xlane.f32.xlu0 %v2550
        %v4040 = vpop.xlane.xlu0 %4039
        %4041 = vadd.xlane.f32.xlu0 %v2551
        %v4042 = vpop.xlane.xlu0 %4041
        %4043 = vadd.xlane.f32.xlu0 %v2552
        %v4044 = vpop.xlane.xlu0 %4043
        %4045 = vadd.xlane.f32.xlu0 %v2553
        %v4046 = vpop.xlane.xlu0 %4045
        %4047 = vadd.xlane.f32.xlu0 %v2554
        %v4048 = vpop.xlane.xlu0 %4047
        %4049 = vadd.xlane.f32.xlu0 %v2555
        %v4050 = vpop.xlane.xlu0 %4049
        %4051 = vadd.xlane.f32.xlu0 %v2556
        %v4052 = vpop.xlane.xlu0 %4051
        %4053 = vadd.xlane.f32.xlu0 %v2557
        %v4054 = vpop.xlane.xlu0 %4053
        %4055 = vadd.xlane.f32.xlu0 %v2558
        %v4056 = vpop.xlane.xlu0 %4055
        %4057 = vadd.xlane.f32.xlu0 %v2559
        %v4058 = vpop.xlane.xlu0 %4057
        %4059 = vadd.xlane.f32.xlu0 %v2560
        %v4060 = vpop.xlane.xlu0 %4059
        %4061 = vadd.xlane.f32.xlu0 %v2561
        %v4062 = vpop.xlane.xlu0 %4061
        %4063 = vadd.xlane.f32.xlu0 %v2562
        %v4064 = vpop.xlane.xlu0 %4063
        %4065 = vadd.xlane.f32.xlu0 %v2563
        %v4066 = vpop.xlane.xlu0 %4065
        %4067 = vadd.xlane.f32.xlu0 %v2564
        %v4068 = vpop.xlane.xlu0 %4067
        %4069 = vadd.xlane.f32.xlu0 %v2565
        %v4070 = vpop.xlane.xlu0 %4069
        %4071 = vadd.xlane.f32.xlu0 %v2566
        %v4072 = vpop.xlane.xlu0 %4071
        %4073 = vadd.xlane.f32.xlu0 %v2567
        %v4074 = vpop.xlane.xlu0 %4073
        %4075 = vadd.xlane.f32.xlu0 %v2568
        %v4076 = vpop.xlane.xlu0 %4075
        %4077 = vadd.xlane.f32.xlu0 %v2569
        %v4078 = vpop.xlane.xlu0 %4077
        %4079 = vadd.xlane.f32.xlu0 %v2570
        %v4080 = vpop.xlane.xlu0 %4079
        %4081 = vadd.xlane.f32.xlu0 %v2571
        %v4082 = vpop.xlane.xlu0 %4081
        %4083 = vadd.xlane.f32.xlu0 %v2572
        %v4084 = vpop.xlane.xlu0 %4083
        %4085 = vadd.xlane.f32.xlu0 %v2573
        %v4086 = vpop.xlane.xlu0 %4085
        %4087 = vadd.xlane.f32.xlu0 %v2574
        %v4088 = vpop.xlane.xlu0 %4087
        %4089 = vadd.xlane.f32.xlu0 %v2575
        %v4090 = vpop.xlane.xlu0 %4089
        %4091 = vadd.xlane.f32.xlu0 %v2576
        %v4092 = vpop.xlane.xlu0 %4091
        %4093 = vadd.xlane.f32.xlu0 %v2577
        %v4094 = vpop.xlane.xlu0 %4093
        %4095 = vadd.xlane.f32.xlu0 %v2578
        %v4096 = vpop.xlane.xlu0 %4095
        %4097 = vadd.xlane.f32.xlu0 %v2579
        %v4098 = vpop.xlane.xlu0 %4097
        %4099 = vadd.xlane.f32.xlu0 %v2580
        %v4100 = vpop.xlane.xlu0 %4099
        %4101 = vadd.xlane.f32.xlu0 %v2581
        %v4102 = vpop.xlane.xlu0 %4101
        %4103 = vadd.xlane.f32.xlu0 %v2582
        %v4104 = vpop.xlane.xlu0 %4103
        %4105 = vadd.xlane.f32.xlu0 %v2583
        %v4106 = vpop.xlane.xlu0 %4105
        %4107 = vadd.xlane.f32.xlu0 %v2584
        %v4108 = vpop.xlane.xlu0 %4107
        %4109 = vadd.xlane.f32.xlu0 %v2585
        %v4110 = vpop.xlane.xlu0 %4109
        %4111 = vadd.xlane.f32.xlu0 %v2586
        %v4112 = vpop.xlane.xlu0 %4111
        %4113 = vadd.xlane.f32.xlu0 %v2587
        %v4114 = vpop.xlane.xlu0 %4113
        %4115 = vadd.xlane.f32.xlu0 %v2588
        %v4116 = vpop.xlane.xlu0 %4115
        %4117 = vadd.xlane.f32.xlu0 %v2589
        %v4118 = vpop.xlane.xlu0 %4117
        %4119 = vadd.xlane.f32.xlu0 %v2590
        %v4120 = vpop.xlane.xlu0 %4119
        %4121 = vadd.xlane.f32.xlu0 %v2591
        %v4122 = vpop.xlane.xlu0 %4121
        %4123 = vadd.xlane.f32.xlu0 %v2592
        %v4124 = vpop.xlane.xlu0 %4123
        %4125 = vadd.xlane.f32.xlu0 %v2593
        %v4126 = vpop.xlane.xlu0 %4125
        %4127 = vadd.xlane.f32.xlu0 %v2594
        %v4128 = vpop.xlane.xlu0 %4127
        %4129 = vadd.xlane.f32.xlu0 %v2595
        %v4130 = vpop.xlane.xlu0 %4129
        %4131 = vadd.xlane.f32.xlu0 %v2596
        %v4132 = vpop.xlane.xlu0 %4131
        %4133 = vadd.xlane.f32.xlu0 %v2597
        %v4134 = vpop.xlane.xlu0 %4133
        %4135 = vadd.xlane.f32.xlu0 %v2598
        %v4136 = vpop.xlane.xlu0 %4135
        %4137 = vadd.xlane.f32.xlu0 %v2599
        %v4138 = vpop.xlane.xlu0 %4137
        %4139 = vadd.xlane.f32.xlu0 %v2600
        %v4140 = vpop.xlane.xlu0 %4139
        %4141 = vadd.xlane.f32.xlu0 %v2601
        %v4142 = vpop.xlane.xlu0 %4141
        %4143 = vadd.xlane.f32.xlu0 %v2602
        %v4144 = vpop.xlane.xlu0 %4143
        %v4145 = vadd.f32 %v3922, %v3924
        %v4146 = vadd.f32 %v4145, %v3926
        %v4147 = vadd.f32 %v4146, %v3928
        %v4148 = vadd.f32 %v4147, %v3930
        %v4149 = vadd.f32 %v4148, %v3932
        %v4150 = vadd.f32 %v4149, %v3934
        %v4151 = vadd.f32 %v4150, %v3936
        %v4152 = vadd.f32 %v4151, %v3938
        %v4153 = vadd.f32 %v4152, %v3940
        %v4154 = vadd.f32 %v4153, %v3942
        %v4155 = vadd.f32 %v4154, %v3944
        %v4156 = vadd.f32 %v4155, %v3946
        %v4157 = vadd.f32 %v4156, %v3948
        %v4158 = vadd.f32 %v4157, %v3950
        %v4159 = vadd.f32 %v4158, %v3952
        %v4160 = vrot.slane %v4159, 4
        %v4161 = vadd.f32 %v4159, %v4160
        %v4162 = vrot.slane %v4161, 2
        %v4163 = vadd.f32 %v4161, %v4162
        %v4164 = vrot.slane %v4163, 1
        %v4165 = vadd.f32 %v4163, %v4164
        %v4166 = vadd.f32 %v3954, %v3956
        %v4167 = vadd.f32 %v4166, %v3958
        %v4168 = vadd.f32 %v4167, %v3960
        %v4169 = vadd.f32 %v4168, %v3962
        %v4170 = vadd.f32 %v4169, %v3964
        %v4171 = vadd.f32 %v4170, %v3966
        %v4172 = vadd.f32 %v4171, %v3968
        %v4173 = vadd.f32 %v4172, %v3970
        %v4174 = vadd.f32 %v4173, %v3972
        %v4175 = vadd.f32 %v4174, %v3974
        %v4176 = vadd.f32 %v4175, %v3976
        %v4177 = vadd.f32 %v4176, %v3978
        %v4178 = vadd.f32 %v4177, %v3980
        %v4179 = vadd.f32 %v4178, %v3982
        %v4180 = vadd.f32 %v4179, %v3984
        %v4181 = vrot.slane %v4180, 4
        %v4182 = vadd.f32 %v4180, %v4181
        %v4183 = vrot.slane %v4182, 2
        %v4184 = vadd.f32 %v4182, %v4183
        %v4185 = vrot.slane %v4184, 1
        %v4186 = vadd.f32 %v4184, %v4185
        %v4187 = vadd.f32 %v3986, %v3988
        %v4188 = vadd.f32 %v4187, %v3990
        %v4189 = vadd.f32 %v4188, %v3992
        %v4190 = vadd.f32 %v4189, %v3994
        %v4191 = vadd.f32 %v4190, %v3996
        %v4192 = vadd.f32 %v4191, %v3998
        %v4193 = vadd.f32 %v4192, %v4000
        %v4194 = vadd.f32 %v4193, %v4002
        %v4195 = vadd.f32 %v4194, %v4004
        %v4196 = vadd.f32 %v4195, %v4006
        %v4197 = vadd.f32 %v4196, %v4008
        %v4198 = vadd.f32 %v4197, %v4010
        %v4199 = vadd.f32 %v4198, %v4012
        %v4200 = vadd.f32 %v4199, %v4014
        %v4201 = vadd.f32 %v4200, %v4016
        %v4202 = vrot.slane %v4201, 4
        %v4203 = vadd.f32 %v4201, %v4202
        %v4204 = vrot.slane %v4203, 2
        %v4205 = vadd.f32 %v4203, %v4204
        %v4206 = vrot.slane %v4205, 1
        %v4207 = vadd.f32 %v4205, %v4206
        %v4208 = vadd.f32 %v4018, %v4020
        %v4209 = vadd.f32 %v4208, %v4022
        %v4210 = vadd.f32 %v4209, %v4024
        %v4211 = vadd.f32 %v4210, %v4026
        %v4212 = vadd.f32 %v4211, %v4028
        %v4213 = vadd.f32 %v4212, %v4030
        %v4214 = vadd.f32 %v4213, %v4032
        %v4215 = vadd.f32 %v4214, %v4034
        %v4216 = vadd.f32 %v4215, %v4036
        %v4217 = vadd.f32 %v4216, %v4038
        %v4218 = vadd.f32 %v4217, %v4040
        %v4219 = vadd.f32 %v4218, %v4042
        %v4220 = vadd.f32 %v4219, %v4044
        %v4221 = vadd.f32 %v4220, %v4046
        %v4222 = vadd.f32 %v4221, %v4048
        %v4223 = vrot.slane %v4222, 4
        %v4224 = vadd.f32 %v4222, %v4223
        %v4225 = vrot.slane %v4224, 2
        %v4226 = vadd.f32 %v4224, %v4225
        %v4227 = vrot.slane %v4226, 1
        %v4228 = vadd.f32 %v4226, %v4227
        %v4229 = vadd.f32 %v4050, %v4052
        %v4230 = vadd.f32 %v4229, %v4054
        %v4231 = vadd.f32 %v4230, %v4056
        %v4232 = vadd.f32 %v4231, %v4058
        %v4233 = vadd.f32 %v4232, %v4060
        %v4234 = vadd.f32 %v4233, %v4062
        %v4235 = vadd.f32 %v4234, %v4064
        %v4236 = vadd.f32 %v4235, %v4066
        %v4237 = vadd.f32 %v4236, %v4068
        %v4238 = vadd.f32 %v4237, %v4070
        %v4239 = vadd.f32 %v4238, %v4072
        %v4240 = vadd.f32 %v4239, %v4074
        %v4241 = vadd.f32 %v4240, %v4076
        %v4242 = vadd.f32 %v4241, %v4078
        %v4243 = vadd.f32 %v4242, %v4080
        %v4244 = vrot.slane %v4243, 4
        %v4245 = vadd.f32 %v4243, %v4244
        %v4246 = vrot.slane %v4245, 2
        %v4247 = vadd.f32 %v4245, %v4246
        %v4248 = vrot.slane %v4247, 1
        %v4249 = vadd.f32 %v4247, %v4248
        %v4250 = vadd.f32 %v4082, %v4084
        %v4251 = vadd.f32 %v4250, %v4086
        %v4252 = vadd.f32 %v4251, %v4088
        %v4253 = vadd.f32 %v4252, %v4090
        %v4254 = vadd.f32 %v4253, %v4092
        %v4255 = vadd.f32 %v4254, %v4094
        %v4256 = vadd.f32 %v4255, %v4096
        %v4257 = vadd.f32 %v4256, %v4098
        %v4258 = vadd.f32 %v4257, %v4100
        %v4259 = vadd.f32 %v4258, %v4102
        %v4260 = vadd.f32 %v4259, %v4104
        %v4261 = vadd.f32 %v4260, %v4106
        %v4262 = vadd.f32 %v4261, %v4108
        %v4263 = vadd.f32 %v4262, %v4110
        %v4264 = vadd.f32 %v4263, %v4112
        %v4265 = vrot.slane %v4264, 4
        %v4266 = vadd.f32 %v4264, %v4265
        %v4267 = vrot.slane %v4266, 2
        %v4268 = vadd.f32 %v4266, %v4267
        %v4269 = vrot.slane %v4268, 1
        %v4270 = vadd.f32 %v4268, %v4269
        %v4271 = vadd.f32 %v4114, %v4116
        %v4272 = vadd.f32 %v4271, %v4118
        %v4273 = vadd.f32 %v4272, %v4120
        %v4274 = vadd.f32 %v4273, %v4122
        %v4275 = vadd.f32 %v4274, %v4124
        %v4276 = vadd.f32 %v4275, %v4126
        %v4277 = vadd.f32 %v4276, %v4128
        %v4278 = vadd.f32 %v4277, %v4130
        %v4279 = vadd.f32 %v4278, %v4132
        %v4280 = vadd.f32 %v4279, %v4134
        %v4281 = vadd.f32 %v4280, %v4136
        %v4282 = vadd.f32 %v4281, %v4138
        %v4283 = vadd.f32 %v4282, %v4140
        %v4284 = vadd.f32 %v4283, %v4142
        %v4285 = vadd.f32 %v4284, %v4144
        %v4286 = vrot.slane %v4285, 4
        %v4287 = vadd.f32 %v4285, %v4286
        %v4288 = vrot.slane %v4287, 2
        %v4289 = vadd.f32 %v4287, %v4288
        %v4290 = vrot.slane %v4289, 1
        %v4291 = vadd.f32 %v4289, %v4290
        %4292 = vadd.xlane.f32.xlu0 %v2955
        %v4293 = vpop.xlane.xlu0 %4292
        %4294 = vadd.xlane.f32.xlu0 %v2956
        %v4295 = vpop.xlane.xlu0 %4294
        %4296 = vadd.xlane.f32.xlu0 %v2957
        %v4297 = vpop.xlane.xlu0 %4296
        %4298 = vadd.xlane.f32.xlu0 %v2958
        %v4299 = vpop.xlane.xlu0 %4298
        %4300 = vadd.xlane.f32.xlu0 %v2959
        %v4301 = vpop.xlane.xlu0 %4300
        %4302 = vadd.xlane.f32.xlu0 %v2960
        %v4303 = vpop.xlane.xlu0 %4302
        %4304 = vadd.xlane.f32.xlu0 %v2961
        %v4305 = vpop.xlane.xlu0 %4304
        %4306 = vadd.xlane.f32.xlu0 %v2962
        %v4307 = vpop.xlane.xlu0 %4306
        %4308 = vadd.xlane.f32.xlu0 %v2963
        %v4309 = vpop.xlane.xlu0 %4308
        %4310 = vadd.xlane.f32.xlu0 %v2964
        %v4311 = vpop.xlane.xlu0 %4310
        %4312 = vadd.xlane.f32.xlu0 %v2965
        %v4313 = vpop.xlane.xlu0 %4312
        %4314 = vadd.xlane.f32.xlu0 %v2966
        %v4315 = vpop.xlane.xlu0 %4314
        %4316 = vadd.xlane.f32.xlu0 %v2967
        %v4317 = vpop.xlane.xlu0 %4316
        %4318 = vadd.xlane.f32.xlu0 %v2968
        %v4319 = vpop.xlane.xlu0 %4318
        %4320 = vadd.xlane.f32.xlu0 %v2969
        %v4321 = vpop.xlane.xlu0 %4320
        %4322 = vadd.xlane.f32.xlu0 %v2970
        %v4323 = vpop.xlane.xlu0 %4322
        %4324 = vadd.xlane.f32.xlu0 %v2971
        %v4325 = vpop.xlane.xlu0 %4324
        %4326 = vadd.xlane.f32.xlu0 %v2972
        %v4327 = vpop.xlane.xlu0 %4326
        %4328 = vadd.xlane.f32.xlu0 %v2973
        %v4329 = vpop.xlane.xlu0 %4328
        %4330 = vadd.xlane.f32.xlu0 %v2974
        %v4331 = vpop.xlane.xlu0 %4330
        %4332 = vadd.xlane.f32.xlu0 %v2975
        %v4333 = vpop.xlane.xlu0 %4332
        %4334 = vadd.xlane.f32.xlu0 %v2976
        %v4335 = vpop.xlane.xlu0 %4334
        %4336 = vadd.xlane.f32.xlu0 %v2977
        %v4337 = vpop.xlane.xlu0 %4336
        %4338 = vadd.xlane.f32.xlu0 %v2978
        %v4339 = vpop.xlane.xlu0 %4338
        %4340 = vadd.xlane.f32.xlu0 %v2979
        %v4341 = vpop.xlane.xlu0 %4340
        %4342 = vadd.xlane.f32.xlu0 %v2980
        %v4343 = vpop.xlane.xlu0 %4342
        %4344 = vadd.xlane.f32.xlu0 %v2981
        %v4345 = vpop.xlane.xlu0 %4344
        %4346 = vadd.xlane.f32.xlu0 %v2982
        %v4347 = vpop.xlane.xlu0 %4346
        %4348 = vadd.xlane.f32.xlu0 %v2983
        %v4349 = vpop.xlane.xlu0 %4348
        %4350 = vadd.xlane.f32.xlu0 %v2984
        %v4351 = vpop.xlane.xlu0 %4350
        %4352 = vadd.xlane.f32.xlu0 %v2985
        %v4353 = vpop.xlane.xlu0 %4352
        %4354 = vadd.xlane.f32.xlu0 %v2986
        %v4355 = vpop.xlane.xlu0 %4354
        %4356 = vadd.xlane.f32.xlu0 %v2987
        %v4357 = vpop.xlane.xlu0 %4356
        %4358 = vadd.xlane.f32.xlu0 %v2988
        %v4359 = vpop.xlane.xlu0 %4358
        %4360 = vadd.xlane.f32.xlu0 %v2989
        %v4361 = vpop.xlane.xlu0 %4360
        %4362 = vadd.xlane.f32.xlu0 %v2990
        %v4363 = vpop.xlane.xlu0 %4362
        %4364 = vadd.xlane.f32.xlu0 %v2991
        %v4365 = vpop.xlane.xlu0 %4364
        %4366 = vadd.xlane.f32.xlu0 %v2992
        %v4367 = vpop.xlane.xlu0 %4366
        %4368 = vadd.xlane.f32.xlu0 %v2993
        %v4369 = vpop.xlane.xlu0 %4368
        %4370 = vadd.xlane.f32.xlu0 %v2994
        %v4371 = vpop.xlane.xlu0 %4370
        %4372 = vadd.xlane.f32.xlu0 %v2995
        %v4373 = vpop.xlane.xlu0 %4372
        %4374 = vadd.xlane.f32.xlu0 %v2996
        %v4375 = vpop.xlane.xlu0 %4374
        %4376 = vadd.xlane.f32.xlu0 %v2997
        %v4377 = vpop.xlane.xlu0 %4376
        %4378 = vadd.xlane.f32.xlu0 %v2998
        %v4379 = vpop.xlane.xlu0 %4378
        %4380 = vadd.xlane.f32.xlu0 %v2999
        %v4381 = vpop.xlane.xlu0 %4380
        %4382 = vadd.xlane.f32.xlu0 %v3000
        %v4383 = vpop.xlane.xlu0 %4382
        %4384 = vadd.xlane.f32.xlu0 %v3001
        %v4385 = vpop.xlane.xlu0 %4384
        %4386 = vadd.xlane.f32.xlu0 %v3002
        %v4387 = vpop.xlane.xlu0 %4386
        %4388 = vadd.xlane.f32.xlu0 %v3003
        %v4389 = vpop.xlane.xlu0 %4388
        %4390 = vadd.xlane.f32.xlu0 %v3004
        %v4391 = vpop.xlane.xlu0 %4390
        %4392 = vadd.xlane.f32.xlu0 %v3005
        %v4393 = vpop.xlane.xlu0 %4392
        %4394 = vadd.xlane.f32.xlu0 %v3006
        %v4395 = vpop.xlane.xlu0 %4394
        %4396 = vadd.xlane.f32.xlu0 %v3007
        %v4397 = vpop.xlane.xlu0 %4396
        %4398 = vadd.xlane.f32.xlu0 %v3008
        %v4399 = vpop.xlane.xlu0 %4398
        %4400 = vadd.xlane.f32.xlu0 %v3009
        %v4401 = vpop.xlane.xlu0 %4400
        %4402 = vadd.xlane.f32.xlu0 %v3010
        %v4403 = vpop.xlane.xlu0 %4402
        %4404 = vadd.xlane.f32.xlu0 %v3011
        %v4405 = vpop.xlane.xlu0 %4404
        %4406 = vadd.xlane.f32.xlu0 %v3012
        %v4407 = vpop.xlane.xlu0 %4406
        %4408 = vadd.xlane.f32.xlu0 %v3013
        %v4409 = vpop.xlane.xlu0 %4408
        %4410 = vadd.xlane.f32.xlu0 %v3014
        %v4411 = vpop.xlane.xlu0 %4410
        %4412 = vadd.xlane.f32.xlu0 %v3015
        %v4413 = vpop.xlane.xlu0 %4412
        %4414 = vadd.xlane.f32.xlu0 %v3016
        %v4415 = vpop.xlane.xlu0 %4414
        %4416 = vadd.xlane.f32.xlu0 %v3017
        %v4417 = vpop.xlane.xlu0 %4416
        %4418 = vadd.xlane.f32.xlu0 %v3018
        %v4419 = vpop.xlane.xlu0 %4418
        %4420 = vadd.xlane.f32.xlu0 %v3019
        %v4421 = vpop.xlane.xlu0 %4420
        %4422 = vadd.xlane.f32.xlu0 %v3020
        %v4423 = vpop.xlane.xlu0 %4422
        %4424 = vadd.xlane.f32.xlu0 %v3021
        %v4425 = vpop.xlane.xlu0 %4424
        %4426 = vadd.xlane.f32.xlu0 %v3022
        %v4427 = vpop.xlane.xlu0 %4426
        %4428 = vadd.xlane.f32.xlu0 %v3023
        %v4429 = vpop.xlane.xlu0 %4428
        %4430 = vadd.xlane.f32.xlu0 %v3024
        %v4431 = vpop.xlane.xlu0 %4430
        %4432 = vadd.xlane.f32.xlu0 %v3025
        %v4433 = vpop.xlane.xlu0 %4432
        %4434 = vadd.xlane.f32.xlu0 %v3026
        %v4435 = vpop.xlane.xlu0 %4434
        %4436 = vadd.xlane.f32.xlu0 %v3027
        %v4437 = vpop.xlane.xlu0 %4436
        %4438 = vadd.xlane.f32.xlu0 %v3028
        %v4439 = vpop.xlane.xlu0 %4438
        %4440 = vadd.xlane.f32.xlu0 %v3029
        %v4441 = vpop.xlane.xlu0 %4440
        %4442 = vadd.xlane.f32.xlu0 %v3030
        %v4443 = vpop.xlane.xlu0 %4442
        %4444 = vadd.xlane.f32.xlu0 %v3031
        %v4445 = vpop.xlane.xlu0 %4444
        %4446 = vadd.xlane.f32.xlu0 %v3032
        %v4447 = vpop.xlane.xlu0 %4446
        %4448 = vadd.xlane.f32.xlu0 %v3033
        %v4449 = vpop.xlane.xlu0 %4448
        %4450 = vadd.xlane.f32.xlu0 %v3034
        %v4451 = vpop.xlane.xlu0 %4450
        %4452 = vadd.xlane.f32.xlu0 %v3035
        %v4453 = vpop.xlane.xlu0 %4452
        %4454 = vadd.xlane.f32.xlu0 %v3036
        %v4455 = vpop.xlane.xlu0 %4454
        %4456 = vadd.xlane.f32.xlu0 %v3037
        %v4457 = vpop.xlane.xlu0 %4456
        %4458 = vadd.xlane.f32.xlu0 %v3038
        %v4459 = vpop.xlane.xlu0 %4458
        %4460 = vadd.xlane.f32.xlu0 %v3039
        %v4461 = vpop.xlane.xlu0 %4460
        %4462 = vadd.xlane.f32.xlu0 %v3040
        %v4463 = vpop.xlane.xlu0 %4462
        %4464 = vadd.xlane.f32.xlu0 %v3041
        %v4465 = vpop.xlane.xlu0 %4464
        %4466 = vadd.xlane.f32.xlu0 %v3042
        %v4467 = vpop.xlane.xlu0 %4466
        %4468 = vadd.xlane.f32.xlu0 %v3043
        %v4469 = vpop.xlane.xlu0 %4468
        %4470 = vadd.xlane.f32.xlu0 %v3044
        %v4471 = vpop.xlane.xlu0 %4470
        %4472 = vadd.xlane.f32.xlu0 %v3045
        %v4473 = vpop.xlane.xlu0 %4472
        %4474 = vadd.xlane.f32.xlu0 %v3046
        %v4475 = vpop.xlane.xlu0 %4474
        %4476 = vadd.xlane.f32.xlu0 %v3047
        %v4477 = vpop.xlane.xlu0 %4476
        %4478 = vadd.xlane.f32.xlu0 %v3048
        %v4479 = vpop.xlane.xlu0 %4478
        %4480 = vadd.xlane.f32.xlu0 %v3049
        %v4481 = vpop.xlane.xlu0 %4480
        %4482 = vadd.xlane.f32.xlu0 %v3050
        %v4483 = vpop.xlane.xlu0 %4482
        %4484 = vadd.xlane.f32.xlu0 %v3051
        %v4485 = vpop.xlane.xlu0 %4484
        %4486 = vadd.xlane.f32.xlu0 %v3052
        %v4487 = vpop.xlane.xlu0 %4486
        %4488 = vadd.xlane.f32.xlu0 %v3053
        %v4489 = vpop.xlane.xlu0 %4488
        %4490 = vadd.xlane.f32.xlu0 %v3054
        %v4491 = vpop.xlane.xlu0 %4490
        %4492 = vadd.xlane.f32.xlu0 %v3055
        %v4493 = vpop.xlane.xlu0 %4492
        %4494 = vadd.xlane.f32.xlu0 %v3056
        %v4495 = vpop.xlane.xlu0 %4494
        %4496 = vadd.xlane.f32.xlu0 %v3057
        %v4497 = vpop.xlane.xlu0 %4496
        %4498 = vadd.xlane.f32.xlu0 %v3058
        %v4499 = vpop.xlane.xlu0 %4498
        %4500 = vadd.xlane.f32.xlu0 %v3059
        %v4501 = vpop.xlane.xlu0 %4500
        %4502 = vadd.xlane.f32.xlu0 %v3060
        %v4503 = vpop.xlane.xlu0 %4502
        %4504 = vadd.xlane.f32.xlu0 %v3061
        %v4505 = vpop.xlane.xlu0 %4504
        %4506 = vadd.xlane.f32.xlu0 %v3062
        %v4507 = vpop.xlane.xlu0 %4506
        %4508 = vadd.xlane.f32.xlu0 %v3063
        %v4509 = vpop.xlane.xlu0 %4508
        %4510 = vadd.xlane.f32.xlu0 %v3064
        %v4511 = vpop.xlane.xlu0 %4510
        %4512 = vadd.xlane.f32.xlu0 %v3065
        %v4513 = vpop.xlane.xlu0 %4512
        %4514 = vadd.xlane.f32.xlu0 %v3066
        %v4515 = vpop.xlane.xlu0 %4514
        %v4516 = vadd.f32 %v4293, %v4295
        %v4517 = vadd.f32 %v4516, %v4297
        %v4518 = vadd.f32 %v4517, %v4299
        %v4519 = vadd.f32 %v4518, %v4301
        %v4520 = vadd.f32 %v4519, %v4303
        %v4521 = vadd.f32 %v4520, %v4305
        %v4522 = vadd.f32 %v4521, %v4307
        %v4523 = vadd.f32 %v4522, %v4309
        %v4524 = vadd.f32 %v4523, %v4311
        %v4525 = vadd.f32 %v4524, %v4313
        %v4526 = vadd.f32 %v4525, %v4315
        %v4527 = vadd.f32 %v4526, %v4317
        %v4528 = vadd.f32 %v4527, %v4319
        %v4529 = vadd.f32 %v4528, %v4321
        %v4530 = vadd.f32 %v4529, %v4323
        %v4531 = vrot.slane %v4530, 4
        %v4532 = vadd.f32 %v4530, %v4531
        %v4533 = vrot.slane %v4532, 2
        %v4534 = vadd.f32 %v4532, %v4533
        %v4535 = vrot.slane %v4534, 1
        %v4536 = vadd.f32 %v4534, %v4535
        %v4537 = vadd.f32 %v4325, %v4327
        %v4538 = vadd.f32 %v4537, %v4329
        %v4539 = vadd.f32 %v4538, %v4331
        %v4540 = vadd.f32 %v4539, %v4333
        %v4541 = vadd.f32 %v4540, %v4335
        %v4542 = vadd.f32 %v4541, %v4337
        %v4543 = vadd.f32 %v4542, %v4339
        %v4544 = vadd.f32 %v4543, %v4341
        %v4545 = vadd.f32 %v4544, %v4343
        %v4546 = vadd.f32 %v4545, %v4345
        %v4547 = vadd.f32 %v4546, %v4347
        %v4548 = vadd.f32 %v4547, %v4349
        %v4549 = vadd.f32 %v4548, %v4351
        %v4550 = vadd.f32 %v4549, %v4353
        %v4551 = vadd.f32 %v4550, %v4355
        %v4552 = vrot.slane %v4551, 4
        %v4553 = vadd.f32 %v4551, %v4552
        %v4554 = vrot.slane %v4553, 2
        %v4555 = vadd.f32 %v4553, %v4554
        %v4556 = vrot.slane %v4555, 1
        %v4557 = vadd.f32 %v4555, %v4556
        %v4558 = vadd.f32 %v4357, %v4359
        %v4559 = vadd.f32 %v4558, %v4361
        %v4560 = vadd.f32 %v4559, %v4363
        %v4561 = vadd.f32 %v4560, %v4365
        %v4562 = vadd.f32 %v4561, %v4367
        %v4563 = vadd.f32 %v4562, %v4369
        %v4564 = vadd.f32 %v4563, %v4371
        %v4565 = vadd.f32 %v4564, %v4373
        %v4566 = vadd.f32 %v4565, %v4375
        %v4567 = vadd.f32 %v4566, %v4377
        %v4568 = vadd.f32 %v4567, %v4379
        %v4569 = vadd.f32 %v4568, %v4381
        %v4570 = vadd.f32 %v4569, %v4383
        %v4571 = vadd.f32 %v4570, %v4385
        %v4572 = vadd.f32 %v4571, %v4387
        %v4573 = vrot.slane %v4572, 4
        %v4574 = vadd.f32 %v4572, %v4573
        %v4575 = vrot.slane %v4574, 2
        %v4576 = vadd.f32 %v4574, %v4575
        %v4577 = vrot.slane %v4576, 1
        %v4578 = vadd.f32 %v4576, %v4577
        %v4579 = vadd.f32 %v4389, %v4391
        %v4580 = vadd.f32 %v4579, %v4393
        %v4581 = vadd.f32 %v4580, %v4395
        %v4582 = vadd.f32 %v4581, %v4397
        %v4583 = vadd.f32 %v4582, %v4399
        %v4584 = vadd.f32 %v4583, %v4401
        %v4585 = vadd.f32 %v4584, %v4403
        %v4586 = vadd.f32 %v4585, %v4405
        %v4587 = vadd.f32 %v4586, %v4407
        %v4588 = vadd.f32 %v4587, %v4409
        %v4589 = vadd.f32 %v4588, %v4411
        %v4590 = vadd.f32 %v4589, %v4413
        %v4591 = vadd.f32 %v4590, %v4415
        %v4592 = vadd.f32 %v4591, %v4417
        %v4593 = vadd.f32 %v4592, %v4419
        %v4594 = vrot.slane %v4593, 4
        %v4595 = vadd.f32 %v4593, %v4594
        %v4596 = vrot.slane %v4595, 2
        %v4597 = vadd.f32 %v4595, %v4596
        %v4598 = vrot.slane %v4597, 1
        %v4599 = vadd.f32 %v4597, %v4598
        %v4600 = vadd.f32 %v4421, %v4423
        %v4601 = vadd.f32 %v4600, %v4425
        %v4602 = vadd.f32 %v4601, %v4427
        %v4603 = vadd.f32 %v4602, %v4429
        %v4604 = vadd.f32 %v4603, %v4431
        %v4605 = vadd.f32 %v4604, %v4433
        %v4606 = vadd.f32 %v4605, %v4435
        %v4607 = vadd.f32 %v4606, %v4437
        %v4608 = vadd.f32 %v4607, %v4439
        %v4609 = vadd.f32 %v4608, %v4441
        %v4610 = vadd.f32 %v4609, %v4443
        %v4611 = vadd.f32 %v4610, %v4445
        %v4612 = vadd.f32 %v4611, %v4447
        %v4613 = vadd.f32 %v4612, %v4449
        %v4614 = vadd.f32 %v4613, %v4451
        %v4615 = vrot.slane %v4614, 4
        %v4616 = vadd.f32 %v4614, %v4615
        %v4617 = vrot.slane %v4616, 2
        %v4618 = vadd.f32 %v4616, %v4617
        %v4619 = vrot.slane %v4618, 1
        %v4620 = vadd.f32 %v4618, %v4619
        %v4621 = vadd.f32 %v4453, %v4455
        %v4622 = vadd.f32 %v4621, %v4457
        %v4623 = vadd.f32 %v4622, %v4459
        %v4624 = vadd.f32 %v4623, %v4461
        %v4625 = vadd.f32 %v4624, %v4463
        %v4626 = vadd.f32 %v4625, %v4465
        %v4627 = vadd.f32 %v4626, %v4467
        %v4628 = vadd.f32 %v4627, %v4469
        %v4629 = vadd.f32 %v4628, %v4471
        %v4630 = vadd.f32 %v4629, %v4473
        %v4631 = vadd.f32 %v4630, %v4475
        %v4632 = vadd.f32 %v4631, %v4477
        %v4633 = vadd.f32 %v4632, %v4479
        %v4634 = vadd.f32 %v4633, %v4481
        %v4635 = vadd.f32 %v4634, %v4483
        %v4636 = vrot.slane %v4635, 4
        %v4637 = vadd.f32 %v4635, %v4636
        %v4638 = vrot.slane %v4637, 2
        %v4639 = vadd.f32 %v4637, %v4638
        %v4640 = vrot.slane %v4639, 1
        %v4641 = vadd.f32 %v4639, %v4640
        %v4642 = vadd.f32 %v4485, %v4487
        %v4643 = vadd.f32 %v4642, %v4489
        %v4644 = vadd.f32 %v4643, %v4491
        %v4645 = vadd.f32 %v4644, %v4493
        %v4646 = vadd.f32 %v4645, %v4495
        %v4647 = vadd.f32 %v4646, %v4497
        %v4648 = vadd.f32 %v4647, %v4499
        %v4649 = vadd.f32 %v4648, %v4501
        %v4650 = vadd.f32 %v4649, %v4503
        %v4651 = vadd.f32 %v4650, %v4505
        %v4652 = vadd.f32 %v4651, %v4507
        %v4653 = vadd.f32 %v4652, %v4509
        %v4654 = vadd.f32 %v4653, %v4511
        %v4655 = vadd.f32 %v4654, %v4513
        %v4656 = vadd.f32 %v4655, %v4515
        %v4657 = vrot.slane %v4656, 4
        %v4658 = vadd.f32 %v4656, %v4657
        %v4659 = vrot.slane %v4658, 2
        %v4660 = vadd.f32 %v4658, %v4659
        %v4661 = vrot.slane %v4660, 1
        %v4662 = vadd.f32 %v4660, %v4661
        %v4663 = vmul.f32 %v2955, %v2939
        %v4664 = vmul.f32 %v2956, %v2940
        %v4665 = vmul.f32 %v2957, %v2941
        %v4666 = vmul.f32 %v2958, %v2942
        %v4667 = vmul.f32 %v2959, %v2943
        %v4668 = vmul.f32 %v2960, %v2944
        %v4669 = vmul.f32 %v2961, %v2945
        %v4670 = vmul.f32 %v2962, %v2946
        %v4671 = vmul.f32 %v2963, %v2947
        %v4672 = vmul.f32 %v2964, %v2948
        %v4673 = vmul.f32 %v2965, %v2949
        %v4674 = vmul.f32 %v2966, %v2950
        %v4675 = vmul.f32 %v2967, %v2951
        %v4676 = vmul.f32 %v2968, %v2952
        %v4677 = vmul.f32 %v2969, %v2953
        %v4678 = vmul.f32 %v2970, %v2954
        %v4679 = vmul.f32 %v2971, %v2939
        %v4680 = vmul.f32 %v2972, %v2940
        %v4681 = vmul.f32 %v2973, %v2941
        %v4682 = vmul.f32 %v2974, %v2942
        %v4683 = vmul.f32 %v2975, %v2943
        %v4684 = vmul.f32 %v2976, %v2944
        %v4685 = vmul.f32 %v2977, %v2945
        %v4686 = vmul.f32 %v2978, %v2946
        %v4687 = vmul.f32 %v2979, %v2947
        %v4688 = vmul.f32 %v2980, %v2948
        %v4689 = vmul.f32 %v2981, %v2949
        %v4690 = vmul.f32 %v2982, %v2950
        %v4691 = vmul.f32 %v2983, %v2951
        %v4692 = vmul.f32 %v2984, %v2952
        %v4693 = vmul.f32 %v2985, %v2953
        %v4694 = vmul.f32 %v2986, %v2954
        %v4695 = vmul.f32 %v2987, %v2939
        %v4696 = vmul.f32 %v2988, %v2940
        %v4697 = vmul.f32 %v2989, %v2941
        %v4698 = vmul.f32 %v2990, %v2942
        %v4699 = vmul.f32 %v2991, %v2943
        %v4700 = vmul.f32 %v2992, %v2944
        %v4701 = vmul.f32 %v2993, %v2945
        %v4702 = vmul.f32 %v2994, %v2946
        %v4703 = vmul.f32 %v2995, %v2947
        %v4704 = vmul.f32 %v2996, %v2948
        %v4705 = vmul.f32 %v2997, %v2949
        %v4706 = vmul.f32 %v2998, %v2950
        %v4707 = vmul.f32 %v2999, %v2951
        %v4708 = vmul.f32 %v3000, %v2952
        %v4709 = vmul.f32 %v3001, %v2953
        %v4710 = vmul.f32 %v3002, %v2954
        %v4711 = vmul.f32 %v3003, %v2939
        %v4712 = vmul.f32 %v3004, %v2940
        %v4713 = vmul.f32 %v3005, %v2941
        %v4714 = vmul.f32 %v3006, %v2942
        %v4715 = vmul.f32 %v3007, %v2943
        %v4716 = vmul.f32 %v3008, %v2944
        %v4717 = vmul.f32 %v3009, %v2945
        %v4718 = vmul.f32 %v3010, %v2946
        %v4719 = vmul.f32 %v3011, %v2947
        %v4720 = vmul.f32 %v3012, %v2948
        %v4721 = vmul.f32 %v3013, %v2949
        %v4722 = vmul.f32 %v3014, %v2950
        %v4723 = vmul.f32 %v3015, %v2951
        %v4724 = vmul.f32 %v3016, %v2952
        %v4725 = vmul.f32 %v3017, %v2953
        %v4726 = vmul.f32 %v3018, %v2954
        %v4727 = vmul.f32 %v3019, %v2939
        %v4728 = vmul.f32 %v3020, %v2940
        %v4729 = vmul.f32 %v3021, %v2941
        %v4730 = vmul.f32 %v3022, %v2942
        %v4731 = vmul.f32 %v3023, %v2943
        %v4732 = vmul.f32 %v3024, %v2944
        %v4733 = vmul.f32 %v3025, %v2945
        %v4734 = vmul.f32 %v3026, %v2946
        %v4735 = vmul.f32 %v3027, %v2947
        %v4736 = vmul.f32 %v3028, %v2948
        %v4737 = vmul.f32 %v3029, %v2949
        %v4738 = vmul.f32 %v3030, %v2950
        %v4739 = vmul.f32 %v3031, %v2951
        %v4740 = vmul.f32 %v3032, %v2952
        %v4741 = vmul.f32 %v3033, %v2953
        %v4742 = vmul.f32 %v3034, %v2954
        %v4743 = vmul.f32 %v3035, %v2939
        %v4744 = vmul.f32 %v3036, %v2940
        %v4745 = vmul.f32 %v3037, %v2941
        %v4746 = vmul.f32 %v3038, %v2942
        %v4747 = vmul.f32 %v3039, %v2943
        %v4748 = vmul.f32 %v3040, %v2944
        %v4749 = vmul.f32 %v3041, %v2945
        %v4750 = vmul.f32 %v3042, %v2946
        %v4751 = vmul.f32 %v3043, %v2947
        %v4752 = vmul.f32 %v3044, %v2948
        %v4753 = vmul.f32 %v3045, %v2949
        %v4754 = vmul.f32 %v3046, %v2950
        %v4755 = vmul.f32 %v3047, %v2951
        %v4756 = vmul.f32 %v3048, %v2952
        %v4757 = vmul.f32 %v3049, %v2953
        %v4758 = vmul.f32 %v3050, %v2954
        %v4759 = vmul.f32 %v3051, %v2939
        %v4760 = vmul.f32 %v3052, %v2940
        %v4761 = vmul.f32 %v3053, %v2941
        %v4762 = vmul.f32 %v3054, %v2942
        %v4763 = vmul.f32 %v3055, %v2943
        %v4764 = vmul.f32 %v3056, %v2944
        %v4765 = vmul.f32 %v3057, %v2945
        %v4766 = vmul.f32 %v3058, %v2946
        %v4767 = vmul.f32 %v3059, %v2947
        %v4768 = vmul.f32 %v3060, %v2948
        %v4769 = vmul.f32 %v3061, %v2949
        %v4770 = vmul.f32 %v3062, %v2950
        %v4771 = vmul.f32 %v3063, %v2951
        %v4772 = vmul.f32 %v3064, %v2952
        %v4773 = vmul.f32 %v3065, %v2953
        %v4774 = vmul.f32 %v3066, %v2954
        %4775 = vadd.xlane.f32.xlu0 %v4663
        %v4776 = vpop.xlane.xlu0 %4775
        %4777 = vadd.xlane.f32.xlu0 %v4664
        %v4778 = vpop.xlane.xlu0 %4777
        %4779 = vadd.xlane.f32.xlu0 %v4665
        %v4780 = vpop.xlane.xlu0 %4779
        %4781 = vadd.xlane.f32.xlu0 %v4666
        %v4782 = vpop.xlane.xlu0 %4781
        %4783 = vadd.xlane.f32.xlu0 %v4667
        %v4784 = vpop.xlane.xlu0 %4783
        %4785 = vadd.xlane.f32.xlu0 %v4668
        %v4786 = vpop.xlane.xlu0 %4785
        %4787 = vadd.xlane.f32.xlu0 %v4669
        %v4788 = vpop.xlane.xlu0 %4787
        %4789 = vadd.xlane.f32.xlu0 %v4670
        %v4790 = vpop.xlane.xlu0 %4789
        %4791 = vadd.xlane.f32.xlu0 %v4671
        %v4792 = vpop.xlane.xlu0 %4791
        %4793 = vadd.xlane.f32.xlu0 %v4672
        %v4794 = vpop.xlane.xlu0 %4793
        %4795 = vadd.xlane.f32.xlu0 %v4673
        %v4796 = vpop.xlane.xlu0 %4795
        %4797 = vadd.xlane.f32.xlu0 %v4674
        %v4798 = vpop.xlane.xlu0 %4797
        %4799 = vadd.xlane.f32.xlu0 %v4675
        %v4800 = vpop.xlane.xlu0 %4799
        %4801 = vadd.xlane.f32.xlu0 %v4676
        %v4802 = vpop.xlane.xlu0 %4801
        %4803 = vadd.xlane.f32.xlu0 %v4677
        %v4804 = vpop.xlane.xlu0 %4803
        %4805 = vadd.xlane.f32.xlu0 %v4678
        %v4806 = vpop.xlane.xlu0 %4805
        %4807 = vadd.xlane.f32.xlu0 %v4679
        %v4808 = vpop.xlane.xlu0 %4807
        %4809 = vadd.xlane.f32.xlu0 %v4680
        %v4810 = vpop.xlane.xlu0 %4809
        %4811 = vadd.xlane.f32.xlu0 %v4681
        %v4812 = vpop.xlane.xlu0 %4811
        %4813 = vadd.xlane.f32.xlu0 %v4682
        %v4814 = vpop.xlane.xlu0 %4813
        %4815 = vadd.xlane.f32.xlu0 %v4683
        %v4816 = vpop.xlane.xlu0 %4815
        %4817 = vadd.xlane.f32.xlu0 %v4684
        %v4818 = vpop.xlane.xlu0 %4817
        %4819 = vadd.xlane.f32.xlu0 %v4685
        %v4820 = vpop.xlane.xlu0 %4819
        %4821 = vadd.xlane.f32.xlu0 %v4686
        %v4822 = vpop.xlane.xlu0 %4821
        %4823 = vadd.xlane.f32.xlu0 %v4687
        %v4824 = vpop.xlane.xlu0 %4823
        %4825 = vadd.xlane.f32.xlu0 %v4688
        %v4826 = vpop.xlane.xlu0 %4825
        %4827 = vadd.xlane.f32.xlu0 %v4689
        %v4828 = vpop.xlane.xlu0 %4827
        %4829 = vadd.xlane.f32.xlu0 %v4690
        %v4830 = vpop.xlane.xlu0 %4829
        %4831 = vadd.xlane.f32.xlu0 %v4691
        %v4832 = vpop.xlane.xlu0 %4831
        %4833 = vadd.xlane.f32.xlu0 %v4692
        %v4834 = vpop.xlane.xlu0 %4833
        %4835 = vadd.xlane.f32.xlu0 %v4693
        %v4836 = vpop.xlane.xlu0 %4835
        %4837 = vadd.xlane.f32.xlu0 %v4694
        %v4838 = vpop.xlane.xlu0 %4837
        %4839 = vadd.xlane.f32.xlu0 %v4695
        %v4840 = vpop.xlane.xlu0 %4839
        %4841 = vadd.xlane.f32.xlu0 %v4696
        %v4842 = vpop.xlane.xlu0 %4841
        %4843 = vadd.xlane.f32.xlu0 %v4697
        %v4844 = vpop.xlane.xlu0 %4843
        %4845 = vadd.xlane.f32.xlu0 %v4698
        %v4846 = vpop.xlane.xlu0 %4845
        %4847 = vadd.xlane.f32.xlu0 %v4699
        %v4848 = vpop.xlane.xlu0 %4847
        %4849 = vadd.xlane.f32.xlu0 %v4700
        %v4850 = vpop.xlane.xlu0 %4849
        %4851 = vadd.xlane.f32.xlu0 %v4701
        %v4852 = vpop.xlane.xlu0 %4851
        %4853 = vadd.xlane.f32.xlu0 %v4702
        %v4854 = vpop.xlane.xlu0 %4853
        %4855 = vadd.xlane.f32.xlu0 %v4703
        %v4856 = vpop.xlane.xlu0 %4855
        %4857 = vadd.xlane.f32.xlu0 %v4704
        %v4858 = vpop.xlane.xlu0 %4857
        %4859 = vadd.xlane.f32.xlu0 %v4705
        %v4860 = vpop.xlane.xlu0 %4859
        %4861 = vadd.xlane.f32.xlu0 %v4706
        %v4862 = vpop.xlane.xlu0 %4861
        %4863 = vadd.xlane.f32.xlu0 %v4707
        %v4864 = vpop.xlane.xlu0 %4863
        %4865 = vadd.xlane.f32.xlu0 %v4708
        %v4866 = vpop.xlane.xlu0 %4865
        %4867 = vadd.xlane.f32.xlu0 %v4709
        %v4868 = vpop.xlane.xlu0 %4867
        %4869 = vadd.xlane.f32.xlu0 %v4710
        %v4870 = vpop.xlane.xlu0 %4869
        %4871 = vadd.xlane.f32.xlu0 %v4711
        %v4872 = vpop.xlane.xlu0 %4871
        %4873 = vadd.xlane.f32.xlu0 %v4712
        %v4874 = vpop.xlane.xlu0 %4873
        %4875 = vadd.xlane.f32.xlu0 %v4713
        %v4876 = vpop.xlane.xlu0 %4875
        %4877 = vadd.xlane.f32.xlu0 %v4714
        %v4878 = vpop.xlane.xlu0 %4877
        %4879 = vadd.xlane.f32.xlu0 %v4715
        %v4880 = vpop.xlane.xlu0 %4879
        %4881 = vadd.xlane.f32.xlu0 %v4716
        %v4882 = vpop.xlane.xlu0 %4881
        %4883 = vadd.xlane.f32.xlu0 %v4717
        %v4884 = vpop.xlane.xlu0 %4883
        %4885 = vadd.xlane.f32.xlu0 %v4718
        %v4886 = vpop.xlane.xlu0 %4885
        %4887 = vadd.xlane.f32.xlu0 %v4719
        %v4888 = vpop.xlane.xlu0 %4887
        %4889 = vadd.xlane.f32.xlu0 %v4720
        %v4890 = vpop.xlane.xlu0 %4889
        %4891 = vadd.xlane.f32.xlu0 %v4721
        %v4892 = vpop.xlane.xlu0 %4891
        %4893 = vadd.xlane.f32.xlu0 %v4722
        %v4894 = vpop.xlane.xlu0 %4893
        %4895 = vadd.xlane.f32.xlu0 %v4723
        %v4896 = vpop.xlane.xlu0 %4895
        %4897 = vadd.xlane.f32.xlu0 %v4724
        %v4898 = vpop.xlane.xlu0 %4897
        %4899 = vadd.xlane.f32.xlu0 %v4725
        %v4900 = vpop.xlane.xlu0 %4899
        %4901 = vadd.xlane.f32.xlu0 %v4726
        %v4902 = vpop.xlane.xlu0 %4901
        %4903 = vadd.xlane.f32.xlu0 %v4727
        %v4904 = vpop.xlane.xlu0 %4903
        %4905 = vadd.xlane.f32.xlu0 %v4728
        %v4906 = vpop.xlane.xlu0 %4905
        %4907 = vadd.xlane.f32.xlu0 %v4729
        %v4908 = vpop.xlane.xlu0 %4907
        %4909 = vadd.xlane.f32.xlu0 %v4730
        %v4910 = vpop.xlane.xlu0 %4909
        %4911 = vadd.xlane.f32.xlu0 %v4731
        %v4912 = vpop.xlane.xlu0 %4911
        %4913 = vadd.xlane.f32.xlu0 %v4732
        %v4914 = vpop.xlane.xlu0 %4913
        %4915 = vadd.xlane.f32.xlu0 %v4733
        %v4916 = vpop.xlane.xlu0 %4915
        %4917 = vadd.xlane.f32.xlu0 %v4734
        %v4918 = vpop.xlane.xlu0 %4917
        %4919 = vadd.xlane.f32.xlu0 %v4735
        %v4920 = vpop.xlane.xlu0 %4919
        %4921 = vadd.xlane.f32.xlu0 %v4736
        %v4922 = vpop.xlane.xlu0 %4921
        %4923 = vadd.xlane.f32.xlu0 %v4737
        %v4924 = vpop.xlane.xlu0 %4923
        %4925 = vadd.xlane.f32.xlu0 %v4738
        %v4926 = vpop.xlane.xlu0 %4925
        %4927 = vadd.xlane.f32.xlu0 %v4739
        %v4928 = vpop.xlane.xlu0 %4927
        %4929 = vadd.xlane.f32.xlu0 %v4740
        %v4930 = vpop.xlane.xlu0 %4929
        %4931 = vadd.xlane.f32.xlu0 %v4741
        %v4932 = vpop.xlane.xlu0 %4931
        %4933 = vadd.xlane.f32.xlu0 %v4742
        %v4934 = vpop.xlane.xlu0 %4933
        %4935 = vadd.xlane.f32.xlu0 %v4743
        %v4936 = vpop.xlane.xlu0 %4935
        %4937 = vadd.xlane.f32.xlu0 %v4744
        %v4938 = vpop.xlane.xlu0 %4937
        %4939 = vadd.xlane.f32.xlu0 %v4745
        %v4940 = vpop.xlane.xlu0 %4939
        %4941 = vadd.xlane.f32.xlu0 %v4746
        %v4942 = vpop.xlane.xlu0 %4941
        %4943 = vadd.xlane.f32.xlu0 %v4747
        %v4944 = vpop.xlane.xlu0 %4943
        %4945 = vadd.xlane.f32.xlu0 %v4748
        %v4946 = vpop.xlane.xlu0 %4945
        %4947 = vadd.xlane.f32.xlu0 %v4749
        %v4948 = vpop.xlane.xlu0 %4947
        %4949 = vadd.xlane.f32.xlu0 %v4750
        %v4950 = vpop.xlane.xlu0 %4949
        %4951 = vadd.xlane.f32.xlu0 %v4751
        %v4952 = vpop.xlane.xlu0 %4951
        %4953 = vadd.xlane.f32.xlu0 %v4752
        %v4954 = vpop.xlane.xlu0 %4953
        %4955 = vadd.xlane.f32.xlu0 %v4753
        %v4956 = vpop.xlane.xlu0 %4955
        %4957 = vadd.xlane.f32.xlu0 %v4754
        %v4958 = vpop.xlane.xlu0 %4957
        %4959 = vadd.xlane.f32.xlu0 %v4755
        %v4960 = vpop.xlane.xlu0 %4959
        %4961 = vadd.xlane.f32.xlu0 %v4756
        %v4962 = vpop.xlane.xlu0 %4961
        %4963 = vadd.xlane.f32.xlu0 %v4757
        %v4964 = vpop.xlane.xlu0 %4963
        %4965 = vadd.xlane.f32.xlu0 %v4758
        %v4966 = vpop.xlane.xlu0 %4965
        %4967 = vadd.xlane.f32.xlu0 %v4759
        %v4968 = vpop.xlane.xlu0 %4967
        %4969 = vadd.xlane.f32.xlu0 %v4760
        %v4970 = vpop.xlane.xlu0 %4969
        %4971 = vadd.xlane.f32.xlu0 %v4761
        %v4972 = vpop.xlane.xlu0 %4971
        %4973 = vadd.xlane.f32.xlu0 %v4762
        %v4974 = vpop.xlane.xlu0 %4973
        %4975 = vadd.xlane.f32.xlu0 %v4763
        %v4976 = vpop.xlane.xlu0 %4975
        %4977 = vadd.xlane.f32.xlu0 %v4764
        %v4978 = vpop.xlane.xlu0 %4977
        %4979 = vadd.xlane.f32.xlu0 %v4765
        %v4980 = vpop.xlane.xlu0 %4979
        %4981 = vadd.xlane.f32.xlu0 %v4766
        %v4982 = vpop.xlane.xlu0 %4981
        %4983 = vadd.xlane.f32.xlu0 %v4767
        %v4984 = vpop.xlane.xlu0 %4983
        %4985 = vadd.xlane.f32.xlu0 %v4768
        %v4986 = vpop.xlane.xlu0 %4985
        %4987 = vadd.xlane.f32.xlu0 %v4769
        %v4988 = vpop.xlane.xlu0 %4987
        %4989 = vadd.xlane.f32.xlu0 %v4770
        %v4990 = vpop.xlane.xlu0 %4989
        %4991 = vadd.xlane.f32.xlu0 %v4771
        %v4992 = vpop.xlane.xlu0 %4991
        %4993 = vadd.xlane.f32.xlu0 %v4772
        %v4994 = vpop.xlane.xlu0 %4993
        %4995 = vadd.xlane.f32.xlu0 %v4773
        %v4996 = vpop.xlane.xlu0 %4995
        %4997 = vadd.xlane.f32.xlu0 %v4774
        %v4998 = vpop.xlane.xlu0 %4997
        %v4999 = vadd.f32 %v4776, %v4778
        %v5000 = vadd.f32 %v4999, %v4780
        %v5001 = vadd.f32 %v5000, %v4782
        %v5002 = vadd.f32 %v5001, %v4784
        %v5003 = vadd.f32 %v5002, %v4786
        %v5004 = vadd.f32 %v5003, %v4788
        %v5005 = vadd.f32 %v5004, %v4790
        %v5006 = vadd.f32 %v5005, %v4792
        %v5007 = vadd.f32 %v5006, %v4794
        %v5008 = vadd.f32 %v5007, %v4796
        %v5009 = vadd.f32 %v5008, %v4798
        %v5010 = vadd.f32 %v5009, %v4800
        %v5011 = vadd.f32 %v5010, %v4802
        %v5012 = vadd.f32 %v5011, %v4804
        %v5013 = vadd.f32 %v5012, %v4806
        %v5014 = vrot.slane %v5013, 4
        %v5015 = vadd.f32 %v5013, %v5014
        %v5016 = vrot.slane %v5015, 2
        %v5017 = vadd.f32 %v5015, %v5016
        %v5018 = vrot.slane %v5017, 1
        %v5019 = vadd.f32 %v5017, %v5018
        %v5020 = vadd.f32 %v4808, %v4810
        %v5021 = vadd.f32 %v5020, %v4812
        %v5022 = vadd.f32 %v5021, %v4814
        %v5023 = vadd.f32 %v5022, %v4816
        %v5024 = vadd.f32 %v5023, %v4818
        %v5025 = vadd.f32 %v5024, %v4820
        %v5026 = vadd.f32 %v5025, %v4822
        %v5027 = vadd.f32 %v5026, %v4824
        %v5028 = vadd.f32 %v5027, %v4826
        %v5029 = vadd.f32 %v5028, %v4828
        %v5030 = vadd.f32 %v5029, %v4830
        %v5031 = vadd.f32 %v5030, %v4832
        %v5032 = vadd.f32 %v5031, %v4834
        %v5033 = vadd.f32 %v5032, %v4836
        %v5034 = vadd.f32 %v5033, %v4838
        %v5035 = vrot.slane %v5034, 4
        %v5036 = vadd.f32 %v5034, %v5035
        %v5037 = vrot.slane %v5036, 2
        %v5038 = vadd.f32 %v5036, %v5037
        %v5039 = vrot.slane %v5038, 1
        %v5040 = vadd.f32 %v5038, %v5039
        %v5041 = vadd.f32 %v4840, %v4842
        %v5042 = vadd.f32 %v5041, %v4844
        %v5043 = vadd.f32 %v5042, %v4846
        %v5044 = vadd.f32 %v5043, %v4848
        %v5045 = vadd.f32 %v5044, %v4850
        %v5046 = vadd.f32 %v5045, %v4852
        %v5047 = vadd.f32 %v5046, %v4854
        %v5048 = vadd.f32 %v5047, %v4856
        %v5049 = vadd.f32 %v5048, %v4858
        %v5050 = vadd.f32 %v5049, %v4860
        %v5051 = vadd.f32 %v5050, %v4862
        %v5052 = vadd.f32 %v5051, %v4864
        %v5053 = vadd.f32 %v5052, %v4866
        %v5054 = vadd.f32 %v5053, %v4868
        %v5055 = vadd.f32 %v5054, %v4870
        %v5056 = vrot.slane %v5055, 4
        %v5057 = vadd.f32 %v5055, %v5056
        %v5058 = vrot.slane %v5057, 2
        %v5059 = vadd.f32 %v5057, %v5058
        %v5060 = vrot.slane %v5059, 1
        %v5061 = vadd.f32 %v5059, %v5060
        %v5062 = vadd.f32 %v4872, %v4874
        %v5063 = vadd.f32 %v5062, %v4876
        %v5064 = vadd.f32 %v5063, %v4878
        %v5065 = vadd.f32 %v5064, %v4880
        %v5066 = vadd.f32 %v5065, %v4882
        %v5067 = vadd.f32 %v5066, %v4884
        %v5068 = vadd.f32 %v5067, %v4886
        %v5069 = vadd.f32 %v5068, %v4888
        %v5070 = vadd.f32 %v5069, %v4890
        %v5071 = vadd.f32 %v5070, %v4892
        %v5072 = vadd.f32 %v5071, %v4894
        %v5073 = vadd.f32 %v5072, %v4896
        %v5074 = vadd.f32 %v5073, %v4898
        %v5075 = vadd.f32 %v5074, %v4900
        %v5076 = vadd.f32 %v5075, %v4902
        %v5077 = vrot.slane %v5076, 4
        %v5078 = vadd.f32 %v5076, %v5077
        %v5079 = vrot.slane %v5078, 2
        %v5080 = vadd.f32 %v5078, %v5079
        %v5081 = vrot.slane %v5080, 1
        %v5082 = vadd.f32 %v5080, %v5081
        %v5083 = vadd.f32 %v4904, %v4906
        %v5084 = vadd.f32 %v5083, %v4908
        %v5085 = vadd.f32 %v5084, %v4910
        %v5086 = vadd.f32 %v5085, %v4912
        %v5087 = vadd.f32 %v5086, %v4914
        %v5088 = vadd.f32 %v5087, %v4916
        %v5089 = vadd.f32 %v5088, %v4918
        %v5090 = vadd.f32 %v5089, %v4920
        %v5091 = vadd.f32 %v5090, %v4922
        %v5092 = vadd.f32 %v5091, %v4924
        %v5093 = vadd.f32 %v5092, %v4926
        %v5094 = vadd.f32 %v5093, %v4928
        %v5095 = vadd.f32 %v5094, %v4930
        %v5096 = vadd.f32 %v5095, %v4932
        %v5097 = vadd.f32 %v5096, %v4934
        %v5098 = vrot.slane %v5097, 4
        %v5099 = vadd.f32 %v5097, %v5098
        %v5100 = vrot.slane %v5099, 2
        %v5101 = vadd.f32 %v5099, %v5100
        %v5102 = vrot.slane %v5101, 1
        %v5103 = vadd.f32 %v5101, %v5102
        %v5104 = vadd.f32 %v4936, %v4938
        %v5105 = vadd.f32 %v5104, %v4940
        %v5106 = vadd.f32 %v5105, %v4942
        %v5107 = vadd.f32 %v5106, %v4944
        %v5108 = vadd.f32 %v5107, %v4946
        %v5109 = vadd.f32 %v5108, %v4948
        %v5110 = vadd.f32 %v5109, %v4950
        %v5111 = vadd.f32 %v5110, %v4952
        %v5112 = vadd.f32 %v5111, %v4954
        %v5113 = vadd.f32 %v5112, %v4956
        %v5114 = vadd.f32 %v5113, %v4958
        %v5115 = vadd.f32 %v5114, %v4960
        %v5116 = vadd.f32 %v5115, %v4962
        %v5117 = vadd.f32 %v5116, %v4964
        %v5118 = vadd.f32 %v5117, %v4966
        %v5119 = vrot.slane %v5118, 4
        %v5120 = vadd.f32 %v5118, %v5119
        %v5121 = vrot.slane %v5120, 2
        %v5122 = vadd.f32 %v5120, %v5121
        %v5123 = vrot.slane %v5122, 1
        %v5124 = vadd.f32 %v5122, %v5123
        %v5125 = vadd.f32 %v4968, %v4970
        %v5126 = vadd.f32 %v5125, %v4972
        %v5127 = vadd.f32 %v5126, %v4974
        %v5128 = vadd.f32 %v5127, %v4976
        %v5129 = vadd.f32 %v5128, %v4978
        %v5130 = vadd.f32 %v5129, %v4980
        %v5131 = vadd.f32 %v5130, %v4982
        %v5132 = vadd.f32 %v5131, %v4984
        %v5133 = vadd.f32 %v5132, %v4986
        %v5134 = vadd.f32 %v5133, %v4988
        %v5135 = vadd.f32 %v5134, %v4990
        %v5136 = vadd.f32 %v5135, %v4992
        %v5137 = vadd.f32 %v5136, %v4994
        %v5138 = vadd.f32 %v5137, %v4996
        %v5139 = vadd.f32 %v5138, %v4998
        %v5140 = vrot.slane %v5139, 4
        %v5141 = vadd.f32 %v5139, %v5140
        %v5142 = vrot.slane %v5141, 2
        %v5143 = vadd.f32 %v5141, %v5142
        %v5144 = vrot.slane %v5143, 1
        %v5145 = vadd.f32 %v5143, %v5144
        %vm5153 = vcmask 1041409
        %v5154 = vsel %vm5153, %v3444, %v3423
        %vm5155 = vcmask 1042434
        %v5156 = vsel %vm5155, %v3465, %v5154
        %vm5157 = vcmask 1043459
        %v5158 = vsel %vm5157, %v3486, %v5156
        %vm5159 = vcmask 1044484
        %v5160 = vsel %vm5159, %v3507, %v5158
        %vm5161 = vcmask 1045509
        %v5162 = vsel %vm5161, %v3528, %v5160
        %vm5163 = vcmask 1046534
        %v5164 = vsel %vm5163, %v3549, %v5162
        %v5173 = vsel %vm5153, %v3815, %v3794
        %v5174 = vsel %vm5155, %v3836, %v5173
        %v5175 = vsel %vm5157, %v3857, %v5174
        %v5176 = vsel %vm5159, %v3878, %v5175
        %v5177 = vsel %vm5161, %v3899, %v5176
        %v5178 = vsel %vm5163, %v3920, %v5177
        %v5187 = vsel %vm5153, %v4186, %v4165
        %v5188 = vsel %vm5155, %v4207, %v5187
        %v5189 = vsel %vm5157, %v4228, %v5188
        %v5190 = vsel %vm5159, %v4249, %v5189
        %v5191 = vsel %vm5161, %v4270, %v5190
        %v5192 = vsel %vm5163, %v4291, %v5191
        %v5201 = vsel %vm5153, %v4557, %v4536
        %v5202 = vsel %vm5155, %v4578, %v5201
        %v5203 = vsel %vm5157, %v4599, %v5202
        %v5204 = vsel %vm5159, %v4620, %v5203
        %v5205 = vsel %vm5161, %v4641, %v5204
        %v5206 = vsel %vm5163, %v4662, %v5205
        %v5215 = vsel %vm5153, %v5040, %v5019
        %v5216 = vsel %vm5155, %v5061, %v5215
        %v5217 = vsel %vm5157, %v5082, %v5216
        %v5218 = vsel %vm5159, %v5103, %v5217
        %v5219 = vsel %vm5161, %v5124, %v5218
        %v5220 = vsel %vm5163, %v5145, %v5219
        %vm5222 = vcmask 7168
        %v5223 = vsel %vm5222, %v5164, %v5178
        %vm5224 = vcmask 15360
        %v5225 = vsel %vm5224, %v5223, %v5192
        %vm5226 = vcmask 23552
        %v5227 = vsel %vm5226, %v5225, %v5206
        %vm5228 = vcmask 31744
        %v5229 = vsel %vm5228, %v5227, %v5220
        %v5230 = vld [vmem:[%s294] sm:$0x7f]
        %v5231 = vadd.f32 %v5230, %v5229
        %vm5232 = vcmask 38912
        %5233 = vst.msk [vmem:[%s294] sm:$0x7f] %vm5232, %v5231
        %s5234 = sand.u32 %s156, 1
        %s5235 = scalar_lea.sflag [#allocation4], %s5234
        %s5236 = sand.u32 %s156, 1
        %s5237 = smul.addr %s5236, 8
        %s5238 = scalar_lea.vmem [#allocation7], %s5237
        // Predicated region
        $region49: #{tpu_custom_call.1} parent=35 // pred_check
          %p5239 = pneg %p166
        $region50: #{tpu_custom_call.1} parent=35 // pred_check_branch
          %5241 = sbr.rel (%p5239) target = $region52
        $region51: #{tpu_custom_call.1} parent=35 // pred_region
          %s5243 = ssub.s32 128, 128
          %5244 = vsyncadd %s5235, %s5243
          %s5245 = sadd.s32 %s28, %s27
          %s5246 = smul.addr %s5245, 128
          %s5247 = scalar_lea.hbm %s4, %s5246
          %s5249 = sshll.u32 %s5238, 4
          %s5250 = int_to_ptr.vmem [resolvable:$true] %s5249
          %5252 = dma.vmem_to_hbm [thread:$0]  %s5250, 128, %s5247, %s5235
        $region52: #{tpu_custom_call.1} parent=35 // pred_fallthru
          _
      $region36: #{tpu_custom_call.1} parent=5 // pred_fallthru
        _
      %p5253 = scmp.le.s32.totalorder 2, %s17
      // Predicated region
      $region53: #{tpu_custom_call.1} parent=5 // pred_check
        %p5254 = pneg %p5253
      $region54: #{tpu_custom_call.1} parent=5 // pred_check_branch
        %5256 = sbr.rel (%p5254) target = $region56
      $region55: #{tpu_custom_call.1} parent=5 // pred_region
        %s5257 = ssub.s32 %s17, 2
        // Predicated region
        $region57: #{tpu_custom_call.1} parent=55 // pred_check
          %p5258 = pneg %p172
        $region58: #{tpu_custom_call.1} parent=55 // pred_check_branch
          %5260 = sbr.rel (%p5258) target = $region60
        $region59: #{tpu_custom_call.1} parent=55 // pred_region
          %s5261 = sand.u32 %s157, 1
          %s5262 = scalar_lea.sflag [#allocation4], %s5261
          %s5263 = sand.u32 %s157, 1
          %s5264 = smul.addr %s5263, 8
          %s5265 = scalar_lea.vmem [#allocation7], %s5264
          %5266 = dma.done %s5262, 128
        $region60: #{tpu_custom_call.1} parent=55 // pred_fallthru
          _
      $region56: #{tpu_custom_call.1} parent=5 // pred_fallthru
        _
    $region6: #{tpu_custom_call.1} parent=1 // loop_footer
      %s21 = sadd.s32 1, %s17
    $region7: #{tpu_custom_call.1} parent=1 // loop_footer_branch
      %16 = sbr.rel target = $region3
    $region8: #{tpu_custom_call.1} parent=1 // loop_exit
      _
    %5267 = vsyncpa [#allocation3], 1
    %s5268 = scalar_lea.sflag [#allocation3], 1
    %5269 = vsyncpa %s5268, 1
    %5270 = vsyncpa [#allocation6], 1
    %s5271 = scalar_lea.sflag [#allocation6], 1
    %5272 = vsyncpa %s5271, 1
    %5273 = vsyncpa [#allocation4], 1
    %s5274 = scalar_lea.sflag [#allocation4], 1
    %5275 = vsyncpa %s5274, 1

</llo_original>
